<compile_context>
chip_gen: v5e
topology: v5e:2x2
jax: 0.10.0
libtpu: 0.0.40
codegen_flags: <defaults>
</compile_context>

<pallas_src>
from functools import partial

import jax
import jax.numpy as jnp
from jax import lax
from jax.experimental import pallas as pl
from jax.experimental.pallas import tpu as pltpu

LANE = 128       # channel (lane) padding unit -> unmasked, lane-dense stores
SUBLANE = 16     # bf16 packs (16, 128) per vreg -> keep row tiles % 16 == 0
ROW_TILE = 512   # target rows/tile: amortizes ~0.35us/step, keeps VMEM < ~48 MiB


# ---------------------------------------------------------------------------
# small helpers
# ---------------------------------------------------------------------------
def _ceil_to(x, m):
    return (x + m - 1) // m * m


def _pad_axis(a, axis, target):
    pad = target - a.shape[axis]
    if pad == 0:
        return a
    widths = [(0, 0)] * a.ndim
    widths[axis] = (0, pad)
    return jnp.pad(a, widths)


def _pad_rows(a, rows):
    if a.shape[0] == rows:
        return a
    return jnp.pad(a, ((0, rows - a.shape[0]),) + ((0, 0),) * (a.ndim - 1))


def _nbytes(shape, dtype):
    n = 1
    for d in shape:
        n *= int(d)
    return n * jnp.dtype(dtype).itemsize


def _vmem_limit(blocks):
    """blocks: [(block_shape, dtype), ...] including the output block.
    2x for double buffering + slack; kept well under v7x's 64 MiB physical."""
    need = 2 * sum(_nbytes(s, d) for s, d in blocks) + (4 << 20)
    return int(min(max(need, 32 << 20), 100 << 20))


def fold_bn(gamma, beta, mean, var, eps=1e-5):
    scale = gamma / jnp.sqrt(var + eps)
    return scale, beta - mean * scale


# ---------------------------------------------------------------------------
# kernel 1 & 3: fused pointwise (1x1 conv) matmul + BN + [residual] + [ReLU]
# ---------------------------------------------------------------------------
def _make_pw_kernel(apply_relu, mode, precision):
    def kernel(*refs):
        if mode == "matmul_res":
            x_ref, w_ref, s_ref, b_ref, xd_ref, wd_ref, sd_ref, bd_ref, o_ref = refs
        elif mode == "add_res":
            x_ref, w_ref, s_ref, b_ref, r_ref, o_ref = refs
        else:
            x_ref, w_ref, s_ref, b_ref, o_ref = refs
        y = jnp.dot(x_ref[...], w_ref[...], precision=precision,
                    preferred_element_type=jnp.float32)
        y = y * s_ref[...] + b_ref[...]
        if mode == "matmul_res":
            yd = jnp.dot(xd_ref[...], wd_ref[...], precision=precision,
                         preferred_element_type=jnp.float32)
            y = y + (yd * sd_ref[...] + bd_ref[...])
        elif mode == "add_res":
            y = y + r_ref[...].astype(jnp.float32)
        if apply_relu:
            y = jnp.maximum(y, 0.0)
        o_ref[...] = y.astype(o_ref.dtype)
    return kernel


def pointwise_conv_bn_act(x, w, scale, bias, *, apply_relu, residual=None,
                          residual_matmul=None, out_dtype=jnp.float32):
    """Fused y = [relu]( (x @ w) * scale + bias [+ residual] ).

    x: (M, K) in compute dtype, K % 128 == 0.  w: (K, Cout), Cout % 128 == 0.
    residual        : optional (M, Cout) tensor added in the epilogue.
    residual_matmul : optional (xd, wd, sd, bd) second fused matmul (the strided
                      downsample 1x1 conv) sharing the same row tile / epilogue.
    """
    M, K = x.shape
    Cout = w.shape[1]
    prec = lax.Precision.HIGHEST if x.dtype == jnp.float32 else None

    tm = min(ROW_TILE, _ceil_to(M, SUBLANE))
    m_pad = _ceil_to(M, tm)            # pad rows: never one giant full-M block
    grid = (m_pad // tm,)

    x = _pad_rows(x, m_pad)
    s2 = scale.reshape(1, Cout).astype(jnp.float32)
    b2 = bias.reshape(1, Cout).astype(jnp.float32)

    in_specs = [
        pl.BlockSpec((tm, K), lambda i: (i, 0)),
        # constant block index -> weight / BN params stay VMEM-resident
        # TODO(synk): pipeline_mode=pl.Buffered(1) on these resident blocks would
        #             halve their VMEM footprint on v7x if it ever becomes tight.
        pl.BlockSpec((K, Cout), lambda i: (0, 0)),
        pl.BlockSpec((1, Cout), lambda i: (0, 0)),
        pl.BlockSpec((1, Cout), lambda i: (0, 0)),
    ]
    args = [x, w, s2, b2]
    blocks = [((tm, K), x.dtype), ((K, Cout), w.dtype),
              ((1, Cout), jnp.float32), ((1, Cout), jnp.float32)]

    if residual_matmul is not None:
        xd, wd, sd, bd = residual_matmul
        Kd = xd.shape[1]
        xd = _pad_rows(xd, m_pad)
        in_specs += [pl.BlockSpec((tm, Kd), lambda i: (i, 0)),
                     pl.BlockSpec((Kd, Cout), lambda i: (0, 0)),
                     pl.BlockSpec((1, Cout), lambda i: (0, 0)),
                     pl.BlockSpec((1, Cout), lambda i: (0, 0))]
        args += [xd, wd, sd.reshape(1, Cout).astype(jnp.float32),
                 bd.reshape(1, Cout).astype(jnp.float32)]
        blocks += [((tm, Kd), xd.dtype), ((Kd, Cout), wd.dtype),
                   ((1, Cout), jnp.float32), ((1, Cout), jnp.float32)]
        mode = "matmul_res"
    elif residual is not None:
        res = _pad_rows(residual, m_pad)
        in_specs.append(pl.BlockSpec((tm, Cout), lambda i: (i, 0)))
        args.append(res)
        blocks.append(((tm, Cout), res.dtype))
        mode = "add_res"
    else:
        mode = "none"
    blocks.append(((tm, Cout), out_dtype))

    out = pl.pallas_call(
        _make_pw_kernel(apply_relu, mode, prec),
        out_shape=jax.ShapeDtypeStruct((m_pad, Cout), out_dtype),
        grid_spec=pltpu.PrefetchScalarGridSpec(
            num_scalar_prefetch=0,
            grid=grid,
            in_specs=in_specs,
            out_specs=pl.BlockSpec((tm, Cout), lambda i: (i, 0))),
        compiler_params=pltpu.CompilerParams(
            dimension_semantics=("parallel",),
            vmem_limit_bytes=_vmem_limit(blocks)),
    )(*args)
    return out[:M] if m_pad != M else out


# ---------------------------------------------------------------------------
# kernel 2: grouped 3x3 conv (padding=1) + BN + ReLU, taps formed in-kernel
# ---------------------------------------------------------------------------
def _make_grouped3x3_kernel(Ho, Wo, Hq, stride, csg, precision):
    taps = [(dy, dx) for dy in range(3) for dx in range(3)]

    def kernel(x_ref, w_ref, s_ref, b_ref, o_ref):
        # x_ref : (1, stride*stride*Hq, Wq, csg) phase-decomposed padded slab
        # w_ref : (9*csg, csg)  tap-stacked per-super-group weight (block-diag/group)
        # s_ref/b_ref : (1, csg) folded BN
        # o_ref : (1, Ho, Wo, csg)
        acc = jnp.zeros((Ho * Wo, csg), jnp.float32)
        for t, (dy, dx) in enumerate(taps):
            ph = (dy % stride) * stride + (dx % stride)
            r0 = ph * Hq + dy // stride
            c0 = dx // stride
            sl = x_ref[0, r0:r0 + Ho, c0:c0 + Wo, :]          # (Ho, Wo, csg)
            acc = acc + jnp.dot(sl.reshape(Ho * Wo, csg),
                                w_ref[t * csg:(t + 1) * csg, :],
                                precision=precision,
                                preferred_element_type=jnp.float32)
        y = jnp.maximum(acc * s_ref[...] + b_ref[...], 0.0)
        o_ref[...] = y.reshape(1, Ho, Wo, csg).astype(o_ref.dtype)
    return kernel


def grouped_conv3x3_bn_relu(x_nhwc, w_packed, scale, bias, *, stride, csg,
                            out_dtype):
    """Grouped 3x3 conv (stride, padding=1) + BN + ReLU.

    x_nhwc  : (N, H, W, C) compute dtype, C = n_sg * csg (lane padded).
    w_packed: (n_sg * 9 * csg, csg) tap-stacked per-super-group weights.
    """
    N, H, W, C = x_nhwc.shape
    n_sg = C // csg
    s = stride
    Ho = (H - 1) // s + 1
    Wo = (W - 1) // s + 1
    Hq = -(-(H + 2) // s)
    Wq = -(-(W + 2) // s)
    prec = lax.Precision.HIGHEST if x_nhwc.dtype == jnp.float32 else None

    # Spatial halo pad, then decompose into stride-phases so the kernel only
    # needs unit-stride static slices (no strided VMEM reads).  ~1x activation
    # bytes instead of the 9x im2col slab of the previous version.
    xp = jnp.pad(x_nhwc, ((0, 0), (1, Hq * s - H - 1), (1, Wq * s - W - 1), (0, 0)))
    xph = xp.reshape(N, Hq, s, Wq, s, C).transpose(0, 2, 4, 1, 3, 5)
    xph = xph.reshape(N, s * s * Hq, Wq, C)

    s2 = scale.reshape(1, C).astype(jnp.float32)
    b2 = bias.reshape(1, C).astype(jnp.float32)

    blocks = [((1, s * s * Hq, Wq, csg), xph.dtype),
              ((9 * csg, csg), w_packed.dtype),
              ((1, csg), jnp.float32), ((1, csg), jnp.float32),
              ((1, Ho, Wo, csg), out_dtype)]

    # TODO(synk): for very large feature maps add an output-row grid axis with a
    #             +2-row halo; at ResNeXt bottleneck sizes a per-image slab of one
    #             super-group (<= ~1 MiB) fits VMEM comfortably.
    return pl.pallas_call(
        _make_grouped3x3_kernel(Ho, Wo, Hq, s, csg, prec),
        out_shape=jax.ShapeDtypeStruct((N, Ho, Wo, C), out_dtype),
        grid_spec=pltpu.PrefetchScalarGridSpec(
            num_scalar_prefetch=0,
            grid=(N, n_sg),
            in_specs=[
                pl.BlockSpec((1, s * s * Hq, Wq, csg), lambda n, g: (n, 0, 0, g)),
                pl.BlockSpec((9 * csg, csg), lambda n, g: (g, 0)),
                pl.BlockSpec((1, csg), lambda n, g: (0, g)),
                pl.BlockSpec((1, csg), lambda n, g: (0, g)),
            ],
            out_specs=pl.BlockSpec((1, Ho, Wo, csg), lambda n, g: (n, 0, 0, g))),
        compiler_params=pltpu.CompilerParams(
            dimension_semantics=("parallel", "parallel"),
            vmem_limit_bytes=_vmem_limit(blocks)),
    )(xph, w_packed, s2, b2)


# ---------------------------------------------------------------------------
# one-time parameter preparation (hoisted out of the per-forward path)
# ---------------------------------------------------------------------------
def _pick_group_pack(cg, w_p):
    """Output-lane width per stage-2 matmul: pack groups up to 128 lanes without
    ever splitting one group across a pack boundary (else fall back to full)."""
    csg = min(_ceil_to(max(cg, LANE), LANE), w_p)
    if csg % cg != 0 or w_p % csg != 0:
        csg = w_p
    return csg


def _pack_grouped3x3(w2, groups, w_p, csg, dtype):
    """PyTorch grouped weight (width, width//groups, 3, 3) -> (n_sg*9*csg, csg):
    per super-group of packed groups, 9 taps stacked along rows, (cin, cout)
    orientation, block-diagonal per real group."""
    width, cg = w2.shape[0], w2.shape[1]
    w2g = w2.reshape(groups, cg, cg, 3, 3)                               # (g, o, i, ky, kx)
    v = jnp.transpose(w2g, (0, 3, 4, 2, 1)).reshape(groups, 9, cg, cg)   # (g, tap, i, o)
    dense = jnp.zeros((9, groups, cg, groups, cg), w2.dtype)
    gidx = jnp.arange(groups)
    dense = dense.at[:, gidx, :, gidx, :].set(v)                         # block diagonal
    dense = dense.reshape(9, width, width)
    dense = _pad_axis(_pad_axis(dense, 1, w_p), 2, w_p)                  # (9, w_p, w_p)
    n_sg = w_p // csg
    blks = [dense[:, g * csg:(g + 1) * csg, g * csg:(g + 1) * csg].reshape(9 * csg, csg)
            for g in range(n_sg)]
    return jnp.concatenate(blks, axis=0).astype(dtype)


def prepare_params(p, *, groups, downsampling, compute_dtype=jnp.bfloat16):
    """Fold BN into f32 (scale, bias), transpose/pad 1x1 weights to (K, Cout)
    compute-dtype slabs, and pack the grouped 3x3 weight per super-group.
    Called ONCE, not per forward."""
    cdt = compute_dtype
    width, cin = p['w1'].shape[0], p['w1'].shape[1]
    cexp = p['w3'].shape[0]
    cg = width // groups
    cin_p, w_p, ce_p = _ceil_to(cin, LANE), _ceil_to(width, LANE), _ceil_to(cexp, LANE)
    csg = _pick_group_pack(cg, w_p)

    def pw(w, kin, kout):
        wt = jnp.transpose(w[:, :, 0, 0], (1, 0))
        return _pad_axis(_pad_axis(wt, 0, kin), 1, kout).astype(cdt)

    def bn(params, cpad):
        s, b = fold_bn(*params)
        return (_pad_axis(s, 0, cpad).astype(jnp.float32),
                _pad_axis(b, 0, cpad).astype(jnp.float32))

    prep = {
        'w1': pw(p['w1'], cin_p, w_p), 's1b1': bn(p['bn1'], w_p),
        'w2': _pack_grouped3x3(p['w2'], groups, w_p, csg, cdt),
        's2b2': bn(p['bn2'], w_p),
        'w3': pw(p['w3'], w_p, ce_p), 's3b3': bn(p['bn3'], ce_p),
    }
    if downsampling:
        prep['wd'] = pw(p['wd'], cin_p, ce_p)
        prep['sdbd'] = bn(p['bnd'], ce_p)
    return prep


# ---------------------------------------------------------------------------
# Bottleneck forward (Pallas path)
# ---------------------------------------------------------------------------
@partial(jax.jit, static_argnames=("stride", "downsampling", "cexp", "compute_dtype"))
def bottleneck_pallas(x_nchw, prep, *, stride, downsampling, cexp,
                      compute_dtype=jnp.bfloat16):
    """ResNeXt Bottleneck forward (eval-mode BN).  x_nchw: (N, Cin, H, W) f32."""
    N, Cin, H, W = x_nchw.shape
    cin_p, w_p = prep['w1'].shape
    ce_p = prep['w3'].shape[1]
    csg = prep['w2'].shape[1]
    cdt = compute_dtype

    # TODO(synk): in a full NHWC network the NCHW<->NHWC transposes and the f32
    #             final writeback at this module boundary would be dropped.
    x_nhwc = jnp.transpose(x_nchw, (0, 2, 3, 1))
    x_p = _pad_axis(x_nhwc, -1, cin_p).astype(cdt)

    # ---- stage 1: 1x1 conv + BN + ReLU ----
    o1 = pointwise_conv_bn_act(x_p.reshape(N * H * W, cin_p), prep['w1'],
                               *prep['s1b1'], apply_relu=True, out_dtype=cdt)
    o1 = o1.reshape(N, H, W, w_p)

    # ---- stage 2: grouped 3x3 conv (stride, padding=1) + BN + ReLU ----
    o2 = grouped_conv3x3_bn_relu(o1, prep['w2'], *prep['s2b2'],
                                 stride=stride, csg=csg, out_dtype=cdt)
    _, Ho, Wo, _ = o2.shape
    M2 = N * Ho * Wo
    o2 = o2.reshape(M2, w_p)

    # ---- stage 3: 1x1 conv + BN + residual + ReLU (downsample fused in) ----
    if downsampling:
        xs = x_p[:, ::stride, ::stride, :].reshape(M2, cin_p)
        o3 = pointwise_conv_bn_act(o2, prep['w3'], *prep['s3b3'], apply_relu=True,
                                   residual_matmul=(xs, prep['wd'], *prep['sdbd']),
                                   out_dtype=jnp.float32)
    else:
        assert stride == 1 and Cin == cexp, (
            "identity residual requires stride == 1 and in_channels == out_channels*expansion")
        res = _pad_axis(x_nhwc, -1, ce_p).reshape(M2, ce_p).astype(cdt)
        o3 = pointwise_conv_bn_act(o2, prep['w3'], *prep['s3b3'], apply_relu=True,
                                   residual=res, out_dtype=jnp.float32)

    out = o3.reshape(N, Ho, Wo, ce_p)[..., :cexp]
    return jnp.transpose(out, (0, 3, 1, 2))                    # back to NCHW


# ---------------------------------------------------------------------------
# parameter init + pure-JAX reference (eval-mode BN) for correctness checks
# ---------------------------------------------------------------------------
def init_params(key, in_channels, out_channels, groups=32, width_per_group=4,
                expansion=4):
    width = int(out_channels * (width_per_group / 64.0)) * groups
    cexp = out_channels * expansion
    cg = width // groups
    ks = jax.random.split(key, 8)

    def conv_w(k, shape, fan_in):
        return jax.random.normal(k, shape, jnp.float32) / jnp.sqrt(float(fan_in))

    def bn_p(k, c):
        k1, k2, k3, k4 = jax.random.split(k, 4)
        gamma = 1.0 + 0.1 * jax.random.normal(k1, (c,), jnp.float32)
        beta = 0.1 * jax.random.normal(k2, (c,), jnp.float32)
        mean = 0.1 * jax.random.normal(k3, (c,), jnp.float32)
        var = jnp.abs(jax.random.normal(k4, (c,), jnp.float32)) + 0.5
        return gamma, beta, mean, var

    p = {
        'w1': conv_w(ks[0], (width, in_channels, 1, 1), in_channels),
        'bn1': bn_p(ks[1], width),
        'w2': conv_w(ks[2], (width, cg, 3, 3), cg * 9),
        'bn2': bn_p(ks[3], width),
        'w3': conv_w(ks[4], (cexp, width, 1, 1), width),
        'bn3': bn_p(ks[5], cexp),
        'wd': conv_w(ks[6], (cexp, in_channels, 1, 1), in_channels),
        'bnd': bn_p(ks[7], cexp),
    }
    return p, width, cexp


def bottleneck_ref(x, p, groups, stride, downsampling):
    def conv(x, w, stride=1, groups=1, padding=0):
        return lax.conv_general_dilated(
            x, w, (stride, stride), [(padding, padding)] * 2,
            feature_group_count=groups,
            dimension_numbers=('NCHW', 'OIHW', 'NCHW'),
            precision=lax.Precision.HIGHEST)

    def bn(x, params):
        scale, bias = fold_bn(*params)
        return x * scale[None, :, None, None] + bias[None, :, None, None]

    relu = lambda t: jnp.maximum(t, 0.0)
    out = relu(bn(conv(x, p['w1']), p['bn1']))
    out = relu(bn(conv(out, p['w2'], stride=stride, groups=groups, padding=1), p['bn2']))
    out = bn(conv(out, p['w3']), p['bn3'])
    orig = x
    if downsampling:
        orig = bn(conv(x, p['wd'], stride=stride), p['bnd'])
    return relu(out + orig)


if __name__ == "__main__":
    key = jax.random.PRNGKey(0)
    kp1, kx1, kp2, kx2 = jax.random.split(key, 4)

    # ---- config A: stride-2 block with downsample branch ----
    N, Cin, H, W = 2, 64, 8, 8
    out_ch, groups, wpg, exp_ = 32, 32, 4, 4
    pA, widthA, cexpA = init_params(kp1, Cin, out_ch, groups, wpg, exp_)
    xA = jax.random.normal(kx1, (N, Cin, H, W), jnp.float32)
    refA = bottleneck_ref(xA, pA, groups, 2, True)

    prepA32 = prepare_params(pA, groups=groups, downsampling=True,
                             compute_dtype=jnp.float32)
    outA32 = jax.block_until_ready(bottleneck_pallas(
        xA, prepA32, stride=2, downsampling=True, cexp=cexpA,
        compute_dtype=jnp.float32))
    assert outA32.shape == refA.shape == (N, cexpA, H // 2, W // 2), outA32.shape
    errA32 = float(jnp.max(jnp.abs(outA32 - refA)))
    assert jnp.allclose(outA32, refA, rtol=1e-3, atol=1e-3), f"f32 max abs err {errA32}"

    prepA16 = prepare_params(pA, groups=groups, downsampling=True,
                             compute_dtype=jnp.bfloat16)
    outA16 = jax.block_until_ready(bottleneck_pallas(
        xA, prepA16, stride=2, downsampling=True, cexp=cexpA,
        compute_dtype=jnp.bfloat16))
    errA16 = float(jnp.max(jnp.abs(outA16 - refA)))
    assert jnp.allclose(outA16, refA, rtol=5e-2, atol=5e-2), f"bf16 max abs err {errA16}"

    # ---- config B: stride-1 identity-residual block ----
    CinB = out_ch * exp_                       # 128 -> identity shapes match
    pB, widthB, cexpB = init_params(kp2, CinB, out_ch, groups, wpg, exp_)
    xB = jax.random.normal(kx2, (N, CinB, H, W), jnp.float32)
    refB = bottleneck_ref(xB, pB, groups, 1, False)
    prepB32 = prepare_params(pB, groups=groups, downsampling=False,
                             compute_dtype=jnp.float32)
    outB32 = jax.block_until_ready(bottleneck_pallas(
        xB, prepB32, stride=1, downsampling=False, cexp=cexpB,
        compute_dtype=jnp.float32))
    errB32 = float(jnp.max(jnp.abs(outB32 - refB)))
    assert jnp.allclose(outB32, refB, rtol=1e-3, atol=1e-3), f"f32 max abs err {errB32}"

    print("KERNEL_OK")
</pallas_src>

<mosaic_0001>
module attributes {stable_mosaic.version = 11 : i64} {
  func.func @kernel(%arg0: i32, %arg1: memref<128x128xf32, #tpu.memory_space<vmem>>, %arg2: memref<128x128xf32, #tpu.memory_space<vmem>>, %arg3: memref<1x128xf32, #tpu.memory_space<vmem>>, %arg4: memref<1x128xf32, #tpu.memory_space<vmem>>, %arg5: memref<128x128xf32, #tpu.memory_space<vmem>>) attributes {dimension_semantics = [#tpu.dimension_semantics<parallel>], iteration_bounds = array<i64: 1>, scalar_prefetch = 0 : i64, scratch_operands = 0 : i64, tpu.core_type = #tpu.core_type<tc>, window_params = [{transform_indices = @transform_0, window_bounds = array<i64: 128, 128>}, {pipeline_mode = #tpu.pipeline_mode<synchronous>, transform_indices = @transform_1, window_bounds = array<i64: 128, 128>}, {pipeline_mode = #tpu.pipeline_mode<synchronous>, transform_indices = @transform_2, window_bounds = array<i64: 1, 128>}, {pipeline_mode = #tpu.pipeline_mode<synchronous>, transform_indices = @transform_3, window_bounds = array<i64: 1, 128>}, {transform_indices = @transform_4, window_bounds = array<i64: 128, 128>}]} {
    %c0 = arith.constant 0 : index
    %c0_0 = arith.constant 0 : index
    %0 = vector.load %arg1[%c0, %c0_0] : memref<128x128xf32, #tpu.memory_space<vmem>>, vector<128x128xf32>
    %c0_1 = arith.constant 0 : index
    %c0_2 = arith.constant 0 : index
    %1 = vector.load %arg2[%c0_1, %c0_2] : memref<128x128xf32, #tpu.memory_space<vmem>>, vector<128x128xf32>
    %cst = arith.constant dense<0.000000e+00> : vector<128x128xf32>
    %2 = tpu.matmul %0, %1, %cst {dimension_numbers = #tpu.dot_dimension_numbers<[1], [0], [0], [1], [0, 0, 1, 1], [], []>, precision = #tpu.contract_precision<fp32>} : vector<128x128xf32>, vector<128x128xf32>, vector<128x128xf32> -> vector<128x128xf32>
    %c0_3 = arith.constant 0 : index
    %c0_4 = arith.constant 0 : index
    %3 = vector.load %arg3[%c0_3, %c0_4] : memref<1x128xf32, #tpu.memory_space<vmem>>, vector<1x128xf32>
    %4 = vector.broadcast %3 : vector<1x128xf32> to vector<128x128xf32>
    %5 = arith.mulf %2, %4 : vector<128x128xf32>
    %c0_5 = arith.constant 0 : index
    %c0_6 = arith.constant 0 : index
    %6 = vector.load %arg4[%c0_5, %c0_6] : memref<1x128xf32, #tpu.memory_space<vmem>>, vector<1x128xf32>
    %7 = vector.broadcast %6 : vector<1x128xf32> to vector<128x128xf32>
    %8 = arith.addf %5, %7 : vector<128x128xf32>
    %cst_7 = arith.constant 0.000000e+00 : f32
    %9 = vector.broadcast %cst_7 : f32 to vector<128x128xf32>
    %10 = arith.maximumf %8, %9 : vector<128x128xf32>
    %c0_8 = arith.constant 0 : index
    %c0_9 = arith.constant 0 : index
    %11 = vector.load %arg5[%c0_8, %c0_9] : memref<128x128xf32, #tpu.memory_space<vmem>>, vector<128x128xf32>
    tpu.vector_store %arg5[%c0_8, %c0_9], %10 {strides = array<i32>} : memref<128x128xf32, #tpu.memory_space<vmem>>, vector<128x128xf32>,
    return
  }
  func.func @transform_0(%arg0: i32) -> (i32, i32) {
    %c0_i32 = arith.constant 0 : i32
    %c0_i32_0 = arith.constant 0 : i32
    return %arg0, %c0_i32 : i32, i32
  }
  func.func @transform_1(%arg0: i32) -> (i32, i32) {
    %c0_i32 = arith.constant 0 : i32
    %c0_i32_0 = arith.constant 0 : i32
    %c0_i32_1 = arith.constant 0 : i32
    return %c0_i32, %c0_i32_0 : i32, i32
  }
  func.func @transform_2(%arg0: i32) -> (i32, i32) {
    %c0_i32 = arith.constant 0 : i32
    %c0_i32_0 = arith.constant 0 : i32
    %c0_i32_1 = arith.constant 0 : i32
    return %c0_i32, %c0_i32_0 : i32, i32
  }
  func.func @transform_3(%arg0: i32) -> (i32, i32) {
    %c0_i32 = arith.constant 0 : i32
    %c0_i32_0 = arith.constant 0 : i32
    %c0_i32_1 = arith.constant 0 : i32
    return %c0_i32, %c0_i32_0 : i32, i32
  }
  func.func @transform_4(%arg0: i32) -> (i32, i32) {
    %c0_i32 = arith.constant 0 : i32
    %c0_i32_0 = arith.constant 0 : i32
    return %arg0, %c0_i32 : i32, i32
  }
}

module attributes {stable_mosaic.version = 11 : i64} {
  func.func @kernel(%arg0: i32, %arg1: i32, %arg2: memref<1x20x5x128xf32, #tpu.memory_space<vmem>>, %arg3: memref<1152x128xf32, #tpu.memory_space<vmem>>, %arg4: memref<1x128xf32, #tpu.memory_space<vmem>>, %arg5: memref<1x128xf32, #tpu.memory_space<vmem>>, %arg6: memref<1x4x4x128xf32, #tpu.memory_space<vmem>>) attributes {dimension_semantics = [#tpu.dimension_semantics<parallel>, #tpu.dimension_semantics<parallel>], iteration_bounds = array<i64: 2, 1>, scalar_prefetch = 0 : i64, scratch_operands = 0 : i64, tpu.core_type = #tpu.core_type<tc>, window_params = [{transform_indices = @transform_0, window_bounds = array<i64: 1, 20, 5, 128>}, {transform_indices = @transform_1, window_bounds = array<i64: 1152, 128>}, {transform_indices = @transform_2, window_bounds = array<i64: 1, 128>}, {transform_indices = @transform_3, window_bounds = array<i64: 1, 128>}, {transform_indices = @transform_4, window_bounds = array<i64: 1, 4, 4, 128>}]} {
    %cst = arith.constant 0.000000e+00 : f32
    %0 = vector.broadcast %cst : f32 to vector<16x128xf32>
    %c0 = arith.constant 0 : index
    %c0_0 = arith.constant 0 : index
    %c0_1 = arith.constant 0 : index
    %c0_2 = arith.constant 0 : index
    %1 = vector.load %arg2[%c0, %c0_0, %c0_1, %c0_2] : memref<1x20x5x128xf32, #tpu.memory_space<vmem>>, vector<1x4x4x128xf32>
    %2 = vector.shape_cast %1 : vector<1x4x4x128xf32> to vector<4x4x128xf32>
    %3 = vector.shape_cast %2 : vector<4x4x128xf32> to vector<16x128xf32>
    %c0_3 = arith.constant 0 : index
    %c0_4 = arith.constant 0 : index
    %4 = vector.load %arg3[%c0_3, %c0_4] : memref<1152x128xf32, #tpu.memory_space<vmem>>, vector<128x128xf32>
    %cst_5 = arith.constant dense<0.000000e+00> : vector<16x128xf32>
    %5 = tpu.matmul %3, %4, %cst_5 {dimension_numbers = #tpu.dot_dimension_numbers<[1], [0], [0], [1], [0, 0, 1, 1], [], []>, precision = #tpu.contract_precision<fp32>} : vector<16x128xf32>, vector<128x128xf32>, vector<16x128xf32> -> vector<16x128xf32>
    %6 = arith.addf %0, %5 : vector<16x128xf32>
    %c0_6 = arith.constant 0 : index
    %c5 = arith.constant 5 : index
    %c0_7 = arith.constant 0 : index
    %c0_8 = arith.constant 0 : index
    %7 = vector.load %arg2[%c0_6, %c5, %c0_7, %c0_8] : memref<1x20x5x128xf32, #tpu.memory_space<vmem>>, vector<1x4x4x128xf32>
    %8 = vector.shape_cast %7 : vector<1x4x4x128xf32> to vector<4x4x128xf32>
    %9 = vector.shape_cast %8 : vector<4x4x128xf32> to vector<16x128xf32>
    %c128 = arith.constant 128 : index
    %c0_9 = arith.constant 0 : index
    %10 = vector.load %arg3[%c128, %c0_9] : memref<1152x128xf32, #tpu.memory_space<vmem>>, vector<128x128xf32>
    %cst_10 = arith.constant dense<0.000000e+00> : vector<16x128xf32>
    %11 = tpu.matmul %9, %10, %cst_10 {dimension_numbers = #tpu.dot_dimension_numbers<[1], [0], [0], [1], [0, 0, 1, 1], [], []>, precision = #tpu.contract_precision<fp32>} : vector<16x128xf32>, vector<128x128xf32>, vector<16x128xf32> -> vector<16x128xf32>
    %12 = arith.addf %6, %11 : vector<16x128xf32>
    %c0_11 = arith.constant 0 : index
    %c0_12 = arith.constant 0 : index
    %c1 = arith.constant 1 : index
    %c0_13 = arith.constant 0 : index
    %13 = vector.load %arg2[%c0_11, %c0_12, %c1, %c0_13] : memref<1x20x5x128xf32, #tpu.memory_space<vmem>>, vector<1x4x4x128xf32>
    %14 = vector.shape_cast %13 : vector<1x4x4x128xf32> to vector<4x4x128xf32>
    %15 = vector.shape_cast %14 : vector<4x4x128xf32> to vector<16x128xf32>
    %c256 = arith.constant 256 : index
    %c0_14 = arith.constant 0 : index
    %16 = vector.load %arg3[%c256, %c0_14] : memref<1152x128xf32, #tpu.memory_space<vmem>>, vector<128x128xf32>
    %cst_15 = arith.constant dense<0.000000e+00> : vector<16x128xf32>
    %17 = tpu.matmul %15, %16, %cst_15 {dimension_numbers = #tpu.dot_dimension_numbers<[1], [0], [0], [1], [0, 0, 1, 1], [], []>, precision = #tpu.contract_precision<fp32>} : vector<16x128xf32>, vector<128x128xf32>, vector<16x128xf32> -> vector<16x128xf32>
    %18 = arith.addf %12, %17 : vector<16x128xf32>
    %c0_16 = arith.constant 0 : index
    %c10 = arith.constant 10 : index
    %c0_17 = arith.constant 0 : index
    %c0_18 = arith.constant 0 : index
    %19 = vector.load %arg2[%c0_16, %c10, %c0_17, %c0_18] : memref<1x20x5x128xf32, #tpu.memory_space<vmem>>, vector<1x4x4x128xf32>
    %20 = vector.shape_cast %19 : vector<1x4x4x128xf32> to vector<4x4x128xf32>
    %21 = vector.shape_cast %20 : vector<4x4x128xf32> to vector<16x128xf32>
    %c384 = arith.constant 384 : index
    %c0_19 = arith.constant 0 : index
    %22 = vector.load %arg3[%c384, %c0_19] : memref<1152x128xf32, #tpu.memory_space<vmem>>, vector<128x128xf32>
    %cst_20 = arith.constant dense<0.000000e+00> : vector<16x128xf32>
    %23 = tpu.matmul %21, %22, %cst_20 {dimension_numbers = #tpu.dot_dimension_numbers<[1], [0], [0], [1], [0, 0, 1, 1], [], []>, precision = #tpu.contract_precision<fp32>} : vector<16x128xf32>, vector<128x128xf32>, vector<16x128xf32> -> vector<16x128xf32>
    %24 = arith.addf %18, %23 : vector<16x128xf32>
    %c0_21 = arith.constant 0 : index
    %c15 = arith.constant 15 : index
    %c0_22 = arith.constant 0 : index
    %c0_23 = arith.constant 0 : index
    %25 = vector.load %arg2[%c0_21, %c15, %c0_22, %c0_23] : memref<1x20x5x128xf32, #tpu.memory_space<vmem>>, vector<1x4x4x128xf32>
    %26 = vector.shape_cast %25 : vector<1x4x4x128xf32> to vector<4x4x128xf32>
    %27 = vector.shape_cast %26 : vector<4x4x128xf32> to vector<16x128xf32>
    %c512 = arith.constant 512 : index
    %c0_24 = arith.constant 0 : index
    %28 = vector.load %arg3[%c512, %c0_24] : memref<1152x128xf32, #tpu.memory_space<vmem>>, vector<128x128xf32>
    %cst_25 = arith.constant dense<0.000000e+00> : vector<16x128xf32>
    %29 = tpu.matmul %27, %28, %cst_25 {dimension_numbers = #tpu.dot_dimension_numbers<[1], [0], [0], [1], [0, 0, 1, 1], [], []>, precision = #tpu.contract_precision<fp32>} : vector<16x128xf32>, vector<128x128xf32>, vector<16x128xf32> -> vector<16x128xf32>
    %30 = arith.addf %24, %29 : vector<16x128xf32>
    %c0_26 = arith.constant 0 : index
    %c10_27 = arith.constant 10 : index
    %c1_28 = arith.constant 1 : index
    %c0_29 = arith.constant 0 : index
    %31 = vector.load %arg2[%c0_26, %c10_27, %c1_28, %c0_29] : memref<1x20x5x128xf32, #tpu.memory_space<vmem>>, vector<1x4x4x128xf32>
    %32 = vector.shape_cast %31 : vector<1x4x4x128xf32> to vector<4x4x128xf32>
    %33 = vector.shape_cast %32 : vector<4x4x128xf32> to vector<16x128xf32>
    %c640 = arith.constant 640 : index
    %c0_30 = arith.constant 0 : index
    %34 = vector.load %arg3[%c640, %c0_30] : memref<1152x128xf32, #tpu.memory_space<vmem>>, vector<128x128xf32>
    %cst_31 = arith.constant dense<0.000000e+00> : vector<16x128xf32>
    %35 = tpu.matmul %33, %34, %cst_31 {dimension_numbers = #tpu.dot_dimension_numbers<[1], [0], [0], [1], [0, 0, 1, 1], [], []>, precision = #tpu.contract_precision<fp32>} : vector<16x128xf32>, vector<128x128xf32>, vector<16x128xf32> -> vector<16x128xf32>
    %36 = arith.addf %30, %35 : vector<16x128xf32>
    %c0_32 = arith.constant 0 : index
    %c1_33 = arith.constant 1 : index
    %c0_34 = arith.constant 0 : index
    %c0_35 = arith.constant 0 : index
    %37 = vector.load %arg2[%c0_32, %c1_33, %c0_34, %c0_35] : memref<1x20x5x128xf32, #tpu.memory_space<vmem>>, vector<1x4x4x128xf32>
    %38 = vector.shape_cast %37 : vector<1x4x4x128xf32> to vector<4x4x128xf32>
    %39 = vector.shape_cast %38 : vector<4x4x128xf32> to vector<16x128xf32>
    %c768 = arith.constant 768 : index
    %c0_36 = arith.constant 0 : index
    %40 = vector.load %arg3[%c768, %c0_36] : memref<1152x128xf32, #tpu.memory_space<vmem>>, vector<128x128xf32>
    %cst_37 = arith.constant dense<0.000000e+00> : vector<16x128xf32>
    %41 = tpu.matmul %39, %40, %cst_37 {dimension_numbers = #tpu.dot_dimension_numbers<[1], [0], [0], [1], [0, 0, 1, 1], [], []>, precision = #tpu.contract_precision<fp32>} : vector<16x128xf32>, vector<128x128xf32>, vector<16x128xf32> -> vector<16x128xf32>
    %42 = arith.addf %36, %41 : vector<16x128xf32>
    %c0_38 = arith.constant 0 : index
    %c6 = arith.constant 6 : index
    %c0_39 = arith.constant 0 : index
    %c0_40 = arith.constant 0 : index
    %43 = vector.load %arg2[%c0_38, %c6, %c0_39, %c0_40] : memref<1x20x5x128xf32, #tpu.memory_space<vmem>>, vector<1x4x4x128xf32>
    %44 = vector.shape_cast %43 : vector<1x4x4x128xf32> to vector<4x4x128xf32>
    %45 = vector.shape_cast %44 : vector<4x4x128xf32> to vector<16x128xf32>
    %c896 = arith.constant 896 : index
    %c0_41 = arith.constant 0 : index
    %46 = vector.load %arg3[%c896, %c0_41] : memref<1152x128xf32, #tpu.memory_space<vmem>>, vector<128x128xf32>
    %cst_42 = arith.constant dense<0.000000e+00> : vector<16x128xf32>
    %47 = tpu.matmul %45, %46, %cst_42 {dimension_numbers = #tpu.dot_dimension_numbers<[1], [0], [0], [1], [0, 0, 1, 1], [], []>, precision = #tpu.contract_precision<fp32>} : vector<16x128xf32>, vector<128x128xf32>, vector<16x128xf32> -> vector<16x128xf32>
    %48 = arith.addf %42, %47 : vector<16x128xf32>
    %c0_43 = arith.constant 0 : index
    %c1_44 = arith.constant 1 : index
    %c1_45 = arith.constant 1 : index
    %c0_46 = arith.constant 0 : index
    %49 = vector.load %arg2[%c0_43, %c1_44, %c1_45, %c0_46] : memref<1x20x5x128xf32, #tpu.memory_space<vmem>>, vector<1x4x4x128xf32>
    %50 = vector.shape_cast %49 : vector<1x4x4x128xf32> to vector<4x4x128xf32>
    %51 = vector.shape_cast %50 : vector<4x4x128xf32> to vector<16x128xf32>
    %c1024 = arith.constant 1024 : index
    %c0_47 = arith.constant 0 : index
    %52 = vector.load %arg3[%c1024, %c0_47] : memref<1152x128xf32, #tpu.memory_space<vmem>>, vector<128x128xf32>
    %cst_48 = arith.constant dense<0.000000e+00> : vector<16x128xf32>
    %53 = tpu.matmul %51, %52, %cst_48 {dimension_numbers = #tpu.dot_dimension_numbers<[1], [0], [0], [1], [0, 0, 1, 1], [], []>, precision = #tpu.contract_precision<fp32>} : vector<16x128xf32>, vector<128x128xf32>, vector<16x128xf32> -> vector<16x128xf32>
    %54 = arith.addf %48, %53 : vector<16x128xf32>
    %c0_49 = arith.constant 0 : index
    %c0_50 = arith.constant 0 : index
    %55 = vector.load %arg4[%c0_49, %c0_50] : memref<1x128xf32, #tpu.memory_space<vmem>>, vector<1x128xf32>
    %56 = vector.broadcast %55 : vector<1x128xf32> to vector<16x128xf32>
    %57 = arith.mulf %54, %56 : vector<16x128xf32>
    %c0_51 = arith.constant 0 : index
    %c0_52 = arith.constant 0 : index
    %58 = vector.load %arg5[%c0_51, %c0_52] : memref<1x128xf32, #tpu.memory_space<vmem>>, vector<1x128xf32>
    %59 = vector.broadcast %58 : vector<1x128xf32> to vector<16x128xf32>
    %60 = arith.addf %57, %59 : vector<16x128xf32>
    %cst_53 = arith.constant 0.000000e+00 : f32
    %61 = vector.broadcast %cst_53 : f32 to vector<16x128xf32>
    %62 = arith.maximumf %60, %61 : vector<16x128xf32>
    %63 = vector.shape_cast %62 : vector<16x128xf32> to vector<1x4x4x128xf32>
    %c0_54 = arith.constant 0 : index
    %c0_55 = arith.constant 0 : index
    %c0_56 = arith.constant 0 : index
    %c0_57 = arith.constant 0 : index
    %64 = vector.load %arg6[%c0_54, %c0_55, %c0_56, %c0_57] : memref<1x4x4x128xf32, #tpu.memory_space<vmem>>, vector<1x4x4x128xf32>
    tpu.vector_store %arg6[%c0_54, %c0_55, %c0_56, %c0_57], %63 {strides = array<i32>} : memref<1x4x4x128xf32, #tpu.memory_space<vmem>>, vector<1x4x4x128xf32>,
    return
  }
  func.func @transform_0(%arg0: i32, %arg1: i32) -> (i32, i32, i32, i32) {
    %c0_i32 = arith.constant 0 : i32
    %c0_i32_0 = arith.constant 0 : i32
    %c0_i32_1 = arith.constant 0 : i32
    return %arg0, %c0_i32, %c0_i32_0, %arg1 : i32, i32, i32, i32
  }
  func.func @transform_1(%arg0: i32, %arg1: i32) -> (i32, i32) {
    %c0_i32 = arith.constant 0 : i32
    %c0_i32_0 = arith.constant 0 : i32
    return %arg1, %c0_i32 : i32, i32
  }
  func.func @transform_2(%arg0: i32, %arg1: i32) -> (i32, i32) {
    %c0_i32 = arith.constant 0 : i32
    %c0_i32_0 = arith.constant 0 : i32
    return %c0_i32, %arg1 : i32, i32
  }
  func.func @transform_3(%arg0: i32, %arg1: i32) -> (i32, i32) {
    %c0_i32 = arith.constant 0 : i32
    %c0_i32_0 = arith.constant 0 : i32
    return %c0_i32, %arg1 : i32, i32
  }
  func.func @transform_4(%arg0: i32, %arg1: i32) -> (i32, i32, i32, i32) {
    %c0_i32 = arith.constant 0 : i32
    %c0_i32_0 = arith.constant 0 : i32
    %c0_i32_1 = arith.constant 0 : i32
    return %arg0, %c0_i32, %c0_i32_0, %arg1 : i32, i32, i32, i32
  }
}

module attributes {stable_mosaic.version = 11 : i64} {
  func.func @kernel(%arg0: i32, %arg1: memref<32x128xf32, #tpu.memory_space<vmem>>, %arg2: memref<128x128xf32, #tpu.memory_space<vmem>>, %arg3: memref<1x128xf32, #tpu.memory_space<vmem>>, %arg4: memref<1x128xf32, #tpu.memory_space<vmem>>, %arg5: memref<32x128xf32, #tpu.memory_space<vmem>>, %arg6: memref<128x128xf32, #tpu.memory_space<vmem>>, %arg7: memref<1x128xf32, #tpu.memory_space<vmem>>, %arg8: memref<1x128xf32, #tpu.memory_space<vmem>>, %arg9: memref<32x128xf32, #tpu.memory_space<vmem>>) attributes {dimension_semantics = [#tpu.dimension_semantics<parallel>], iteration_bounds = array<i64: 1>, scalar_prefetch = 0 : i64, scratch_operands = 0 : i64, tpu.core_type = #tpu.core_type<tc>, window_params = [{transform_indices = @transform_0, window_bounds = array<i64: 32, 128>}, {pipeline_mode = #tpu.pipeline_mode<synchronous>, transform_indices = @transform_1, window_bounds = array<i64: 128, 128>}, {pipeline_mode = #tpu.pipeline_mode<synchronous>, transform_indices = @transform_2, window_bounds = array<i64: 1, 128>}, {pipeline_mode = #tpu.pipeline_mode<synchronous>, transform_indices = @transform_3, window_bounds = array<i64: 1, 128>}, {transform_indices = @transform_4, window_bounds = array<i64: 32, 128>}, {pipeline_mode = #tpu.pipeline_mode<synchronous>, transform_indices = @transform_5, window_bounds = array<i64: 128, 128>}, {pipeline_mode = #tpu.pipeline_mode<synchronous>, transform_indices = @transform_6, window_bounds = array<i64: 1, 128>}, {pipeline_mode = #tpu.pipeline_mode<synchronous>, transform_indices = @transform_7, window_bounds = array<i64: 1, 128>}, {transform_indices = @transform_8, window_bounds = array<i64: 32, 128>}]} {
    %c0 = arith.constant 0 : index
    %c0_0 = arith.constant 0 : index
    %0 = vector.load %arg1[%c0, %c0_0] : memref<32x128xf32, #tpu.memory_space<vmem>>, vector<32x128xf32>
    %c0_1 = arith.constant 0 : index
    %c0_2 = arith.constant 0 : index
    %1 = vector.load %arg2[%c0_1, %c0_2] : memref<128x128xf32, #tpu.memory_space<vmem>>, vector<128x128xf32>
    %cst = arith.constant dense<0.000000e+00> : vector<32x128xf32>
    %2 = tpu.matmul %0, %1, %cst {dimension_numbers = #tpu.dot_dimension_numbers<[1], [0], [0], [1], [0, 0, 1, 1], [], []>, precision = #tpu.contract_precision<fp32>} : vector<32x128xf32>, vector<128x128xf32>, vector<32x128xf32> -> vector<32x128xf32>
    %c0_3 = arith.constant 0 : index
    %c0_4 = arith.constant 0 : index
    %3 = vector.load %arg3[%c0_3, %c0_4] : memref<1x128xf32, #tpu.memory_space<vmem>>, vector<1x128xf32>
    %4 = vector.broadcast %3 : vector<1x128xf32> to vector<32x128xf32>
    %5 = arith.mulf %2, %4 : vector<32x128xf32>
    %c0_5 = arith.constant 0 : index
    %c0_6 = arith.constant 0 : index
    %6 = vector.load %arg4[%c0_5, %c0_6] : memref<1x128xf32, #tpu.memory_space<vmem>>, vector<1x128xf32>
    %7 = vector.broadcast %6 : vector<1x128xf32> to vector<32x128xf32>
    %8 = arith.addf %5, %7 : vector<32x128xf32>
    %c0_7 = arith.constant 0 : index
    %c0_8 = arith.constant 0 : index
    %9 = vector.load %arg5[%c0_7, %c0_8] : memref<32x128xf32, #tpu.memory_space<vmem>>, vector<32x128xf32>
    %c0_9 = arith.constant 0 : index
    %c0_10 = arith.constant 0 : index
    %10 = vector.load %arg6[%c0_9, %c0_10] : memref<128x128xf32, #tpu.memory_space<vmem>>, vector<128x128xf32>
    %cst_11 = arith.constant dense<0.000000e+00> : vector<32x128xf32>
    %11 = tpu.matmul %9, %10, %cst_11 {dimension_numbers = #tpu.dot_dimension_numbers<[1], [0], [0], [1], [0, 0, 1, 1], [], []>, precision = #tpu.contract_precision<fp32>} : vector<32x128xf32>, vector<128x128xf32>, vector<32x128xf32> -> vector<32x128xf32>
    %c0_12 = arith.constant 0 : index
    %c0_13 = arith.constant 0 : index
    %12 = vector.load %arg7[%c0_12, %c0_13] : memref<1x128xf32, #tpu.memory_space<vmem>>, vector<1x128xf32>
    %13 = vector.broadcast %12 : vector<1x128xf32> to vector<32x128xf32>
    %14 = arith.mulf %11, %13 : vector<32x128xf32>
    %c0_14 = arith.constant 0 : index
    %c0_15 = arith.constant 0 : index
    %15 = vector.load %arg8[%c0_14, %c0_15] : memref<1x128xf32, #tpu.memory_space<vmem>>, vector<1x128xf32>
    %16 = vector.broadcast %15 : vector<1x128xf32> to vector<32x128xf32>
    %17 = arith.addf %14, %16 : vector<32x128xf32>
    %18 = arith.addf %8, %17 : vector<32x128xf32>
    %cst_16 = arith.constant 0.000000e+00 : f32
    %19 = vector.broadcast %cst_16 : f32 to vector<32x128xf32>
    %20 = arith.maximumf %18, %19 : vector<32x128xf32>
    %c0_17 = arith.constant 0 : index
    %c0_18 = arith.constant 0 : index
    %21 = vector.load %arg9[%c0_17, %c0_18] : memref<32x128xf32, #tpu.memory_space<vmem>>, vector<32x128xf32>
    tpu.vector_store %arg9[%c0_17, %c0_18], %20 {strides = array<i32>} : memref<32x128xf32, #tpu.memory_space<vmem>>, vector<32x128xf32>,
    return
  }
  func.func @transform_0(%arg0: i32) -> (i32, i32) {
    %c0_i32 = arith.constant 0 : i32
    %c0_i32_0 = arith.constant 0 : i32
    return %arg0, %c0_i32 : i32, i32
  }
  func.func @transform_1(%arg0: i32) -> (i32, i32) {
    %c0_i32 = arith.constant 0 : i32
    %c0_i32_0 = arith.constant 0 : i32
    %c0_i32_1 = arith.constant 0 : i32
    return %c0_i32, %c0_i32_0 : i32, i32
  }
  func.func @transform_2(%arg0: i32) -> (i32, i32) {
    %c0_i32 = arith.constant 0 : i32
    %c0_i32_0 = arith.constant 0 : i32
    %c0_i32_1 = arith.constant 0 : i32
    return %c0_i32, %c0_i32_0 : i32, i32
  }
  func.func @transform_3(%arg0: i32) -> (i32, i32) {
    %c0_i32 = arith.constant 0 : i32
    %c0_i32_0 = arith.constant 0 : i32
    %c0_i32_1 = arith.constant 0 : i32
    return %c0_i32, %c0_i32_0 : i32, i32
  }
  func.func @transform_4(%arg0: i32) -> (i32, i32) {
    %c0_i32 = arith.constant 0 : i32
    %c0_i32_0 = arith.constant 0 : i32
    return %arg0, %c0_i32 : i32, i32
  }
  func.func @transform_5(%arg0: i32) -> (i32, i32) {
    %c0_i32 = arith.constant 0 : i32
    %c0_i32_0 = arith.constant 0 : i32
    %c0_i32_1 = arith.constant 0 : i32
    return %c0_i32, %c0_i32_0 : i32, i32
  }
  func.func @transform_6(%arg0: i32) -> (i32, i32) {
    %c0_i32 = arith.constant 0 : i32
    %c0_i32_0 = arith.constant 0 : i32
    %c0_i32_1 = arith.constant 0 : i32
    return %c0_i32, %c0_i32_0 : i32, i32
  }
  func.func @transform_7(%arg0: i32) -> (i32, i32) {
    %c0_i32 = arith.constant 0 : i32
    %c0_i32_0 = arith.constant 0 : i32
    %c0_i32_1 = arith.constant 0 : i32
    return %c0_i32, %c0_i32_0 : i32, i32
  }
  func.func @transform_8(%arg0: i32) -> (i32, i32) {
    %c0_i32 = arith.constant 0 : i32
    %c0_i32_0 = arith.constant 0 : i32
    return %arg0, %c0_i32 : i32, i32
  }
}

</mosaic_0001>

<llo_original>
// kernel: bottleneck_pallas.3
$region0: #{bottleneck_pallas.3}
  #allocation0 [shape = 'u32[]', space=smem, size = 0x4, offset = 0x4, fixed_abs, tag = 'smem constant byte address 0x4 - core index']
  #allocation1 [shape = 'u32[72,128]{1,0:T(1,128)}', space=vmem, size = 0x9000, scoped, tag = 'internal scratch']
  %s0 = inlined_call_operand.vmem [shape: f32[128,128], index: 0, kind: input, shape index: {}]
  %s1 = inlined_call_operand.hbm [shape: f32[128,128], index: 1, kind: input, shape index: {}]
  %s2 = inlined_call_operand.hbm [shape: f32[1,128], index: 2, kind: input, shape index: {}]
  %s3 = inlined_call_operand.hbm [shape: f32[1,128], index: 3, kind: input, shape index: {}]
  %s4 = inlined_call_operand.vmem [shape: f32[128,128], index: 4, kind: output, shape index: {}]
  %s5 = sld [smem:[#allocation0]]
  $region38: #{bottleneck_pallas.3} parent=0
    _
  %s7 = ssub.s32 1, %s5
  %s8 = scalar_select 0, %s7, %s5
  $region1: #{bottleneck_pallas.3} parent=0
    #allocation2 [shape = 'u8[65536]{0}', space=vmem, size = 0x10000, scoped, tag = 'input window, operand 1, single buffered']
    #allocation3 [shape = 's32[1]{0}', space=sflag, size = 0x4, scoped, tag = 'scoped memory for bottleneck_pallas.3']
    #allocation4 [shape = 'u8[512]{0}', space=vmem, size = 0x400, scoped, tag = 'input window, operand 2, single buffered']
    #allocation5 [shape = 's32[1]{0}', space=sflag, size = 0x4, scoped, tag = 'scoped memory for bottleneck_pallas.3']
    #allocation6 [shape = 'u8[512]{0}', space=vmem, size = 0x400, scoped, tag = 'input window, operand 3, single buffered']
    %9 = vsyncpa [#allocation3], 0
    %10 = vsyncpa [#allocation5], 0
    // Predicated region
    $region2: #{bottleneck_pallas.3} parent=1 // pred_check
      _
    $region3: #{bottleneck_pallas.3} parent=1 // pred_check_branch
      %12 = sbr.rel (0) target = $region5
    $region4: #{bottleneck_pallas.3} parent=1 // pred_region
      _
    $region5: #{bottleneck_pallas.3} parent=1 // pred_fallthru
      _
    // Predicated region
    $region6: #{bottleneck_pallas.3} parent=1 // pred_check
      _
    $region7: #{bottleneck_pallas.3} parent=1 // pred_check_branch
      %14 = sbr.rel (0) target = $region9
    $region8: #{bottleneck_pallas.3} parent=1 // pred_region
      %16 = vsyncadd [#allocation3], 0
      %s17 = sshll.u32 %s1, 4
      %s18 = int_to_ptr.hbm [resolvable:$true] %s17
      %s19 = sshll.u32 [#allocation2], 4
      %s20 = int_to_ptr.vmem [resolvable:$true] %s19
      %25 = dma.hbm_to_vmem [thread:$0]  %s18, 2048, %s20, [#allocation3], 128, 128, 8
    $region9: #{bottleneck_pallas.3} parent=1 // pred_fallthru
      _
    // Predicated region
    $region10: #{bottleneck_pallas.3} parent=1 // pred_check
      _
    $region11: #{bottleneck_pallas.3} parent=1 // pred_check_branch
      %27 = sbr.rel (0) target = $region13
    $region12: #{bottleneck_pallas.3} parent=1 // pred_region
      %29 = vsyncadd [#allocation5], 0
      %s31 = sshll.u32 %s2, 4
      %s32 = int_to_ptr.hbm [resolvable:$true] %s31
      %s33 = sshll.u32 [#allocation4], 4
      %s34 = int_to_ptr.vmem [resolvable:$true] %s33
      %36 = dma.hbm_to_vmem [thread:$0]  %s32, 16, %s34, [#allocation5]
    $region13: #{bottleneck_pallas.3} parent=1 // pred_fallthru
      _
    // Predicated region
    $region14: #{bottleneck_pallas.3} parent=1 // pred_check
      _
    $region15: #{bottleneck_pallas.3} parent=1 // pred_check_branch
      %38 = sbr.rel (0) target = $region17
    $region16: #{bottleneck_pallas.3} parent=1 // pred_region
      %40 = vsyncadd [#allocation5], 0
      %s42 = sshll.u32 %s3, 4
      %s43 = int_to_ptr.hbm [resolvable:$true] %s42
      %s44 = sshll.u32 [#allocation6], 4
      %s45 = int_to_ptr.vmem [resolvable:$true] %s44
      %47 = dma.hbm_to_vmem [thread:$0]  %s43, 16, %s45, [#allocation5]
    $region17: #{bottleneck_pallas.3} parent=1 // pred_fallthru
      _
    // Predicated region
    $region18: #{bottleneck_pallas.3} parent=1 // pred_check
      _
    $region19: #{bottleneck_pallas.3} parent=1 // pred_check_branch
      %49 = sbr.rel (0) target = $region21
    $region20: #{bottleneck_pallas.3} parent=1 // pred_region
      %51 = dma.done [#allocation3], 2048
    $region21: #{bottleneck_pallas.3} parent=1 // pred_fallthru
      _
    // Predicated region
    $region22: #{bottleneck_pallas.3} parent=1 // pred_check
      _
    $region23: #{bottleneck_pallas.3} parent=1 // pred_check_branch
      %53 = sbr.rel (0) target = $region25
    $region24: #{bottleneck_pallas.3} parent=1 // pred_region
      %55 = dma.done [#allocation5], 16
    $region25: #{bottleneck_pallas.3} parent=1 // pred_fallthru
      _
    // Predicated region
    $region26: #{bottleneck_pallas.3} parent=1 // pred_check
      _
    $region27: #{bottleneck_pallas.3} parent=1 // pred_check_branch
      %57 = sbr.rel (0) target = $region29
    $region28: #{bottleneck_pallas.3} parent=1 // pred_region
      %59 = dma.done [#allocation5], 16
    $region29: #{bottleneck_pallas.3} parent=1 // pred_fallthru
      _
    %v60 = vld [vmem:[%s0] sm:$0xff]
    %v61 = vld [vmem:[%s0 + $0x8] sm:$0xff]
    %v62 = vld [vmem:[%s0 + $0x10] sm:$0xff]
    %v63 = vld [vmem:[%s0 + $0x18] sm:$0xff]
    %v64 = vld [vmem:[%s0 + $0x20] sm:$0xff]
    %v65 = vld [vmem:[%s0 + $0x28] sm:$0xff]
    %v66 = vld [vmem:[%s0 + $0x30] sm:$0xff]
    %v67 = vld [vmem:[%s0 + $0x38] sm:$0xff]
    %v68 = vld [vmem:[%s0 + $0x40] sm:$0xff]
    %v69 = vld [vmem:[%s0 + $0x48] sm:$0xff]
    %v70 = vld [vmem:[%s0 + $0x50] sm:$0xff]
    %v71 = vld [vmem:[%s0 + $0x58] sm:$0xff]
    %v72 = vld [vmem:[%s0 + $0x60] sm:$0xff]
    %v73 = vld [vmem:[%s0 + $0x68] sm:$0xff]
    %v74 = vld [vmem:[%s0 + $0x70] sm:$0xff]
    %v75 = vld [vmem:[%s0 + $0x78] sm:$0xff]
    %v76 = vld [vmem:[#allocation2] sm:$0xff]
    %v77 = vld [vmem:[#allocation2 + $0x8] sm:$0xff]
    %v78 = vld [vmem:[#allocation2 + $0x10] sm:$0xff]
    %v79 = vld [vmem:[#allocation2 + $0x18] sm:$0xff]
    %v80 = vld [vmem:[#allocation2 + $0x20] sm:$0xff]
    %v81 = vld [vmem:[#allocation2 + $0x28] sm:$0xff]
    %v82 = vld [vmem:[#allocation2 + $0x30] sm:$0xff]
    %v83 = vld [vmem:[#allocation2 + $0x38] sm:$0xff]
    %v84 = vld [vmem:[#allocation2 + $0x40] sm:$0xff]
    %v85 = vld [vmem:[#allocation2 + $0x48] sm:$0xff]
    %v86 = vld [vmem:[#allocation2 + $0x50] sm:$0xff]
    %v87 = vld [vmem:[#allocation2 + $0x58] sm:$0xff]
    %v88 = vld [vmem:[#allocation2 + $0x60] sm:$0xff]
    %v89 = vld [vmem:[#allocation2 + $0x68] sm:$0xff]
    %v90 = vld [vmem:[#allocation2 + $0x70] sm:$0xff]
    %v91 = vld [vmem:[#allocation2 + $0x78] sm:$0xff]
    %v92 = vand.u32 %v91, 4294901760
    %93 = vmatpush.msra.mxu0 %v92
    %v94 = vand.u32 %v90, 4294901760
    %95 = vmatpush.msra.mxu0 %v94
    %v96 = vand.u32 %v89, 4294901760
    %97 = vmatpush.msra.mxu0 %v96
    %v98 = vand.u32 %v88, 4294901760
    %99 = vmatpush.msra.mxu0 %v98
    %v100 = vand.u32 %v87, 4294901760
    %101 = vmatpush.msra.mxu0 %v100
    %v102 = vand.u32 %v86, 4294901760
    %103 = vmatpush.msra.mxu0 %v102
    %v104 = vand.u32 %v85, 4294901760
    %105 = vmatpush.msra.mxu0 %v104
    %v106 = vand.u32 %v84, 4294901760
    %107 = vmatpush.msra.mxu0 %v106
    %v108 = vand.u32 %v83, 4294901760
    %109 = vmatpush.msra.mxu0 %v108
    %v110 = vand.u32 %v82, 4294901760
    %111 = vmatpush.msra.mxu0 %v110
    %v112 = vand.u32 %v81, 4294901760
    %113 = vmatpush.msra.mxu0 %v112
    %v114 = vand.u32 %v80, 4294901760
    %115 = vmatpush.msra.mxu0 %v114
    %v116 = vand.u32 %v79, 4294901760
    %117 = vmatpush.msra.mxu0 %v116
    %v118 = vand.u32 %v78, 4294901760
    %119 = vmatpush.msra.mxu0 %v118
    %v120 = vand.u32 %v77, 4294901760
    %121 = vmatpush.msra.mxu0 %v120
    %v122 = vand.u32 %v76, 4294901760
    %123 = vmatpush.msra.mxu0 %v122
    %v124 = vand.u32 %v60, 4294901760
    %v125 = vsub.f32 %v60, %v124
    %v126 = vand.u32 %v125, 4294901760
    %v127 = vsub.f32 %v125, %v126
    %v128 = vand.u32 %v127, 4294901760
    %129 = vmatmul.f32.gmra.mxu0 %v128
    %v130 = vpop.f32.mrf.mxu0
    %v131 = vadd.f32 0.0, %v130
    %v132 = vand.u32 %v61, 4294901760
    %v133 = vsub.f32 %v61, %v132
    %v134 = vand.u32 %v133, 4294901760
    %v135 = vsub.f32 %v133, %v134
    %v136 = vand.u32 %v135, 4294901760
    %137 = vmatmul.f32.gmra.mxu0 %v136
    %v138 = vpop.f32.mrf.mxu0
    %v139 = vadd.f32 0.0, %v138
    %v140 = vand.u32 %v62, 4294901760
    %v141 = vsub.f32 %v62, %v140
    %v142 = vand.u32 %v141, 4294901760
    %v143 = vsub.f32 %v141, %v142
    %v144 = vand.u32 %v143, 4294901760
    %145 = vmatmul.f32.gmra.mxu0 %v144
    %v146 = vpop.f32.mrf.mxu0
    %v147 = vadd.f32 0.0, %v146
    %v148 = vand.u32 %v63, 4294901760
    %v149 = vsub.f32 %v63, %v148
    %v150 = vand.u32 %v149, 4294901760
    %v151 = vsub.f32 %v149, %v150
    %v152 = vand.u32 %v151, 4294901760
    %153 = vmatmul.f32.gmra.mxu0 %v152
    %v154 = vpop.f32.mrf.mxu0
    %v155 = vadd.f32 0.0, %v154
    %v156 = vand.u32 %v64, 4294901760
    %v157 = vsub.f32 %v64, %v156
    %v158 = vand.u32 %v157, 4294901760
    %v159 = vsub.f32 %v157, %v158
    %v160 = vand.u32 %v159, 4294901760
    %161 = vmatmul.f32.gmra.mxu0 %v160
    %v162 = vpop.f32.mrf.mxu0
    %v163 = vadd.f32 0.0, %v162
    %v164 = vand.u32 %v65, 4294901760
    %v165 = vsub.f32 %v65, %v164
    %v166 = vand.u32 %v165, 4294901760
    %v167 = vsub.f32 %v165, %v166
    %v168 = vand.u32 %v167, 4294901760
    %169 = vmatmul.f32.gmra.mxu0 %v168
    %v170 = vpop.f32.mrf.mxu0
    %v171 = vadd.f32 0.0, %v170
    %v172 = vand.u32 %v66, 4294901760
    %v173 = vsub.f32 %v66, %v172
    %v174 = vand.u32 %v173, 4294901760
    %v175 = vsub.f32 %v173, %v174
    %v176 = vand.u32 %v175, 4294901760
    %177 = vmatmul.f32.gmra.mxu0 %v176
    %v178 = vpop.f32.mrf.mxu0
    %v179 = vadd.f32 0.0, %v178
    %v180 = vand.u32 %v67, 4294901760
    %v181 = vsub.f32 %v67, %v180
    %v182 = vand.u32 %v181, 4294901760
    %v183 = vsub.f32 %v181, %v182
    %v184 = vand.u32 %v183, 4294901760
    %185 = vmatmul.f32.gmra.mxu0 %v184
    %v186 = vpop.f32.mrf.mxu0
    %v187 = vadd.f32 0.0, %v186
    %v188 = vand.u32 %v68, 4294901760
    %v189 = vsub.f32 %v68, %v188
    %v190 = vand.u32 %v189, 4294901760
    %v191 = vsub.f32 %v189, %v190
    %v192 = vand.u32 %v191, 4294901760
    %193 = vmatmul.f32.gmra.mxu0 %v192
    %v194 = vpop.f32.mrf.mxu0
    %v195 = vadd.f32 0.0, %v194
    %v196 = vand.u32 %v69, 4294901760
    %v197 = vsub.f32 %v69, %v196
    %v198 = vand.u32 %v197, 4294901760
    %v199 = vsub.f32 %v197, %v198
    %v200 = vand.u32 %v199, 4294901760
    %201 = vmatmul.f32.gmra.mxu0 %v200
    %v202 = vpop.f32.mrf.mxu0
    %v203 = vadd.f32 0.0, %v202
    %v204 = vand.u32 %v70, 4294901760
    %v205 = vsub.f32 %v70, %v204
    %v206 = vand.u32 %v205, 4294901760
    %v207 = vsub.f32 %v205, %v206
    %v208 = vand.u32 %v207, 4294901760
    %209 = vmatmul.f32.gmra.mxu0 %v208
    %v210 = vpop.f32.mrf.mxu0
    %v211 = vadd.f32 0.0, %v210
    %v212 = vand.u32 %v71, 4294901760
    %v213 = vsub.f32 %v71, %v212
    %v214 = vand.u32 %v213, 4294901760
    %v215 = vsub.f32 %v213, %v214
    %v216 = vand.u32 %v215, 4294901760
    %217 = vmatmul.f32.gmra.mxu0 %v216
    %v218 = vpop.f32.mrf.mxu0
    %v219 = vadd.f32 0.0, %v218
    %v220 = vand.u32 %v72, 4294901760
    %v221 = vsub.f32 %v72, %v220
    %v222 = vand.u32 %v221, 4294901760
    %v223 = vsub.f32 %v221, %v222
    %v224 = vand.u32 %v223, 4294901760
    %225 = vmatmul.f32.gmra.mxu0 %v224
    %v226 = vpop.f32.mrf.mxu0
    %v227 = vadd.f32 0.0, %v226
    %v228 = vand.u32 %v73, 4294901760
    %v229 = vsub.f32 %v73, %v228
    %v230 = vand.u32 %v229, 4294901760
    %v231 = vsub.f32 %v229, %v230
    %v232 = vand.u32 %v231, 4294901760
    %233 = vmatmul.f32.gmra.mxu0 %v232
    %v234 = vpop.f32.mrf.mxu0
    %v235 = vadd.f32 0.0, %v234
    %v236 = vand.u32 %v74, 4294901760
    %v237 = vsub.f32 %v74, %v236
    %v238 = vand.u32 %v237, 4294901760
    %v239 = vsub.f32 %v237, %v238
    %v240 = vand.u32 %v239, 4294901760
    %241 = vmatmul.f32.gmra.mxu0 %v240
    %v242 = vpop.f32.mrf.mxu0
    %v243 = vadd.f32 0.0, %v242
    %v244 = vand.u32 %v75, 4294901760
    %v245 = vsub.f32 %v75, %v244
    %v246 = vand.u32 %v245, 4294901760
    %v247 = vsub.f32 %v245, %v246
    %v248 = vand.u32 %v247, 4294901760
    %249 = vmatmul.f32.gmra.mxu0 %v248
    %v250 = vpop.f32.mrf.mxu0
    %v251 = vadd.f32 0.0, %v250
    %252 = vdwg.mxu0
    %v253 = vand.u32 %v91, 4294901760
    %v254 = vsub.f32 %v91, %v253
    %v255 = vand.u32 %v254, 4294901760
    %v256 = vsub.f32 %v254, %v255
    %v257 = vand.u32 %v256, 4294901760
    %258 = vmatpush.msra.mxu0 %v257
    %v259 = vand.u32 %v90, 4294901760
    %v260 = vsub.f32 %v90, %v259
    %v261 = vand.u32 %v260, 4294901760
    %v262 = vsub.f32 %v260, %v261
    %v263 = vand.u32 %v262, 4294901760
    %264 = vmatpush.msra.mxu0 %v263
    %v265 = vand.u32 %v89, 4294901760
    %v266 = vsub.f32 %v89, %v265
    %v267 = vand.u32 %v266, 4294901760
    %v268 = vsub.f32 %v266, %v267
    %v269 = vand.u32 %v268, 4294901760
    %270 = vmatpush.msra.mxu0 %v269
    %v271 = vand.u32 %v88, 4294901760
    %v272 = vsub.f32 %v88, %v271
    %v273 = vand.u32 %v272, 4294901760
    %v274 = vsub.f32 %v272, %v273
    %v275 = vand.u32 %v274, 4294901760
    %276 = vmatpush.msra.mxu0 %v275
    %v277 = vand.u32 %v87, 4294901760
    %v278 = vsub.f32 %v87, %v277
    %v279 = vand.u32 %v278, 4294901760
    %v280 = vsub.f32 %v278, %v279
    %v281 = vand.u32 %v280, 4294901760
    %282 = vmatpush.msra.mxu0 %v281
    %v283 = vand.u32 %v86, 4294901760
    %v284 = vsub.f32 %v86, %v283
    %v285 = vand.u32 %v284, 4294901760
    %v286 = vsub.f32 %v284, %v285
    %v287 = vand.u32 %v286, 4294901760
    %288 = vmatpush.msra.mxu0 %v287
    %v289 = vand.u32 %v85, 4294901760
    %v290 = vsub.f32 %v85, %v289
    %v291 = vand.u32 %v290, 4294901760
    %v292 = vsub.f32 %v290, %v291
    %v293 = vand.u32 %v292, 4294901760
    %294 = vmatpush.msra.mxu0 %v293
    %v295 = vand.u32 %v84, 4294901760
    %v296 = vsub.f32 %v84, %v295
    %v297 = vand.u32 %v296, 4294901760
    %v298 = vsub.f32 %v296, %v297
    %v299 = vand.u32 %v298, 4294901760
    %300 = vmatpush.msra.mxu0 %v299
    %v301 = vand.u32 %v83, 4294901760
    %v302 = vsub.f32 %v83, %v301
    %v303 = vand.u32 %v302, 4294901760
    %v304 = vsub.f32 %v302, %v303
    %v305 = vand.u32 %v304, 4294901760
    %306 = vmatpush.msra.mxu0 %v305
    %v307 = vand.u32 %v82, 4294901760
    %v308 = vsub.f32 %v82, %v307
    %v309 = vand.u32 %v308, 4294901760
    %v310 = vsub.f32 %v308, %v309
    %v311 = vand.u32 %v310, 4294901760
    %312 = vmatpush.msra.mxu0 %v311
    %v313 = vand.u32 %v81, 4294901760
    %v314 = vsub.f32 %v81, %v313
    %v315 = vand.u32 %v314, 4294901760
    %v316 = vsub.f32 %v314, %v315
    %v317 = vand.u32 %v316, 4294901760
    %318 = vmatpush.msra.mxu0 %v317
    %v319 = vand.u32 %v80, 4294901760
    %v320 = vsub.f32 %v80, %v319
    %v321 = vand.u32 %v320, 4294901760
    %v322 = vsub.f32 %v320, %v321
    %v323 = vand.u32 %v322, 4294901760
    %324 = vmatpush.msra.mxu0 %v323
    %v325 = vand.u32 %v79, 4294901760
    %v326 = vsub.f32 %v79, %v325
    %v327 = vand.u32 %v326, 4294901760
    %v328 = vsub.f32 %v326, %v327
    %v329 = vand.u32 %v328, 4294901760
    %330 = vmatpush.msra.mxu0 %v329
    %v331 = vand.u32 %v78, 4294901760
    %v332 = vsub.f32 %v78, %v331
    %v333 = vand.u32 %v332, 4294901760
    %v334 = vsub.f32 %v332, %v333
    %v335 = vand.u32 %v334, 4294901760
    %336 = vmatpush.msra.mxu0 %v335
    %v337 = vand.u32 %v77, 4294901760
    %v338 = vsub.f32 %v77, %v337
    %v339 = vand.u32 %v338, 4294901760
    %v340 = vsub.f32 %v338, %v339
    %v341 = vand.u32 %v340, 4294901760
    %342 = vmatpush.msra.mxu0 %v341
    %v343 = vand.u32 %v76, 4294901760
    %v344 = vsub.f32 %v76, %v343
    %v345 = vand.u32 %v344, 4294901760
    %v346 = vsub.f32 %v344, %v345
    %v347 = vand.u32 %v346, 4294901760
    %348 = vmatpush.msra.mxu0 %v347
    %v349 = vand.u32 %v60, 4294901760
    %350 = vmatmul.f32.gmra.mxu0 %v349
    %v351 = vpop.f32.mrf.mxu0
    %v352 = vadd.f32 %v131, %v351
    %v353 = vand.u32 %v61, 4294901760
    %354 = vmatmul.f32.gmra.mxu0 %v353
    %v355 = vpop.f32.mrf.mxu0
    %v356 = vadd.f32 %v139, %v355
    %v357 = vand.u32 %v62, 4294901760
    %358 = vmatmul.f32.gmra.mxu0 %v357
    %v359 = vpop.f32.mrf.mxu0
    %v360 = vadd.f32 %v147, %v359
    %v361 = vand.u32 %v63, 4294901760
    %362 = vmatmul.f32.gmra.mxu0 %v361
    %v363 = vpop.f32.mrf.mxu0
    %v364 = vadd.f32 %v155, %v363
    %v365 = vand.u32 %v64, 4294901760
    %366 = vmatmul.f32.gmra.mxu0 %v365
    %v367 = vpop.f32.mrf.mxu0
    %v368 = vadd.f32 %v163, %v367
    %v369 = vand.u32 %v65, 4294901760
    %370 = vmatmul.f32.gmra.mxu0 %v369
    %v371 = vpop.f32.mrf.mxu0
    %v372 = vadd.f32 %v171, %v371
    %v373 = vand.u32 %v66, 4294901760
    %374 = vmatmul.f32.gmra.mxu0 %v373
    %v375 = vpop.f32.mrf.mxu0
    %v376 = vadd.f32 %v179, %v375
    %v377 = vand.u32 %v67, 4294901760
    %378 = vmatmul.f32.gmra.mxu0 %v377
    %v379 = vpop.f32.mrf.mxu0
    %v380 = vadd.f32 %v187, %v379
    %v381 = vand.u32 %v68, 4294901760
    %382 = vmatmul.f32.gmra.mxu0 %v381
    %v383 = vpop.f32.mrf.mxu0
    %v384 = vadd.f32 %v195, %v383
    %v385 = vand.u32 %v69, 4294901760
    %386 = vmatmul.f32.gmra.mxu0 %v385
    %v387 = vpop.f32.mrf.mxu0
    %v388 = vadd.f32 %v203, %v387
    %v389 = vand.u32 %v70, 4294901760
    %390 = vmatmul.f32.gmra.mxu0 %v389
    %v391 = vpop.f32.mrf.mxu0
    %v392 = vadd.f32 %v211, %v391
    %v393 = vand.u32 %v71, 4294901760
    %394 = vmatmul.f32.gmra.mxu0 %v393
    %v395 = vpop.f32.mrf.mxu0
    %v396 = vadd.f32 %v219, %v395
    %v397 = vand.u32 %v72, 4294901760
    %398 = vmatmul.f32.gmra.mxu0 %v397
    %v399 = vpop.f32.mrf.mxu0
    %v400 = vadd.f32 %v227, %v399
    %v401 = vand.u32 %v73, 4294901760
    %402 = vmatmul.f32.gmra.mxu0 %v401
    %v403 = vpop.f32.mrf.mxu0
    %v404 = vadd.f32 %v235, %v403
    %v405 = vand.u32 %v74, 4294901760
    %406 = vmatmul.f32.gmra.mxu0 %v405
    %v407 = vpop.f32.mrf.mxu0
    %v408 = vadd.f32 %v243, %v407
    %v409 = vand.u32 %v75, 4294901760
    %410 = vmatmul.f32.gmra.mxu0 %v409
    %v411 = vpop.f32.mrf.mxu0
    %v412 = vadd.f32 %v251, %v411
    %413 = vdwg.mxu0
    %v414 = vand.u32 %v91, 4294901760
    %v415 = vsub.f32 %v91, %v414
    %416 = vmatpush.msra.mxu0 %v415
    %v417 = vand.u32 %v90, 4294901760
    %v418 = vsub.f32 %v90, %v417
    %419 = vmatpush.msra.mxu0 %v418
    %v420 = vand.u32 %v89, 4294901760
    %v421 = vsub.f32 %v89, %v420
    %422 = vmatpush.msra.mxu0 %v421
    %v423 = vand.u32 %v88, 4294901760
    %v424 = vsub.f32 %v88, %v423
    %425 = vmatpush.msra.mxu0 %v424
    %v426 = vand.u32 %v87, 4294901760
    %v427 = vsub.f32 %v87, %v426
    %428 = vmatpush.msra.mxu0 %v427
    %v429 = vand.u32 %v86, 4294901760
    %v430 = vsub.f32 %v86, %v429
    %431 = vmatpush.msra.mxu0 %v430
    %v432 = vand.u32 %v85, 4294901760
    %v433 = vsub.f32 %v85, %v432
    %434 = vmatpush.msra.mxu0 %v433
    %v435 = vand.u32 %v84, 4294901760
    %v436 = vsub.f32 %v84, %v435
    %437 = vmatpush.msra.mxu0 %v436
    %v438 = vand.u32 %v83, 4294901760
    %v439 = vsub.f32 %v83, %v438
    %440 = vmatpush.msra.mxu0 %v439
    %v441 = vand.u32 %v82, 4294901760
    %v442 = vsub.f32 %v82, %v441
    %443 = vmatpush.msra.mxu0 %v442
    %v444 = vand.u32 %v81, 4294901760
    %v445 = vsub.f32 %v81, %v444
    %446 = vmatpush.msra.mxu0 %v445
    %v447 = vand.u32 %v80, 4294901760
    %v448 = vsub.f32 %v80, %v447
    %449 = vmatpush.msra.mxu0 %v448
    %v450 = vand.u32 %v79, 4294901760
    %v451 = vsub.f32 %v79, %v450
    %452 = vmatpush.msra.mxu0 %v451
    %v453 = vand.u32 %v78, 4294901760
    %v454 = vsub.f32 %v78, %v453
    %455 = vmatpush.msra.mxu0 %v454
    %v456 = vand.u32 %v77, 4294901760
    %v457 = vsub.f32 %v77, %v456
    %458 = vmatpush.msra.mxu0 %v457
    %v459 = vand.u32 %v76, 4294901760
    %v460 = vsub.f32 %v76, %v459
    %461 = vmatpush.msra.mxu0 %v460
    %v462 = vand.u32 %v60, 4294901760
    %v463 = vsub.f32 %v60, %v462
    %464 = vmatmul.f32.gmra.mxu0 %v463
    %v465 = vpop.f32.mrf.mxu0
    %v466 = vadd.f32 %v352, %v465
    %v467 = vand.u32 %v61, 4294901760
    %v468 = vsub.f32 %v61, %v467
    %469 = vmatmul.f32.gmra.mxu0 %v468
    %v470 = vpop.f32.mrf.mxu0
    %v471 = vadd.f32 %v356, %v470
    %v472 = vand.u32 %v62, 4294901760
    %v473 = vsub.f32 %v62, %v472
    %474 = vmatmul.f32.gmra.mxu0 %v473
    %v475 = vpop.f32.mrf.mxu0
    %v476 = vadd.f32 %v360, %v475
    %v477 = vand.u32 %v63, 4294901760
    %v478 = vsub.f32 %v63, %v477
    %479 = vmatmul.f32.gmra.mxu0 %v478
    %v480 = vpop.f32.mrf.mxu0
    %v481 = vadd.f32 %v364, %v480
    %v482 = vand.u32 %v64, 4294901760
    %v483 = vsub.f32 %v64, %v482
    %484 = vmatmul.f32.gmra.mxu0 %v483
    %v485 = vpop.f32.mrf.mxu0
    %v486 = vadd.f32 %v368, %v485
    %v487 = vand.u32 %v65, 4294901760
    %v488 = vsub.f32 %v65, %v487
    %489 = vmatmul.f32.gmra.mxu0 %v488
    %v490 = vpop.f32.mrf.mxu0
    %v491 = vadd.f32 %v372, %v490
    %v492 = vand.u32 %v66, 4294901760
    %v493 = vsub.f32 %v66, %v492
    %494 = vmatmul.f32.gmra.mxu0 %v493
    %v495 = vpop.f32.mrf.mxu0
    %v496 = vadd.f32 %v376, %v495
    %v497 = vand.u32 %v67, 4294901760
    %v498 = vsub.f32 %v67, %v497
    %499 = vmatmul.f32.gmra.mxu0 %v498
    %v500 = vpop.f32.mrf.mxu0
    %v501 = vadd.f32 %v380, %v500
    %v502 = vand.u32 %v68, 4294901760
    %v503 = vsub.f32 %v68, %v502
    %504 = vmatmul.f32.gmra.mxu0 %v503
    %v505 = vpop.f32.mrf.mxu0
    %v506 = vadd.f32 %v384, %v505
    %v507 = vand.u32 %v69, 4294901760
    %v508 = vsub.f32 %v69, %v507
    %509 = vmatmul.f32.gmra.mxu0 %v508
    %v510 = vpop.f32.mrf.mxu0
    %v511 = vadd.f32 %v388, %v510
    %v512 = vand.u32 %v70, 4294901760
    %v513 = vsub.f32 %v70, %v512
    %514 = vmatmul.f32.gmra.mxu0 %v513
    %v515 = vpop.f32.mrf.mxu0
    %v516 = vadd.f32 %v392, %v515
    %v517 = vand.u32 %v71, 4294901760
    %v518 = vsub.f32 %v71, %v517
    %519 = vmatmul.f32.gmra.mxu0 %v518
    %v520 = vpop.f32.mrf.mxu0
    %v521 = vadd.f32 %v396, %v520
    %v522 = vand.u32 %v72, 4294901760
    %v523 = vsub.f32 %v72, %v522
    %524 = vmatmul.f32.gmra.mxu0 %v523
    %v525 = vpop.f32.mrf.mxu0
    %v526 = vadd.f32 %v400, %v525
    %v527 = vand.u32 %v73, 4294901760
    %v528 = vsub.f32 %v73, %v527
    %529 = vmatmul.f32.gmra.mxu0 %v528
    %v530 = vpop.f32.mrf.mxu0
    %v531 = vadd.f32 %v404, %v530
    %v532 = vand.u32 %v74, 4294901760
    %v533 = vsub.f32 %v74, %v532
    %534 = vmatmul.f32.gmra.mxu0 %v533
    %v535 = vpop.f32.mrf.mxu0
    %v536 = vadd.f32 %v408, %v535
    %v537 = vand.u32 %v75, 4294901760
    %v538 = vsub.f32 %v75, %v537
    %539 = vmatmul.f32.gmra.mxu0 %v538
    %v540 = vpop.f32.mrf.mxu0
    %v541 = vadd.f32 %v412, %v540
    %542 = vdwg.mxu0
    %v543 = vand.u32 %v91, 4294901760
    %544 = vmatpush.msra.mxu0 %v543
    %v545 = vand.u32 %v90, 4294901760
    %546 = vmatpush.msra.mxu0 %v545
    %v547 = vand.u32 %v89, 4294901760
    %548 = vmatpush.msra.mxu0 %v547
    %v549 = vand.u32 %v88, 4294901760
    %550 = vmatpush.msra.mxu0 %v549
    %v551 = vand.u32 %v87, 4294901760
    %552 = vmatpush.msra.mxu0 %v551
    %v553 = vand.u32 %v86, 4294901760
    %554 = vmatpush.msra.mxu0 %v553
    %v555 = vand.u32 %v85, 4294901760
    %556 = vmatpush.msra.mxu0 %v555
    %v557 = vand.u32 %v84, 4294901760
    %558 = vmatpush.msra.mxu0 %v557
    %v559 = vand.u32 %v83, 4294901760
    %560 = vmatpush.msra.mxu0 %v559
    %v561 = vand.u32 %v82, 4294901760
    %562 = vmatpush.msra.mxu0 %v561
    %v563 = vand.u32 %v81, 4294901760
    %564 = vmatpush.msra.mxu0 %v563
    %v565 = vand.u32 %v80, 4294901760
    %566 = vmatpush.msra.mxu0 %v565
    %v567 = vand.u32 %v79, 4294901760
    %568 = vmatpush.msra.mxu0 %v567
    %v569 = vand.u32 %v78, 4294901760
    %570 = vmatpush.msra.mxu0 %v569
    %v571 = vand.u32 %v77, 4294901760
    %572 = vmatpush.msra.mxu0 %v571
    %v573 = vand.u32 %v76, 4294901760
    %574 = vmatpush.msra.mxu0 %v573
    %v575 = vand.u32 %v60, 4294901760
    %v576 = vsub.f32 %v60, %v575
    %v577 = vand.u32 %v576, 4294901760
    %578 = vmatmul.f32.gmra.mxu0 %v577
    %v579 = vpop.f32.mrf.mxu0
    %v580 = vadd.f32 %v466, %v579
    %v581 = vand.u32 %v61, 4294901760
    %v582 = vsub.f32 %v61, %v581
    %v583 = vand.u32 %v582, 4294901760
    %584 = vmatmul.f32.gmra.mxu0 %v583
    %v585 = vpop.f32.mrf.mxu0
    %v586 = vadd.f32 %v471, %v585
    %v587 = vand.u32 %v62, 4294901760
    %v588 = vsub.f32 %v62, %v587
    %v589 = vand.u32 %v588, 4294901760
    %590 = vmatmul.f32.gmra.mxu0 %v589
    %v591 = vpop.f32.mrf.mxu0
    %v592 = vadd.f32 %v476, %v591
    %v593 = vand.u32 %v63, 4294901760
    %v594 = vsub.f32 %v63, %v593
    %v595 = vand.u32 %v594, 4294901760
    %596 = vmatmul.f32.gmra.mxu0 %v595
    %v597 = vpop.f32.mrf.mxu0
    %v598 = vadd.f32 %v481, %v597
    %v599 = vand.u32 %v64, 4294901760
    %v600 = vsub.f32 %v64, %v599
    %v601 = vand.u32 %v600, 4294901760
    %602 = vmatmul.f32.gmra.mxu0 %v601
    %v603 = vpop.f32.mrf.mxu0
    %v604 = vadd.f32 %v486, %v603
    %v605 = vand.u32 %v65, 4294901760
    %v606 = vsub.f32 %v65, %v605
    %v607 = vand.u32 %v606, 4294901760
    %608 = vmatmul.f32.gmra.mxu0 %v607
    %v609 = vpop.f32.mrf.mxu0
    %v610 = vadd.f32 %v491, %v609
    %v611 = vand.u32 %v66, 4294901760
    %v612 = vsub.f32 %v66, %v611
    %v613 = vand.u32 %v612, 4294901760
    %614 = vmatmul.f32.gmra.mxu0 %v613
    %v615 = vpop.f32.mrf.mxu0
    %v616 = vadd.f32 %v496, %v615
    %v617 = vand.u32 %v67, 4294901760
    %v618 = vsub.f32 %v67, %v617
    %v619 = vand.u32 %v618, 4294901760
    %620 = vmatmul.f32.gmra.mxu0 %v619
    %v621 = vpop.f32.mrf.mxu0
    %v622 = vadd.f32 %v501, %v621
    %v623 = vand.u32 %v68, 4294901760
    %v624 = vsub.f32 %v68, %v623
    %v625 = vand.u32 %v624, 4294901760
    %626 = vmatmul.f32.gmra.mxu0 %v625
    %v627 = vpop.f32.mrf.mxu0
    %v628 = vadd.f32 %v506, %v627
    %v629 = vand.u32 %v69, 4294901760
    %v630 = vsub.f32 %v69, %v629
    %v631 = vand.u32 %v630, 4294901760
    %632 = vmatmul.f32.gmra.mxu0 %v631
    %v633 = vpop.f32.mrf.mxu0
    %v634 = vadd.f32 %v511, %v633
    %v635 = vand.u32 %v70, 4294901760
    %v636 = vsub.f32 %v70, %v635
    %v637 = vand.u32 %v636, 4294901760
    %638 = vmatmul.f32.gmra.mxu0 %v637
    %v639 = vpop.f32.mrf.mxu0
    %v640 = vadd.f32 %v516, %v639
    %v641 = vand.u32 %v71, 4294901760
    %v642 = vsub.f32 %v71, %v641
    %v643 = vand.u32 %v642, 4294901760
    %644 = vmatmul.f32.gmra.mxu0 %v643
    %v645 = vpop.f32.mrf.mxu0
    %v646 = vadd.f32 %v521, %v645
    %v647 = vand.u32 %v72, 4294901760
    %v648 = vsub.f32 %v72, %v647
    %v649 = vand.u32 %v648, 4294901760
    %650 = vmatmul.f32.gmra.mxu0 %v649
    %v651 = vpop.f32.mrf.mxu0
    %v652 = vadd.f32 %v526, %v651
    %v653 = vand.u32 %v73, 4294901760
    %v654 = vsub.f32 %v73, %v653
    %v655 = vand.u32 %v654, 4294901760
    %656 = vmatmul.f32.gmra.mxu0 %v655
    %v657 = vpop.f32.mrf.mxu0
    %v658 = vadd.f32 %v531, %v657
    %v659 = vand.u32 %v74, 4294901760
    %v660 = vsub.f32 %v74, %v659
    %v661 = vand.u32 %v660, 4294901760
    %662 = vmatmul.f32.gmra.mxu0 %v661
    %v663 = vpop.f32.mrf.mxu0
    %v664 = vadd.f32 %v536, %v663
    %v665 = vand.u32 %v75, 4294901760
    %v666 = vsub.f32 %v75, %v665
    %v667 = vand.u32 %v666, 4294901760
    %668 = vmatmul.f32.gmra.mxu0 %v667
    %v669 = vpop.f32.mrf.mxu0
    %v670 = vadd.f32 %v541, %v669
    %671 = vdwg.mxu0
    %v672 = vand.u32 %v91, 4294901760
    %v673 = vsub.f32 %v91, %v672
    %v674 = vand.u32 %v673, 4294901760
    %675 = vmatpush.msra.mxu0 %v674
    %v676 = vand.u32 %v90, 4294901760
    %v677 = vsub.f32 %v90, %v676
    %v678 = vand.u32 %v677, 4294901760
    %679 = vmatpush.msra.mxu0 %v678
    %v680 = vand.u32 %v89, 4294901760
    %v681 = vsub.f32 %v89, %v680
    %v682 = vand.u32 %v681, 4294901760
    %683 = vmatpush.msra.mxu0 %v682
    %v684 = vand.u32 %v88, 4294901760
    %v685 = vsub.f32 %v88, %v684
    %v686 = vand.u32 %v685, 4294901760
    %687 = vmatpush.msra.mxu0 %v686
    %v688 = vand.u32 %v87, 4294901760
    %v689 = vsub.f32 %v87, %v688
    %v690 = vand.u32 %v689, 4294901760
    %691 = vmatpush.msra.mxu0 %v690
    %v692 = vand.u32 %v86, 4294901760
    %v693 = vsub.f32 %v86, %v692
    %v694 = vand.u32 %v693, 4294901760
    %695 = vmatpush.msra.mxu0 %v694
    %v696 = vand.u32 %v85, 4294901760
    %v697 = vsub.f32 %v85, %v696
    %v698 = vand.u32 %v697, 4294901760
    %699 = vmatpush.msra.mxu0 %v698
    %v700 = vand.u32 %v84, 4294901760
    %v701 = vsub.f32 %v84, %v700
    %v702 = vand.u32 %v701, 4294901760
    %703 = vmatpush.msra.mxu0 %v702
    %v704 = vand.u32 %v83, 4294901760
    %v705 = vsub.f32 %v83, %v704
    %v706 = vand.u32 %v705, 4294901760
    %707 = vmatpush.msra.mxu0 %v706
    %v708 = vand.u32 %v82, 4294901760
    %v709 = vsub.f32 %v82, %v708
    %v710 = vand.u32 %v709, 4294901760
    %711 = vmatpush.msra.mxu0 %v710
    %v712 = vand.u32 %v81, 4294901760
    %v713 = vsub.f32 %v81, %v712
    %v714 = vand.u32 %v713, 4294901760
    %715 = vmatpush.msra.mxu0 %v714
    %v716 = vand.u32 %v80, 4294901760
    %v717 = vsub.f32 %v80, %v716
    %v718 = vand.u32 %v717, 4294901760
    %719 = vmatpush.msra.mxu0 %v718
    %v720 = vand.u32 %v79, 4294901760
    %v721 = vsub.f32 %v79, %v720
    %v722 = vand.u32 %v721, 4294901760
    %723 = vmatpush.msra.mxu0 %v722
    %v724 = vand.u32 %v78, 4294901760
    %v725 = vsub.f32 %v78, %v724
    %v726 = vand.u32 %v725, 4294901760
    %727 = vmatpush.msra.mxu0 %v726
    %v728 = vand.u32 %v77, 4294901760
    %v729 = vsub.f32 %v77, %v728
    %v730 = vand.u32 %v729, 4294901760
    %731 = vmatpush.msra.mxu0 %v730
    %v732 = vand.u32 %v76, 4294901760
    %v733 = vsub.f32 %v76, %v732
    %v734 = vand.u32 %v733, 4294901760
    %735 = vmatpush.msra.mxu0 %v734
    %v736 = vand.u32 %v60, 4294901760
    %737 = vmatmul.f32.gmra.mxu0 %v736
    %v738 = vpop.f32.mrf.mxu0
    %v739 = vadd.f32 %v580, %v738
    %v740 = vand.u32 %v61, 4294901760
    %741 = vmatmul.f32.gmra.mxu0 %v740
    %v742 = vpop.f32.mrf.mxu0
    %v743 = vadd.f32 %v586, %v742
    %v744 = vand.u32 %v62, 4294901760
    %745 = vmatmul.f32.gmra.mxu0 %v744
    %v746 = vpop.f32.mrf.mxu0
    %v747 = vadd.f32 %v592, %v746
    %v748 = vand.u32 %v63, 4294901760
    %749 = vmatmul.f32.gmra.mxu0 %v748
    %v750 = vpop.f32.mrf.mxu0
    %v751 = vadd.f32 %v598, %v750
    %v752 = vand.u32 %v64, 4294901760
    %753 = vmatmul.f32.gmra.mxu0 %v752
    %v754 = vpop.f32.mrf.mxu0
    %v755 = vadd.f32 %v604, %v754
    %v756 = vand.u32 %v65, 4294901760
    %757 = vmatmul.f32.gmra.mxu0 %v756
    %v758 = vpop.f32.mrf.mxu0
    %v759 = vadd.f32 %v610, %v758
    %v760 = vand.u32 %v66, 4294901760
    %761 = vmatmul.f32.gmra.mxu0 %v760
    %v762 = vpop.f32.mrf.mxu0
    %v763 = vadd.f32 %v616, %v762
    %v764 = vand.u32 %v67, 4294901760
    %765 = vmatmul.f32.gmra.mxu0 %v764
    %v766 = vpop.f32.mrf.mxu0
    %v767 = vadd.f32 %v622, %v766
    %v768 = vand.u32 %v68, 4294901760
    %769 = vmatmul.f32.gmra.mxu0 %v768
    %v770 = vpop.f32.mrf.mxu0
    %v771 = vadd.f32 %v628, %v770
    %v772 = vand.u32 %v69, 4294901760
    %773 = vmatmul.f32.gmra.mxu0 %v772
    %v774 = vpop.f32.mrf.mxu0
    %v775 = vadd.f32 %v634, %v774
    %v776 = vand.u32 %v70, 4294901760
    %777 = vmatmul.f32.gmra.mxu0 %v776
    %v778 = vpop.f32.mrf.mxu0
    %v779 = vadd.f32 %v640, %v778
    %v780 = vand.u32 %v71, 4294901760
    %781 = vmatmul.f32.gmra.mxu0 %v780
    %v782 = vpop.f32.mrf.mxu0
    %v783 = vadd.f32 %v646, %v782
    %v784 = vand.u32 %v72, 4294901760
    %785 = vmatmul.f32.gmra.mxu0 %v784
    %v786 = vpop.f32.mrf.mxu0
    %v787 = vadd.f32 %v652, %v786
    %v788 = vand.u32 %v73, 4294901760
    %789 = vmatmul.f32.gmra.mxu0 %v788
    %v790 = vpop.f32.mrf.mxu0
    %v791 = vadd.f32 %v658, %v790
    %v792 = vand.u32 %v74, 4294901760
    %793 = vmatmul.f32.gmra.mxu0 %v792
    %v794 = vpop.f32.mrf.mxu0
    %v795 = vadd.f32 %v664, %v794
    %v796 = vand.u32 %v75, 4294901760
    %797 = vmatmul.f32.gmra.mxu0 %v796
    %v798 = vpop.f32.mrf.mxu0
    %v799 = vadd.f32 %v670, %v798
    %800 = vdwg.mxu0
    %v801 = vand.u32 %v91, 4294901760
    %802 = vmatpush.msra.mxu0 %v801
    %v803 = vand.u32 %v90, 4294901760
    %804 = vmatpush.msra.mxu0 %v803
    %v805 = vand.u32 %v89, 4294901760
    %806 = vmatpush.msra.mxu0 %v805
    %v807 = vand.u32 %v88, 4294901760
    %808 = vmatpush.msra.mxu0 %v807
    %v809 = vand.u32 %v87, 4294901760
    %810 = vmatpush.msra.mxu0 %v809
    %v811 = vand.u32 %v86, 4294901760
    %812 = vmatpush.msra.mxu0 %v811
    %v813 = vand.u32 %v85, 4294901760
    %814 = vmatpush.msra.mxu0 %v813
    %v815 = vand.u32 %v84, 4294901760
    %816 = vmatpush.msra.mxu0 %v815
    %v817 = vand.u32 %v83, 4294901760
    %818 = vmatpush.msra.mxu0 %v817
    %v819 = vand.u32 %v82, 4294901760
    %820 = vmatpush.msra.mxu0 %v819
    %v821 = vand.u32 %v81, 4294901760
    %822 = vmatpush.msra.mxu0 %v821
    %v823 = vand.u32 %v80, 4294901760
    %824 = vmatpush.msra.mxu0 %v823
    %v825 = vand.u32 %v79, 4294901760
    %826 = vmatpush.msra.mxu0 %v825
    %v827 = vand.u32 %v78, 4294901760
    %828 = vmatpush.msra.mxu0 %v827
    %v829 = vand.u32 %v77, 4294901760
    %830 = vmatpush.msra.mxu0 %v829
    %v831 = vand.u32 %v76, 4294901760
    %832 = vmatpush.msra.mxu0 %v831
    %v833 = vand.u32 %v60, 4294901760
    %834 = vmatmul.f32.gmra.mxu0 %v833
    %v835 = vpop.f32.mrf.mxu0
    %v836 = vadd.f32 %v739, %v835
    %v837 = vand.u32 %v61, 4294901760
    %838 = vmatmul.f32.gmra.mxu0 %v837
    %v839 = vpop.f32.mrf.mxu0
    %v840 = vadd.f32 %v743, %v839
    %v841 = vand.u32 %v62, 4294901760
    %842 = vmatmul.f32.gmra.mxu0 %v841
    %v843 = vpop.f32.mrf.mxu0
    %v844 = vadd.f32 %v747, %v843
    %v845 = vand.u32 %v63, 4294901760
    %846 = vmatmul.f32.gmra.mxu0 %v845
    %v847 = vpop.f32.mrf.mxu0
    %v848 = vadd.f32 %v751, %v847
    %v849 = vand.u32 %v64, 4294901760
    %850 = vmatmul.f32.gmra.mxu0 %v849
    %v851 = vpop.f32.mrf.mxu0
    %v852 = vadd.f32 %v755, %v851
    %v853 = vand.u32 %v65, 4294901760
    %854 = vmatmul.f32.gmra.mxu0 %v853
    %v855 = vpop.f32.mrf.mxu0
    %v856 = vadd.f32 %v759, %v855
    %v857 = vand.u32 %v66, 4294901760
    %858 = vmatmul.f32.gmra.mxu0 %v857
    %v859 = vpop.f32.mrf.mxu0
    %v860 = vadd.f32 %v763, %v859
    %v861 = vand.u32 %v67, 4294901760
    %862 = vmatmul.f32.gmra.mxu0 %v861
    %v863 = vpop.f32.mrf.mxu0
    %v864 = vadd.f32 %v767, %v863
    %v865 = vand.u32 %v68, 4294901760
    %866 = vmatmul.f32.gmra.mxu0 %v865
    %v867 = vpop.f32.mrf.mxu0
    %v868 = vadd.f32 %v771, %v867
    %v869 = vand.u32 %v69, 4294901760
    %870 = vmatmul.f32.gmra.mxu0 %v869
    %v871 = vpop.f32.mrf.mxu0
    %v872 = vadd.f32 %v775, %v871
    %v873 = vand.u32 %v70, 4294901760
    %874 = vmatmul.f32.gmra.mxu0 %v873
    %v875 = vpop.f32.mrf.mxu0
    %v876 = vadd.f32 %v779, %v875
    %v877 = vand.u32 %v71, 4294901760
    %878 = vmatmul.f32.gmra.mxu0 %v877
    %v879 = vpop.f32.mrf.mxu0
    %v880 = vadd.f32 %v783, %v879
    %v881 = vand.u32 %v72, 4294901760
    %882 = vmatmul.f32.gmra.mxu0 %v881
    %v883 = vpop.f32.mrf.mxu0
    %v884 = vadd.f32 %v787, %v883
    %v885 = vand.u32 %v73, 4294901760
    %886 = vmatmul.f32.gmra.mxu0 %v885
    %v887 = vpop.f32.mrf.mxu0
    %v888 = vadd.f32 %v791, %v887
    %v889 = vand.u32 %v74, 4294901760
    %890 = vmatmul.f32.gmra.mxu0 %v889
    %v891 = vpop.f32.mrf.mxu0
    %v892 = vadd.f32 %v795, %v891
    %v893 = vand.u32 %v75, 4294901760
    %894 = vmatmul.f32.gmra.mxu0 %v893
    %v895 = vpop.f32.mrf.mxu0
    %v896 = vadd.f32 %v799, %v895
    %897 = vdwg.mxu0
    %v898 = vld [vmem:[#allocation4] sm:$0x1]
    %v900 = vperm.slane %v898, 0
    %v902 = vmul.f32 %v836, %v900
    %v903 = vmul.f32 %v840, %v900
    %v904 = vmul.f32 %v844, %v900
    %v905 = vmul.f32 %v848, %v900
    %v906 = vmul.f32 %v852, %v900
    %v907 = vmul.f32 %v856, %v900
    %v908 = vmul.f32 %v860, %v900
    %v909 = vmul.f32 %v864, %v900
    %v910 = vmul.f32 %v868, %v900
    %v911 = vmul.f32 %v872, %v900
    %v912 = vmul.f32 %v876, %v900
    %v913 = vmul.f32 %v880, %v900
    %v914 = vmul.f32 %v884, %v900
    %v915 = vmul.f32 %v888, %v900
    %v916 = vmul.f32 %v892, %v900
    %v917 = vmul.f32 %v896, %v900
    %v918 = vld [vmem:[#allocation6] sm:$0x1]
    %v920 = vperm.slane %v918, 0
    %v922 = vadd.f32 %v902, %v920
    %v923 = vadd.f32 %v903, %v920
    %v924 = vadd.f32 %v904, %v920
    %v925 = vadd.f32 %v905, %v920
    %v926 = vadd.f32 %v906, %v920
    %v927 = vadd.f32 %v907, %v920
    %v928 = vadd.f32 %v908, %v920
    %v929 = vadd.f32 %v909, %v920
    %v930 = vadd.f32 %v910, %v920
    %v931 = vadd.f32 %v911, %v920
    %v932 = vadd.f32 %v912, %v920
    %v933 = vadd.f32 %v913, %v920
    %v934 = vadd.f32 %v914, %v920
    %v935 = vadd.f32 %v915, %v920
    %v936 = vadd.f32 %v916, %v920
    %v937 = vadd.f32 %v917, %v920
    %v938 = vmax.f32 %v922, 0.0
    %v939 = vmax.f32 %v923, 0.0
    %v940 = vmax.f32 %v924, 0.0
    %v941 = vmax.f32 %v925, 0.0
    %v942 = vmax.f32 %v926, 0.0
    %v943 = vmax.f32 %v927, 0.0
    %v944 = vmax.f32 %v928, 0.0
    %v945 = vmax.f32 %v929, 0.0
    %v946 = vmax.f32 %v930, 0.0
    %v947 = vmax.f32 %v931, 0.0
    %v948 = vmax.f32 %v932, 0.0
    %v949 = vmax.f32 %v933, 0.0
    %v950 = vmax.f32 %v934, 0.0
    %v951 = vmax.f32 %v935, 0.0
    %v952 = vmax.f32 %v936, 0.0
    %v953 = vmax.f32 %v937, 0.0
    %954 = vst [vmem:[%s4] sm:$0xff] %v938
    %955 = vst [vmem:[%s4 + $0x8] sm:$0xff] %v939
    %956 = vst [vmem:[%s4 + $0x10] sm:$0xff] %v940
    %957 = vst [vmem:[%s4 + $0x18] sm:$0xff] %v941
    %958 = vst [vmem:[%s4 + $0x20] sm:$0xff] %v942
    %959 = vst [vmem:[%s4 + $0x28] sm:$0xff] %v943
    %960 = vst [vmem:[%s4 + $0x30] sm:$0xff] %v944
    %961 = vst [vmem:[%s4 + $0x38] sm:$0xff] %v945
    %962 = vst [vmem:[%s4 + $0x40] sm:$0xff] %v946
    %963 = vst [vmem:[%s4 + $0x48] sm:$0xff] %v947
    %964 = vst [vmem:[%s4 + $0x50] sm:$0xff] %v948
    %965 = vst [vmem:[%s4 + $0x58] sm:$0xff] %v949
    %966 = vst [vmem:[%s4 + $0x60] sm:$0xff] %v950
    %967 = vst [vmem:[%s4 + $0x68] sm:$0xff] %v951
    %968 = vst [vmem:[%s4 + $0x70] sm:$0xff] %v952
    %969 = vst [vmem:[%s4 + $0x78] sm:$0xff] %v953
    // Predicated region
    $region30: #{bottleneck_pallas.3} parent=1 // pred_check
      _
    $region31: #{bottleneck_pallas.3} parent=1 // pred_check_branch
      %971 = sbr.rel (0) target = $region33
    $region32: #{bottleneck_pallas.3} parent=1 // pred_region
      _
    $region33: #{bottleneck_pallas.3} parent=1 // pred_fallthru
      _
    // Predicated region
    $region34: #{bottleneck_pallas.3} parent=1 // pred_check
      _
    $region35: #{bottleneck_pallas.3} parent=1 // pred_check_branch
      %973 = sbr.rel (0) target = $region37
    $region36: #{bottleneck_pallas.3} parent=1 // pred_region
      _
    $region37: #{bottleneck_pallas.3} parent=1 // pred_fallthru
      _
    %974 = vsyncpa [#allocation3], 1
    %975 = vsyncpa [#allocation5], 1

// kernel: bottleneck_pallas.5
$region0: #{bottleneck_pallas.5}
  #allocation0 [shape = 'u32[]', space=smem, size = 0x4, offset = 0x4, fixed_abs, tag = 'smem constant byte address 0x4 - core index']
  #allocation1 [shape = 'u32[72,128]{1,0:T(1,128)}', space=vmem, size = 0x9000, scoped, tag = 'internal scratch']
  %s0 = inlined_call_operand.vmem [shape: f32[32,128], index: 0, kind: input, shape index: {}]
  %s1 = inlined_call_operand.vmem [shape: f32[128,128], index: 1, kind: input, shape index: {}]
  %s2 = inlined_call_operand.vmem [shape: f32[1,128], index: 2, kind: input, shape index: {}]
  %s3 = inlined_call_operand.vmem [shape: f32[1,128], index: 3, kind: input, shape index: {}]
  %s4 = inlined_call_operand.vmem [shape: f32[32,128], index: 4, kind: input, shape index: {}]
  %s5 = inlined_call_operand.vmem [shape: f32[128,128], index: 5, kind: input, shape index: {}]
  %s6 = inlined_call_operand.vmem [shape: f32[1,128], index: 6, kind: input, shape index: {}]
  %s7 = inlined_call_operand.vmem [shape: f32[1,128], index: 7, kind: input, shape index: {}]
  %s8 = inlined_call_operand.hbm [shape: f32[32,128], index: 8, kind: output, shape index: {}]
  %s9 = sld [smem:[#allocation0]]
  $region42: #{bottleneck_pallas.5} parent=0
    _
  %s11 = ssub.s32 1, %s9
  %s12 = scalar_select 0, %s11, %s9
  $region1: #{bottleneck_pallas.5} parent=0
    #allocation2 [shape = 'u8[16384]{0}', space=vmem, size = 0x4000, scoped, tag = 'output window, operand 0, single buffered']
    #allocation3 [shape = 's32[1]{0}', space=sflag, size = 0x4, scoped, tag = 'scoped memory for bottleneck_pallas.5']
    %13 = vsyncpa [#allocation3], 0
    // Predicated region
    $region2: #{bottleneck_pallas.5} parent=1 // pred_check
      _
    $region3: #{bottleneck_pallas.5} parent=1 // pred_check_branch
      %15 = sbr.rel (0) target = $region5
    $region4: #{bottleneck_pallas.5} parent=1 // pred_region
      _
    $region5: #{bottleneck_pallas.5} parent=1 // pred_fallthru
      _
    // Predicated region
    $region6: #{bottleneck_pallas.5} parent=1 // pred_check
      _
    $region7: #{bottleneck_pallas.5} parent=1 // pred_check_branch
      %17 = sbr.rel (0) target = $region9
    $region8: #{bottleneck_pallas.5} parent=1 // pred_region
      _
    $region9: #{bottleneck_pallas.5} parent=1 // pred_fallthru
      _
    // Predicated region
    $region10: #{bottleneck_pallas.5} parent=1 // pred_check
      _
    $region11: #{bottleneck_pallas.5} parent=1 // pred_check_branch
      %19 = sbr.rel (0) target = $region13
    $region12: #{bottleneck_pallas.5} parent=1 // pred_region
      _
    $region13: #{bottleneck_pallas.5} parent=1 // pred_fallthru
      _
    // Predicated region
    $region14: #{bottleneck_pallas.5} parent=1 // pred_check
      _
    $region15: #{bottleneck_pallas.5} parent=1 // pred_check_branch
      %21 = sbr.rel (0) target = $region17
    $region16: #{bottleneck_pallas.5} parent=1 // pred_region
      _
    $region17: #{bottleneck_pallas.5} parent=1 // pred_fallthru
      _
    // Predicated region
    $region18: #{bottleneck_pallas.5} parent=1 // pred_check
      _
    $region19: #{bottleneck_pallas.5} parent=1 // pred_check_branch
      %23 = sbr.rel (0) target = $region21
    $region20: #{bottleneck_pallas.5} parent=1 // pred_region
      _
    $region21: #{bottleneck_pallas.5} parent=1 // pred_fallthru
      _
    // Predicated region
    $region22: #{bottleneck_pallas.5} parent=1 // pred_check
      _
    $region23: #{bottleneck_pallas.5} parent=1 // pred_check_branch
      %25 = sbr.rel (0) target = $region25
    $region24: #{bottleneck_pallas.5} parent=1 // pred_region
      _
    $region25: #{bottleneck_pallas.5} parent=1 // pred_fallthru
      _
    // Predicated region
    $region26: #{bottleneck_pallas.5} parent=1 // pred_check
      _
    $region27: #{bottleneck_pallas.5} parent=1 // pred_check_branch
      %27 = sbr.rel (0) target = $region29
    $region28: #{bottleneck_pallas.5} parent=1 // pred_region
      _
    $region29: #{bottleneck_pallas.5} parent=1 // pred_fallthru
      _
    // Predicated region
    $region30: #{bottleneck_pallas.5} parent=1 // pred_check
      _
    $region31: #{bottleneck_pallas.5} parent=1 // pred_check_branch
      %29 = sbr.rel (0) target = $region33
    $region32: #{bottleneck_pallas.5} parent=1 // pred_region
      _
    $region33: #{bottleneck_pallas.5} parent=1 // pred_fallthru
      _
    %v30 = vld [vmem:[%s0] sm:$0xff]
    %v31 = vld [vmem:[%s0 + $0x8] sm:$0xff]
    %v32 = vld [vmem:[%s0 + $0x10] sm:$0xff]
    %v33 = vld [vmem:[%s0 + $0x18] sm:$0xff]
    %v34 = vld [vmem:[%s1] sm:$0xff]
    %v35 = vld [vmem:[%s1 + $0x8] sm:$0xff]
    %v36 = vld [vmem:[%s1 + $0x10] sm:$0xff]
    %v37 = vld [vmem:[%s1 + $0x18] sm:$0xff]
    %v38 = vld [vmem:[%s1 + $0x20] sm:$0xff]
    %v39 = vld [vmem:[%s1 + $0x28] sm:$0xff]
    %v40 = vld [vmem:[%s1 + $0x30] sm:$0xff]
    %v41 = vld [vmem:[%s1 + $0x38] sm:$0xff]
    %v42 = vld [vmem:[%s1 + $0x40] sm:$0xff]
    %v43 = vld [vmem:[%s1 + $0x48] sm:$0xff]
    %v44 = vld [vmem:[%s1 + $0x50] sm:$0xff]
    %v45 = vld [vmem:[%s1 + $0x58] sm:$0xff]
    %v46 = vld [vmem:[%s1 + $0x60] sm:$0xff]
    %v47 = vld [vmem:[%s1 + $0x68] sm:$0xff]
    %v48 = vld [vmem:[%s1 + $0x70] sm:$0xff]
    %v49 = vld [vmem:[%s1 + $0x78] sm:$0xff]
    %v50 = vand.u32 %v49, 4294901760
    %51 = vmatpush.msra.mxu0 %v50
    %v52 = vand.u32 %v48, 4294901760
    %53 = vmatpush.msra.mxu0 %v52
    %v54 = vand.u32 %v47, 4294901760
    %55 = vmatpush.msra.mxu0 %v54
    %v56 = vand.u32 %v46, 4294901760
    %57 = vmatpush.msra.mxu0 %v56
    %v58 = vand.u32 %v45, 4294901760
    %59 = vmatpush.msra.mxu0 %v58
    %v60 = vand.u32 %v44, 4294901760
    %61 = vmatpush.msra.mxu0 %v60
    %v62 = vand.u32 %v43, 4294901760
    %63 = vmatpush.msra.mxu0 %v62
    %v64 = vand.u32 %v42, 4294901760
    %65 = vmatpush.msra.mxu0 %v64
    %v66 = vand.u32 %v41, 4294901760
    %67 = vmatpush.msra.mxu0 %v66
    %v68 = vand.u32 %v40, 4294901760
    %69 = vmatpush.msra.mxu0 %v68
    %v70 = vand.u32 %v39, 4294901760
    %71 = vmatpush.msra.mxu0 %v70
    %v72 = vand.u32 %v38, 4294901760
    %73 = vmatpush.msra.mxu0 %v72
    %v74 = vand.u32 %v37, 4294901760
    %75 = vmatpush.msra.mxu0 %v74
    %v76 = vand.u32 %v36, 4294901760
    %77 = vmatpush.msra.mxu0 %v76
    %v78 = vand.u32 %v35, 4294901760
    %79 = vmatpush.msra.mxu0 %v78
    %v80 = vand.u32 %v34, 4294901760
    %81 = vmatpush.msra.mxu0 %v80
    %v82 = vand.u32 %v30, 4294901760
    %v83 = vsub.f32 %v30, %v82
    %v84 = vand.u32 %v83, 4294901760
    %v85 = vsub.f32 %v83, %v84
    %v86 = vand.u32 %v85, 4294901760
    %87 = vmatmul.f32.gmra.mxu0 %v86
    %v88 = vpop.f32.mrf.mxu0
    %v89 = vadd.f32 0.0, %v88
    %v90 = vand.u32 %v31, 4294901760
    %v91 = vsub.f32 %v31, %v90
    %v92 = vand.u32 %v91, 4294901760
    %v93 = vsub.f32 %v91, %v92
    %v94 = vand.u32 %v93, 4294901760
    %95 = vmatmul.f32.gmra.mxu0 %v94
    %v96 = vpop.f32.mrf.mxu0
    %v97 = vadd.f32 0.0, %v96
    %v98 = vand.u32 %v32, 4294901760
    %v99 = vsub.f32 %v32, %v98
    %v100 = vand.u32 %v99, 4294901760
    %v101 = vsub.f32 %v99, %v100
    %v102 = vand.u32 %v101, 4294901760
    %103 = vmatmul.f32.gmra.mxu0 %v102
    %v104 = vpop.f32.mrf.mxu0
    %v105 = vadd.f32 0.0, %v104
    %v106 = vand.u32 %v33, 4294901760
    %v107 = vsub.f32 %v33, %v106
    %v108 = vand.u32 %v107, 4294901760
    %v109 = vsub.f32 %v107, %v108
    %v110 = vand.u32 %v109, 4294901760
    %111 = vmatmul.f32.gmra.mxu0 %v110
    %v112 = vpop.f32.mrf.mxu0
    %v113 = vadd.f32 0.0, %v112
    %114 = vdwg.mxu0
    %v115 = vand.u32 %v49, 4294901760
    %v116 = vsub.f32 %v49, %v115
    %v117 = vand.u32 %v116, 4294901760
    %v118 = vsub.f32 %v116, %v117
    %v119 = vand.u32 %v118, 4294901760
    %120 = vmatpush.msra.mxu0 %v119
    %v121 = vand.u32 %v48, 4294901760
    %v122 = vsub.f32 %v48, %v121
    %v123 = vand.u32 %v122, 4294901760
    %v124 = vsub.f32 %v122, %v123
    %v125 = vand.u32 %v124, 4294901760
    %126 = vmatpush.msra.mxu0 %v125
    %v127 = vand.u32 %v47, 4294901760
    %v128 = vsub.f32 %v47, %v127
    %v129 = vand.u32 %v128, 4294901760
    %v130 = vsub.f32 %v128, %v129
    %v131 = vand.u32 %v130, 4294901760
    %132 = vmatpush.msra.mxu0 %v131
    %v133 = vand.u32 %v46, 4294901760
    %v134 = vsub.f32 %v46, %v133
    %v135 = vand.u32 %v134, 4294901760
    %v136 = vsub.f32 %v134, %v135
    %v137 = vand.u32 %v136, 4294901760
    %138 = vmatpush.msra.mxu0 %v137
    %v139 = vand.u32 %v45, 4294901760
    %v140 = vsub.f32 %v45, %v139
    %v141 = vand.u32 %v140, 4294901760
    %v142 = vsub.f32 %v140, %v141
    %v143 = vand.u32 %v142, 4294901760
    %144 = vmatpush.msra.mxu0 %v143
    %v145 = vand.u32 %v44, 4294901760
    %v146 = vsub.f32 %v44, %v145
    %v147 = vand.u32 %v146, 4294901760
    %v148 = vsub.f32 %v146, %v147
    %v149 = vand.u32 %v148, 4294901760
    %150 = vmatpush.msra.mxu0 %v149
    %v151 = vand.u32 %v43, 4294901760
    %v152 = vsub.f32 %v43, %v151
    %v153 = vand.u32 %v152, 4294901760
    %v154 = vsub.f32 %v152, %v153
    %v155 = vand.u32 %v154, 4294901760
    %156 = vmatpush.msra.mxu0 %v155
    %v157 = vand.u32 %v42, 4294901760
    %v158 = vsub.f32 %v42, %v157
    %v159 = vand.u32 %v158, 4294901760
    %v160 = vsub.f32 %v158, %v159
    %v161 = vand.u32 %v160, 4294901760
    %162 = vmatpush.msra.mxu0 %v161
    %v163 = vand.u32 %v41, 4294901760
    %v164 = vsub.f32 %v41, %v163
    %v165 = vand.u32 %v164, 4294901760
    %v166 = vsub.f32 %v164, %v165
    %v167 = vand.u32 %v166, 4294901760
    %168 = vmatpush.msra.mxu0 %v167
    %v169 = vand.u32 %v40, 4294901760
    %v170 = vsub.f32 %v40, %v169
    %v171 = vand.u32 %v170, 4294901760
    %v172 = vsub.f32 %v170, %v171
    %v173 = vand.u32 %v172, 4294901760
    %174 = vmatpush.msra.mxu0 %v173
    %v175 = vand.u32 %v39, 4294901760
    %v176 = vsub.f32 %v39, %v175
    %v177 = vand.u32 %v176, 4294901760
    %v178 = vsub.f32 %v176, %v177
    %v179 = vand.u32 %v178, 4294901760
    %180 = vmatpush.msra.mxu0 %v179
    %v181 = vand.u32 %v38, 4294901760
    %v182 = vsub.f32 %v38, %v181
    %v183 = vand.u32 %v182, 4294901760
    %v184 = vsub.f32 %v182, %v183
    %v185 = vand.u32 %v184, 4294901760
    %186 = vmatpush.msra.mxu0 %v185
    %v187 = vand.u32 %v37, 4294901760
    %v188 = vsub.f32 %v37, %v187
    %v189 = vand.u32 %v188, 4294901760
    %v190 = vsub.f32 %v188, %v189
    %v191 = vand.u32 %v190, 4294901760
    %192 = vmatpush.msra.mxu0 %v191
    %v193 = vand.u32 %v36, 4294901760
    %v194 = vsub.f32 %v36, %v193
    %v195 = vand.u32 %v194, 4294901760
    %v196 = vsub.f32 %v194, %v195
    %v197 = vand.u32 %v196, 4294901760
    %198 = vmatpush.msra.mxu0 %v197
    %v199 = vand.u32 %v35, 4294901760
    %v200 = vsub.f32 %v35, %v199
    %v201 = vand.u32 %v200, 4294901760
    %v202 = vsub.f32 %v200, %v201
    %v203 = vand.u32 %v202, 4294901760
    %204 = vmatpush.msra.mxu0 %v203
    %v205 = vand.u32 %v34, 4294901760
    %v206 = vsub.f32 %v34, %v205
    %v207 = vand.u32 %v206, 4294901760
    %v208 = vsub.f32 %v206, %v207
    %v209 = vand.u32 %v208, 4294901760
    %210 = vmatpush.msra.mxu0 %v209
    %v211 = vand.u32 %v30, 4294901760
    %212 = vmatmul.f32.gmra.mxu0 %v211
    %v213 = vpop.f32.mrf.mxu0
    %v214 = vadd.f32 %v89, %v213
    %v215 = vand.u32 %v31, 4294901760
    %216 = vmatmul.f32.gmra.mxu0 %v215
    %v217 = vpop.f32.mrf.mxu0
    %v218 = vadd.f32 %v97, %v217
    %v219 = vand.u32 %v32, 4294901760
    %220 = vmatmul.f32.gmra.mxu0 %v219
    %v221 = vpop.f32.mrf.mxu0
    %v222 = vadd.f32 %v105, %v221
    %v223 = vand.u32 %v33, 4294901760
    %224 = vmatmul.f32.gmra.mxu0 %v223
    %v225 = vpop.f32.mrf.mxu0
    %v226 = vadd.f32 %v113, %v225
    %227 = vdwg.mxu0
    %v228 = vand.u32 %v49, 4294901760
    %v229 = vsub.f32 %v49, %v228
    %230 = vmatpush.msra.mxu0 %v229
    %v231 = vand.u32 %v48, 4294901760
    %v232 = vsub.f32 %v48, %v231
    %233 = vmatpush.msra.mxu0 %v232
    %v234 = vand.u32 %v47, 4294901760
    %v235 = vsub.f32 %v47, %v234
    %236 = vmatpush.msra.mxu0 %v235
    %v237 = vand.u32 %v46, 4294901760
    %v238 = vsub.f32 %v46, %v237
    %239 = vmatpush.msra.mxu0 %v238
    %v240 = vand.u32 %v45, 4294901760
    %v241 = vsub.f32 %v45, %v240
    %242 = vmatpush.msra.mxu0 %v241
    %v243 = vand.u32 %v44, 4294901760
    %v244 = vsub.f32 %v44, %v243
    %245 = vmatpush.msra.mxu0 %v244
    %v246 = vand.u32 %v43, 4294901760
    %v247 = vsub.f32 %v43, %v246
    %248 = vmatpush.msra.mxu0 %v247
    %v249 = vand.u32 %v42, 4294901760
    %v250 = vsub.f32 %v42, %v249
    %251 = vmatpush.msra.mxu0 %v250
    %v252 = vand.u32 %v41, 4294901760
    %v253 = vsub.f32 %v41, %v252
    %254 = vmatpush.msra.mxu0 %v253
    %v255 = vand.u32 %v40, 4294901760
    %v256 = vsub.f32 %v40, %v255
    %257 = vmatpush.msra.mxu0 %v256
    %v258 = vand.u32 %v39, 4294901760
    %v259 = vsub.f32 %v39, %v258
    %260 = vmatpush.msra.mxu0 %v259
    %v261 = vand.u32 %v38, 4294901760
    %v262 = vsub.f32 %v38, %v261
    %263 = vmatpush.msra.mxu0 %v262
    %v264 = vand.u32 %v37, 4294901760
    %v265 = vsub.f32 %v37, %v264
    %266 = vmatpush.msra.mxu0 %v265
    %v267 = vand.u32 %v36, 4294901760
    %v268 = vsub.f32 %v36, %v267
    %269 = vmatpush.msra.mxu0 %v268
    %v270 = vand.u32 %v35, 4294901760
    %v271 = vsub.f32 %v35, %v270
    %272 = vmatpush.msra.mxu0 %v271
    %v273 = vand.u32 %v34, 4294901760
    %v274 = vsub.f32 %v34, %v273
    %275 = vmatpush.msra.mxu0 %v274
    %v276 = vand.u32 %v30, 4294901760
    %v277 = vsub.f32 %v30, %v276
    %278 = vmatmul.f32.gmra.mxu0 %v277
    %v279 = vpop.f32.mrf.mxu0
    %v280 = vadd.f32 %v214, %v279
    %v281 = vand.u32 %v31, 4294901760
    %v282 = vsub.f32 %v31, %v281
    %283 = vmatmul.f32.gmra.mxu0 %v282
    %v284 = vpop.f32.mrf.mxu0
    %v285 = vadd.f32 %v218, %v284
    %v286 = vand.u32 %v32, 4294901760
    %v287 = vsub.f32 %v32, %v286
    %288 = vmatmul.f32.gmra.mxu0 %v287
    %v289 = vpop.f32.mrf.mxu0
    %v290 = vadd.f32 %v222, %v289
    %v291 = vand.u32 %v33, 4294901760
    %v292 = vsub.f32 %v33, %v291
    %293 = vmatmul.f32.gmra.mxu0 %v292
    %v294 = vpop.f32.mrf.mxu0
    %v295 = vadd.f32 %v226, %v294
    %296 = vdwg.mxu0
    %v297 = vand.u32 %v49, 4294901760
    %298 = vmatpush.msra.mxu0 %v297
    %v299 = vand.u32 %v48, 4294901760
    %300 = vmatpush.msra.mxu0 %v299
    %v301 = vand.u32 %v47, 4294901760
    %302 = vmatpush.msra.mxu0 %v301
    %v303 = vand.u32 %v46, 4294901760
    %304 = vmatpush.msra.mxu0 %v303
    %v305 = vand.u32 %v45, 4294901760
    %306 = vmatpush.msra.mxu0 %v305
    %v307 = vand.u32 %v44, 4294901760
    %308 = vmatpush.msra.mxu0 %v307
    %v309 = vand.u32 %v43, 4294901760
    %310 = vmatpush.msra.mxu0 %v309
    %v311 = vand.u32 %v42, 4294901760
    %312 = vmatpush.msra.mxu0 %v311
    %v313 = vand.u32 %v41, 4294901760
    %314 = vmatpush.msra.mxu0 %v313
    %v315 = vand.u32 %v40, 4294901760
    %316 = vmatpush.msra.mxu0 %v315
    %v317 = vand.u32 %v39, 4294901760
    %318 = vmatpush.msra.mxu0 %v317
    %v319 = vand.u32 %v38, 4294901760
    %320 = vmatpush.msra.mxu0 %v319
    %v321 = vand.u32 %v37, 4294901760
    %322 = vmatpush.msra.mxu0 %v321
    %v323 = vand.u32 %v36, 4294901760
    %324 = vmatpush.msra.mxu0 %v323
    %v325 = vand.u32 %v35, 4294901760
    %326 = vmatpush.msra.mxu0 %v325
    %v327 = vand.u32 %v34, 4294901760
    %328 = vmatpush.msra.mxu0 %v327
    %v329 = vand.u32 %v30, 4294901760
    %v330 = vsub.f32 %v30, %v329
    %v331 = vand.u32 %v330, 4294901760
    %332 = vmatmul.f32.gmra.mxu0 %v331
    %v333 = vpop.f32.mrf.mxu0
    %v334 = vadd.f32 %v280, %v333
    %v335 = vand.u32 %v31, 4294901760
    %v336 = vsub.f32 %v31, %v335
    %v337 = vand.u32 %v336, 4294901760
    %338 = vmatmul.f32.gmra.mxu0 %v337
    %v339 = vpop.f32.mrf.mxu0
    %v340 = vadd.f32 %v285, %v339
    %v341 = vand.u32 %v32, 4294901760
    %v342 = vsub.f32 %v32, %v341
    %v343 = vand.u32 %v342, 4294901760
    %344 = vmatmul.f32.gmra.mxu0 %v343
    %v345 = vpop.f32.mrf.mxu0
    %v346 = vadd.f32 %v290, %v345
    %v347 = vand.u32 %v33, 4294901760
    %v348 = vsub.f32 %v33, %v347
    %v349 = vand.u32 %v348, 4294901760
    %350 = vmatmul.f32.gmra.mxu0 %v349
    %v351 = vpop.f32.mrf.mxu0
    %v352 = vadd.f32 %v295, %v351
    %353 = vdwg.mxu0
    %v354 = vand.u32 %v49, 4294901760
    %v355 = vsub.f32 %v49, %v354
    %v356 = vand.u32 %v355, 4294901760
    %357 = vmatpush.msra.mxu0 %v356
    %v358 = vand.u32 %v48, 4294901760
    %v359 = vsub.f32 %v48, %v358
    %v360 = vand.u32 %v359, 4294901760
    %361 = vmatpush.msra.mxu0 %v360
    %v362 = vand.u32 %v47, 4294901760
    %v363 = vsub.f32 %v47, %v362
    %v364 = vand.u32 %v363, 4294901760
    %365 = vmatpush.msra.mxu0 %v364
    %v366 = vand.u32 %v46, 4294901760
    %v367 = vsub.f32 %v46, %v366
    %v368 = vand.u32 %v367, 4294901760
    %369 = vmatpush.msra.mxu0 %v368
    %v370 = vand.u32 %v45, 4294901760
    %v371 = vsub.f32 %v45, %v370
    %v372 = vand.u32 %v371, 4294901760
    %373 = vmatpush.msra.mxu0 %v372
    %v374 = vand.u32 %v44, 4294901760
    %v375 = vsub.f32 %v44, %v374
    %v376 = vand.u32 %v375, 4294901760
    %377 = vmatpush.msra.mxu0 %v376
    %v378 = vand.u32 %v43, 4294901760
    %v379 = vsub.f32 %v43, %v378
    %v380 = vand.u32 %v379, 4294901760
    %381 = vmatpush.msra.mxu0 %v380
    %v382 = vand.u32 %v42, 4294901760
    %v383 = vsub.f32 %v42, %v382
    %v384 = vand.u32 %v383, 4294901760
    %385 = vmatpush.msra.mxu0 %v384
    %v386 = vand.u32 %v41, 4294901760
    %v387 = vsub.f32 %v41, %v386
    %v388 = vand.u32 %v387, 4294901760
    %389 = vmatpush.msra.mxu0 %v388
    %v390 = vand.u32 %v40, 4294901760
    %v391 = vsub.f32 %v40, %v390
    %v392 = vand.u32 %v391, 4294901760
    %393 = vmatpush.msra.mxu0 %v392
    %v394 = vand.u32 %v39, 4294901760
    %v395 = vsub.f32 %v39, %v394
    %v396 = vand.u32 %v395, 4294901760
    %397 = vmatpush.msra.mxu0 %v396
    %v398 = vand.u32 %v38, 4294901760
    %v399 = vsub.f32 %v38, %v398
    %v400 = vand.u32 %v399, 4294901760
    %401 = vmatpush.msra.mxu0 %v400
    %v402 = vand.u32 %v37, 4294901760
    %v403 = vsub.f32 %v37, %v402
    %v404 = vand.u32 %v403, 4294901760
    %405 = vmatpush.msra.mxu0 %v404
    %v406 = vand.u32 %v36, 4294901760
    %v407 = vsub.f32 %v36, %v406
    %v408 = vand.u32 %v407, 4294901760
    %409 = vmatpush.msra.mxu0 %v408
    %v410 = vand.u32 %v35, 4294901760
    %v411 = vsub.f32 %v35, %v410
    %v412 = vand.u32 %v411, 4294901760
    %413 = vmatpush.msra.mxu0 %v412
    %v414 = vand.u32 %v34, 4294901760
    %v415 = vsub.f32 %v34, %v414
    %v416 = vand.u32 %v415, 4294901760
    %417 = vmatpush.msra.mxu0 %v416
    %v418 = vand.u32 %v30, 4294901760
    %419 = vmatmul.f32.gmra.mxu0 %v418
    %v420 = vpop.f32.mrf.mxu0
    %v421 = vadd.f32 %v334, %v420
    %v422 = vand.u32 %v31, 4294901760
    %423 = vmatmul.f32.gmra.mxu0 %v422
    %v424 = vpop.f32.mrf.mxu0
    %v425 = vadd.f32 %v340, %v424
    %v426 = vand.u32 %v32, 4294901760
    %427 = vmatmul.f32.gmra.mxu0 %v426
    %v428 = vpop.f32.mrf.mxu0
    %v429 = vadd.f32 %v346, %v428
    %v430 = vand.u32 %v33, 4294901760
    %431 = vmatmul.f32.gmra.mxu0 %v430
    %v432 = vpop.f32.mrf.mxu0
    %v433 = vadd.f32 %v352, %v432
    %434 = vdwg.mxu0
    %v435 = vand.u32 %v49, 4294901760
    %436 = vmatpush.msra.mxu0 %v435
    %v437 = vand.u32 %v48, 4294901760
    %438 = vmatpush.msra.mxu0 %v437
    %v439 = vand.u32 %v47, 4294901760
    %440 = vmatpush.msra.mxu0 %v439
    %v441 = vand.u32 %v46, 4294901760
    %442 = vmatpush.msra.mxu0 %v441
    %v443 = vand.u32 %v45, 4294901760
    %444 = vmatpush.msra.mxu0 %v443
    %v445 = vand.u32 %v44, 4294901760
    %446 = vmatpush.msra.mxu0 %v445
    %v447 = vand.u32 %v43, 4294901760
    %448 = vmatpush.msra.mxu0 %v447
    %v449 = vand.u32 %v42, 4294901760
    %450 = vmatpush.msra.mxu0 %v449
    %v451 = vand.u32 %v41, 4294901760
    %452 = vmatpush.msra.mxu0 %v451
    %v453 = vand.u32 %v40, 4294901760
    %454 = vmatpush.msra.mxu0 %v453
    %v455 = vand.u32 %v39, 4294901760
    %456 = vmatpush.msra.mxu0 %v455
    %v457 = vand.u32 %v38, 4294901760
    %458 = vmatpush.msra.mxu0 %v457
    %v459 = vand.u32 %v37, 4294901760
    %460 = vmatpush.msra.mxu0 %v459
    %v461 = vand.u32 %v36, 4294901760
    %462 = vmatpush.msra.mxu0 %v461
    %v463 = vand.u32 %v35, 4294901760
    %464 = vmatpush.msra.mxu0 %v463
    %v465 = vand.u32 %v34, 4294901760
    %466 = vmatpush.msra.mxu0 %v465
    %v467 = vand.u32 %v30, 4294901760
    %468 = vmatmul.f32.gmra.mxu0 %v467
    %v469 = vpop.f32.mrf.mxu0
    %v470 = vadd.f32 %v421, %v469
    %v471 = vand.u32 %v31, 4294901760
    %472 = vmatmul.f32.gmra.mxu0 %v471
    %v473 = vpop.f32.mrf.mxu0
    %v474 = vadd.f32 %v425, %v473
    %v475 = vand.u32 %v32, 4294901760
    %476 = vmatmul.f32.gmra.mxu0 %v475
    %v477 = vpop.f32.mrf.mxu0
    %v478 = vadd.f32 %v429, %v477
    %v479 = vand.u32 %v33, 4294901760
    %480 = vmatmul.f32.gmra.mxu0 %v479
    %v481 = vpop.f32.mrf.mxu0
    %v482 = vadd.f32 %v433, %v481
    %483 = vdwg.mxu0
    %v484 = vld [vmem:[%s2] sm:$0x1]
    %v486 = vperm.slane %v484, 0
    %v488 = vmul.f32 %v470, %v486
    %v489 = vmul.f32 %v474, %v486
    %v490 = vmul.f32 %v478, %v486
    %v491 = vmul.f32 %v482, %v486
    %v492 = vld [vmem:[%s3] sm:$0x1]
    %v494 = vperm.slane %v492, 0
    %v496 = vadd.f32 %v488, %v494
    %v497 = vadd.f32 %v489, %v494
    %v498 = vadd.f32 %v490, %v494
    %v499 = vadd.f32 %v491, %v494
    %v500 = vld [vmem:[%s4] sm:$0xff]
    %v501 = vld [vmem:[%s4 + $0x8] sm:$0xff]
    %v502 = vld [vmem:[%s4 + $0x10] sm:$0xff]
    %v503 = vld [vmem:[%s4 + $0x18] sm:$0xff]
    %v504 = vld [vmem:[%s5] sm:$0xff]
    %v505 = vld [vmem:[%s5 + $0x8] sm:$0xff]
    %v506 = vld [vmem:[%s5 + $0x10] sm:$0xff]
    %v507 = vld [vmem:[%s5 + $0x18] sm:$0xff]
    %v508 = vld [vmem:[%s5 + $0x20] sm:$0xff]
    %v509 = vld [vmem:[%s5 + $0x28] sm:$0xff]
    %v510 = vld [vmem:[%s5 + $0x30] sm:$0xff]
    %v511 = vld [vmem:[%s5 + $0x38] sm:$0xff]
    %v512 = vld [vmem:[%s5 + $0x40] sm:$0xff]
    %v513 = vld [vmem:[%s5 + $0x48] sm:$0xff]
    %v514 = vld [vmem:[%s5 + $0x50] sm:$0xff]
    %v515 = vld [vmem:[%s5 + $0x58] sm:$0xff]
    %v516 = vld [vmem:[%s5 + $0x60] sm:$0xff]
    %v517 = vld [vmem:[%s5 + $0x68] sm:$0xff]
    %v518 = vld [vmem:[%s5 + $0x70] sm:$0xff]
    %v519 = vld [vmem:[%s5 + $0x78] sm:$0xff]
    %v520 = vand.u32 %v519, 4294901760
    %521 = vmatpush.msra.mxu0 %v520
    %v522 = vand.u32 %v518, 4294901760
    %523 = vmatpush.msra.mxu0 %v522
    %v524 = vand.u32 %v517, 4294901760
    %525 = vmatpush.msra.mxu0 %v524
    %v526 = vand.u32 %v516, 4294901760
    %527 = vmatpush.msra.mxu0 %v526
    %v528 = vand.u32 %v515, 4294901760
    %529 = vmatpush.msra.mxu0 %v528
    %v530 = vand.u32 %v514, 4294901760
    %531 = vmatpush.msra.mxu0 %v530
    %v532 = vand.u32 %v513, 4294901760
    %533 = vmatpush.msra.mxu0 %v532
    %v534 = vand.u32 %v512, 4294901760
    %535 = vmatpush.msra.mxu0 %v534
    %v536 = vand.u32 %v511, 4294901760
    %537 = vmatpush.msra.mxu0 %v536
    %v538 = vand.u32 %v510, 4294901760
    %539 = vmatpush.msra.mxu0 %v538
    %v540 = vand.u32 %v509, 4294901760
    %541 = vmatpush.msra.mxu0 %v540
    %v542 = vand.u32 %v508, 4294901760
    %543 = vmatpush.msra.mxu0 %v542
    %v544 = vand.u32 %v507, 4294901760
    %545 = vmatpush.msra.mxu0 %v544
    %v546 = vand.u32 %v506, 4294901760
    %547 = vmatpush.msra.mxu0 %v546
    %v548 = vand.u32 %v505, 4294901760
    %549 = vmatpush.msra.mxu0 %v548
    %v550 = vand.u32 %v504, 4294901760
    %551 = vmatpush.msra.mxu0 %v550
    %v552 = vand.u32 %v500, 4294901760
    %v553 = vsub.f32 %v500, %v552
    %v554 = vand.u32 %v553, 4294901760
    %v555 = vsub.f32 %v553, %v554
    %v556 = vand.u32 %v555, 4294901760
    %557 = vmatmul.f32.gmra.mxu0 %v556
    %v558 = vpop.f32.mrf.mxu0
    %v559 = vadd.f32 0.0, %v558
    %v560 = vand.u32 %v501, 4294901760
    %v561 = vsub.f32 %v501, %v560
    %v562 = vand.u32 %v561, 4294901760
    %v563 = vsub.f32 %v561, %v562
    %v564 = vand.u32 %v563, 4294901760
    %565 = vmatmul.f32.gmra.mxu0 %v564
    %v566 = vpop.f32.mrf.mxu0
    %v567 = vadd.f32 0.0, %v566
    %v568 = vand.u32 %v502, 4294901760
    %v569 = vsub.f32 %v502, %v568
    %v570 = vand.u32 %v569, 4294901760
    %v571 = vsub.f32 %v569, %v570
    %v572 = vand.u32 %v571, 4294901760
    %573 = vmatmul.f32.gmra.mxu0 %v572
    %v574 = vpop.f32.mrf.mxu0
    %v575 = vadd.f32 0.0, %v574
    %v576 = vand.u32 %v503, 4294901760
    %v577 = vsub.f32 %v503, %v576
    %v578 = vand.u32 %v577, 4294901760
    %v579 = vsub.f32 %v577, %v578
    %v580 = vand.u32 %v579, 4294901760
    %581 = vmatmul.f32.gmra.mxu0 %v580
    %v582 = vpop.f32.mrf.mxu0
    %v583 = vadd.f32 0.0, %v582
    %584 = vdwg.mxu0
    %v585 = vand.u32 %v519, 4294901760
    %v586 = vsub.f32 %v519, %v585
    %v587 = vand.u32 %v586, 4294901760
    %v588 = vsub.f32 %v586, %v587
    %v589 = vand.u32 %v588, 4294901760
    %590 = vmatpush.msra.mxu0 %v589
    %v591 = vand.u32 %v518, 4294901760
    %v592 = vsub.f32 %v518, %v591
    %v593 = vand.u32 %v592, 4294901760
    %v594 = vsub.f32 %v592, %v593
    %v595 = vand.u32 %v594, 4294901760
    %596 = vmatpush.msra.mxu0 %v595
    %v597 = vand.u32 %v517, 4294901760
    %v598 = vsub.f32 %v517, %v597
    %v599 = vand.u32 %v598, 4294901760
    %v600 = vsub.f32 %v598, %v599
    %v601 = vand.u32 %v600, 4294901760
    %602 = vmatpush.msra.mxu0 %v601
    %v603 = vand.u32 %v516, 4294901760
    %v604 = vsub.f32 %v516, %v603
    %v605 = vand.u32 %v604, 4294901760
    %v606 = vsub.f32 %v604, %v605
    %v607 = vand.u32 %v606, 4294901760
    %608 = vmatpush.msra.mxu0 %v607
    %v609 = vand.u32 %v515, 4294901760
    %v610 = vsub.f32 %v515, %v609
    %v611 = vand.u32 %v610, 4294901760
    %v612 = vsub.f32 %v610, %v611
    %v613 = vand.u32 %v612, 4294901760
    %614 = vmatpush.msra.mxu0 %v613
    %v615 = vand.u32 %v514, 4294901760
    %v616 = vsub.f32 %v514, %v615
    %v617 = vand.u32 %v616, 4294901760
    %v618 = vsub.f32 %v616, %v617
    %v619 = vand.u32 %v618, 4294901760
    %620 = vmatpush.msra.mxu0 %v619
    %v621 = vand.u32 %v513, 4294901760
    %v622 = vsub.f32 %v513, %v621
    %v623 = vand.u32 %v622, 4294901760
    %v624 = vsub.f32 %v622, %v623
    %v625 = vand.u32 %v624, 4294901760
    %626 = vmatpush.msra.mxu0 %v625
    %v627 = vand.u32 %v512, 4294901760
    %v628 = vsub.f32 %v512, %v627
    %v629 = vand.u32 %v628, 4294901760
    %v630 = vsub.f32 %v628, %v629
    %v631 = vand.u32 %v630, 4294901760
    %632 = vmatpush.msra.mxu0 %v631
    %v633 = vand.u32 %v511, 4294901760
    %v634 = vsub.f32 %v511, %v633
    %v635 = vand.u32 %v634, 4294901760
    %v636 = vsub.f32 %v634, %v635
    %v637 = vand.u32 %v636, 4294901760
    %638 = vmatpush.msra.mxu0 %v637
    %v639 = vand.u32 %v510, 4294901760
    %v640 = vsub.f32 %v510, %v639
    %v641 = vand.u32 %v640, 4294901760
    %v642 = vsub.f32 %v640, %v641
    %v643 = vand.u32 %v642, 4294901760
    %644 = vmatpush.msra.mxu0 %v643
    %v645 = vand.u32 %v509, 4294901760
    %v646 = vsub.f32 %v509, %v645
    %v647 = vand.u32 %v646, 4294901760
    %v648 = vsub.f32 %v646, %v647
    %v649 = vand.u32 %v648, 4294901760
    %650 = vmatpush.msra.mxu0 %v649
    %v651 = vand.u32 %v508, 4294901760
    %v652 = vsub.f32 %v508, %v651
    %v653 = vand.u32 %v652, 4294901760
    %v654 = vsub.f32 %v652, %v653
    %v655 = vand.u32 %v654, 4294901760
    %656 = vmatpush.msra.mxu0 %v655
    %v657 = vand.u32 %v507, 4294901760
    %v658 = vsub.f32 %v507, %v657
    %v659 = vand.u32 %v658, 4294901760
    %v660 = vsub.f32 %v658, %v659
    %v661 = vand.u32 %v660, 4294901760
    %662 = vmatpush.msra.mxu0 %v661
    %v663 = vand.u32 %v506, 4294901760
    %v664 = vsub.f32 %v506, %v663
    %v665 = vand.u32 %v664, 4294901760
    %v666 = vsub.f32 %v664, %v665
    %v667 = vand.u32 %v666, 4294901760
    %668 = vmatpush.msra.mxu0 %v667
    %v669 = vand.u32 %v505, 4294901760
    %v670 = vsub.f32 %v505, %v669
    %v671 = vand.u32 %v670, 4294901760
    %v672 = vsub.f32 %v670, %v671
    %v673 = vand.u32 %v672, 4294901760
    %674 = vmatpush.msra.mxu0 %v673
    %v675 = vand.u32 %v504, 4294901760
    %v676 = vsub.f32 %v504, %v675
    %v677 = vand.u32 %v676, 4294901760
    %v678 = vsub.f32 %v676, %v677
    %v679 = vand.u32 %v678, 4294901760
    %680 = vmatpush.msra.mxu0 %v679
    %v681 = vand.u32 %v500, 4294901760
    %682 = vmatmul.f32.gmra.mxu0 %v681
    %v683 = vpop.f32.mrf.mxu0
    %v684 = vadd.f32 %v559, %v683
    %v685 = vand.u32 %v501, 4294901760
    %686 = vmatmul.f32.gmra.mxu0 %v685
    %v687 = vpop.f32.mrf.mxu0
    %v688 = vadd.f32 %v567, %v687
    %v689 = vand.u32 %v502, 4294901760
    %690 = vmatmul.f32.gmra.mxu0 %v689
    %v691 = vpop.f32.mrf.mxu0
    %v692 = vadd.f32 %v575, %v691
    %v693 = vand.u32 %v503, 4294901760
    %694 = vmatmul.f32.gmra.mxu0 %v693
    %v695 = vpop.f32.mrf.mxu0
    %v696 = vadd.f32 %v583, %v695
    %697 = vdwg.mxu0
    %v698 = vand.u32 %v519, 4294901760
    %v699 = vsub.f32 %v519, %v698
    %700 = vmatpush.msra.mxu0 %v699
    %v701 = vand.u32 %v518, 4294901760
    %v702 = vsub.f32 %v518, %v701
    %703 = vmatpush.msra.mxu0 %v702
    %v704 = vand.u32 %v517, 4294901760
    %v705 = vsub.f32 %v517, %v704
    %706 = vmatpush.msra.mxu0 %v705
    %v707 = vand.u32 %v516, 4294901760
    %v708 = vsub.f32 %v516, %v707
    %709 = vmatpush.msra.mxu0 %v708
    %v710 = vand.u32 %v515, 4294901760
    %v711 = vsub.f32 %v515, %v710
    %712 = vmatpush.msra.mxu0 %v711
    %v713 = vand.u32 %v514, 4294901760
    %v714 = vsub.f32 %v514, %v713
    %715 = vmatpush.msra.mxu0 %v714
    %v716 = vand.u32 %v513, 4294901760
    %v717 = vsub.f32 %v513, %v716
    %718 = vmatpush.msra.mxu0 %v717
    %v719 = vand.u32 %v512, 4294901760
    %v720 = vsub.f32 %v512, %v719
    %721 = vmatpush.msra.mxu0 %v720
    %v722 = vand.u32 %v511, 4294901760
    %v723 = vsub.f32 %v511, %v722
    %724 = vmatpush.msra.mxu0 %v723
    %v725 = vand.u32 %v510, 4294901760
    %v726 = vsub.f32 %v510, %v725
    %727 = vmatpush.msra.mxu0 %v726
    %v728 = vand.u32 %v509, 4294901760
    %v729 = vsub.f32 %v509, %v728
    %730 = vmatpush.msra.mxu0 %v729
    %v731 = vand.u32 %v508, 4294901760
    %v732 = vsub.f32 %v508, %v731
    %733 = vmatpush.msra.mxu0 %v732
    %v734 = vand.u32 %v507, 4294901760
    %v735 = vsub.f32 %v507, %v734
    %736 = vmatpush.msra.mxu0 %v735
    %v737 = vand.u32 %v506, 4294901760
    %v738 = vsub.f32 %v506, %v737
    %739 = vmatpush.msra.mxu0 %v738
    %v740 = vand.u32 %v505, 4294901760
    %v741 = vsub.f32 %v505, %v740
    %742 = vmatpush.msra.mxu0 %v741
    %v743 = vand.u32 %v504, 4294901760
    %v744 = vsub.f32 %v504, %v743
    %745 = vmatpush.msra.mxu0 %v744
    %v746 = vand.u32 %v500, 4294901760
    %v747 = vsub.f32 %v500, %v746
    %748 = vmatmul.f32.gmra.mxu0 %v747
    %v749 = vpop.f32.mrf.mxu0
    %v750 = vadd.f32 %v684, %v749
    %v751 = vand.u32 %v501, 4294901760
    %v752 = vsub.f32 %v501, %v751
    %753 = vmatmul.f32.gmra.mxu0 %v752
    %v754 = vpop.f32.mrf.mxu0
    %v755 = vadd.f32 %v688, %v754
    %v756 = vand.u32 %v502, 4294901760
    %v757 = vsub.f32 %v502, %v756
    %758 = vmatmul.f32.gmra.mxu0 %v757
    %v759 = vpop.f32.mrf.mxu0
    %v760 = vadd.f32 %v692, %v759
    %v761 = vand.u32 %v503, 4294901760
    %v762 = vsub.f32 %v503, %v761
    %763 = vmatmul.f32.gmra.mxu0 %v762
    %v764 = vpop.f32.mrf.mxu0
    %v765 = vadd.f32 %v696, %v764
    %766 = vdwg.mxu0
    %v767 = vand.u32 %v519, 4294901760
    %768 = vmatpush.msra.mxu0 %v767
    %v769 = vand.u32 %v518, 4294901760
    %770 = vmatpush.msra.mxu0 %v769
    %v771 = vand.u32 %v517, 4294901760
    %772 = vmatpush.msra.mxu0 %v771
    %v773 = vand.u32 %v516, 4294901760
    %774 = vmatpush.msra.mxu0 %v773
    %v775 = vand.u32 %v515, 4294901760
    %776 = vmatpush.msra.mxu0 %v775
    %v777 = vand.u32 %v514, 4294901760
    %778 = vmatpush.msra.mxu0 %v777
    %v779 = vand.u32 %v513, 4294901760
    %780 = vmatpush.msra.mxu0 %v779
    %v781 = vand.u32 %v512, 4294901760
    %782 = vmatpush.msra.mxu0 %v781
    %v783 = vand.u32 %v511, 4294901760
    %784 = vmatpush.msra.mxu0 %v783
    %v785 = vand.u32 %v510, 4294901760
    %786 = vmatpush.msra.mxu0 %v785
    %v787 = vand.u32 %v509, 4294901760
    %788 = vmatpush.msra.mxu0 %v787
    %v789 = vand.u32 %v508, 4294901760
    %790 = vmatpush.msra.mxu0 %v789
    %v791 = vand.u32 %v507, 4294901760
    %792 = vmatpush.msra.mxu0 %v791
    %v793 = vand.u32 %v506, 4294901760
    %794 = vmatpush.msra.mxu0 %v793
    %v795 = vand.u32 %v505, 4294901760
    %796 = vmatpush.msra.mxu0 %v795
    %v797 = vand.u32 %v504, 4294901760
    %798 = vmatpush.msra.mxu0 %v797
    %v799 = vand.u32 %v500, 4294901760
    %v800 = vsub.f32 %v500, %v799
    %v801 = vand.u32 %v800, 4294901760
    %802 = vmatmul.f32.gmra.mxu0 %v801
    %v803 = vpop.f32.mrf.mxu0
    %v804 = vadd.f32 %v750, %v803
    %v805 = vand.u32 %v501, 4294901760
    %v806 = vsub.f32 %v501, %v805
    %v807 = vand.u32 %v806, 4294901760
    %808 = vmatmul.f32.gmra.mxu0 %v807
    %v809 = vpop.f32.mrf.mxu0
    %v810 = vadd.f32 %v755, %v809
    %v811 = vand.u32 %v502, 4294901760
    %v812 = vsub.f32 %v502, %v811
    %v813 = vand.u32 %v812, 4294901760
    %814 = vmatmul.f32.gmra.mxu0 %v813
    %v815 = vpop.f32.mrf.mxu0
    %v816 = vadd.f32 %v760, %v815
    %v817 = vand.u32 %v503, 4294901760
    %v818 = vsub.f32 %v503, %v817
    %v819 = vand.u32 %v818, 4294901760
    %820 = vmatmul.f32.gmra.mxu0 %v819
    %v821 = vpop.f32.mrf.mxu0
    %v822 = vadd.f32 %v765, %v821
    %823 = vdwg.mxu0
    %v824 = vand.u32 %v519, 4294901760
    %v825 = vsub.f32 %v519, %v824
    %v826 = vand.u32 %v825, 4294901760
    %827 = vmatpush.msra.mxu0 %v826
    %v828 = vand.u32 %v518, 4294901760
    %v829 = vsub.f32 %v518, %v828
    %v830 = vand.u32 %v829, 4294901760
    %831 = vmatpush.msra.mxu0 %v830
    %v832 = vand.u32 %v517, 4294901760
    %v833 = vsub.f32 %v517, %v832
    %v834 = vand.u32 %v833, 4294901760
    %835 = vmatpush.msra.mxu0 %v834
    %v836 = vand.u32 %v516, 4294901760
    %v837 = vsub.f32 %v516, %v836
    %v838 = vand.u32 %v837, 4294901760
    %839 = vmatpush.msra.mxu0 %v838
    %v840 = vand.u32 %v515, 4294901760
    %v841 = vsub.f32 %v515, %v840
    %v842 = vand.u32 %v841, 4294901760
    %843 = vmatpush.msra.mxu0 %v842
    %v844 = vand.u32 %v514, 4294901760
    %v845 = vsub.f32 %v514, %v844
    %v846 = vand.u32 %v845, 4294901760
    %847 = vmatpush.msra.mxu0 %v846
    %v848 = vand.u32 %v513, 4294901760
    %v849 = vsub.f32 %v513, %v848
    %v850 = vand.u32 %v849, 4294901760
    %851 = vmatpush.msra.mxu0 %v850
    %v852 = vand.u32 %v512, 4294901760
    %v853 = vsub.f32 %v512, %v852
    %v854 = vand.u32 %v853, 4294901760
    %855 = vmatpush.msra.mxu0 %v854
    %v856 = vand.u32 %v511, 4294901760
    %v857 = vsub.f32 %v511, %v856
    %v858 = vand.u32 %v857, 4294901760
    %859 = vmatpush.msra.mxu0 %v858
    %v860 = vand.u32 %v510, 4294901760
    %v861 = vsub.f32 %v510, %v860
    %v862 = vand.u32 %v861, 4294901760
    %863 = vmatpush.msra.mxu0 %v862
    %v864 = vand.u32 %v509, 4294901760
    %v865 = vsub.f32 %v509, %v864
    %v866 = vand.u32 %v865, 4294901760
    %867 = vmatpush.msra.mxu0 %v866
    %v868 = vand.u32 %v508, 4294901760
    %v869 = vsub.f32 %v508, %v868
    %v870 = vand.u32 %v869, 4294901760
    %871 = vmatpush.msra.mxu0 %v870
    %v872 = vand.u32 %v507, 4294901760
    %v873 = vsub.f32 %v507, %v872
    %v874 = vand.u32 %v873, 4294901760
    %875 = vmatpush.msra.mxu0 %v874
    %v876 = vand.u32 %v506, 4294901760
    %v877 = vsub.f32 %v506, %v876
    %v878 = vand.u32 %v877, 4294901760
    %879 = vmatpush.msra.mxu0 %v878
    %v880 = vand.u32 %v505, 4294901760
    %v881 = vsub.f32 %v505, %v880
    %v882 = vand.u32 %v881, 4294901760
    %883 = vmatpush.msra.mxu0 %v882
    %v884 = vand.u32 %v504, 4294901760
    %v885 = vsub.f32 %v504, %v884
    %v886 = vand.u32 %v885, 4294901760
    %887 = vmatpush.msra.mxu0 %v886
    %v888 = vand.u32 %v500, 4294901760
    %889 = vmatmul.f32.gmra.mxu0 %v888
    %v890 = vpop.f32.mrf.mxu0
    %v891 = vadd.f32 %v804, %v890
    %v892 = vand.u32 %v501, 4294901760
    %893 = vmatmul.f32.gmra.mxu0 %v892
    %v894 = vpop.f32.mrf.mxu0
    %v895 = vadd.f32 %v810, %v894
    %v896 = vand.u32 %v502, 4294901760
    %897 = vmatmul.f32.gmra.mxu0 %v896
    %v898 = vpop.f32.mrf.mxu0
    %v899 = vadd.f32 %v816, %v898
    %v900 = vand.u32 %v503, 4294901760
    %901 = vmatmul.f32.gmra.mxu0 %v900
    %v902 = vpop.f32.mrf.mxu0
    %v903 = vadd.f32 %v822, %v902
    %904 = vdwg.mxu0
    %v905 = vand.u32 %v519, 4294901760
    %906 = vmatpush.msra.mxu0 %v905
    %v907 = vand.u32 %v518, 4294901760
    %908 = vmatpush.msra.mxu0 %v907
    %v909 = vand.u32 %v517, 4294901760
    %910 = vmatpush.msra.mxu0 %v909
    %v911 = vand.u32 %v516, 4294901760
    %912 = vmatpush.msra.mxu0 %v911
    %v913 = vand.u32 %v515, 4294901760
    %914 = vmatpush.msra.mxu0 %v913
    %v915 = vand.u32 %v514, 4294901760
    %916 = vmatpush.msra.mxu0 %v915
    %v917 = vand.u32 %v513, 4294901760
    %918 = vmatpush.msra.mxu0 %v917
    %v919 = vand.u32 %v512, 4294901760
    %920 = vmatpush.msra.mxu0 %v919
    %v921 = vand.u32 %v511, 4294901760
    %922 = vmatpush.msra.mxu0 %v921
    %v923 = vand.u32 %v510, 4294901760
    %924 = vmatpush.msra.mxu0 %v923
    %v925 = vand.u32 %v509, 4294901760
    %926 = vmatpush.msra.mxu0 %v925
    %v927 = vand.u32 %v508, 4294901760
    %928 = vmatpush.msra.mxu0 %v927
    %v929 = vand.u32 %v507, 4294901760
    %930 = vmatpush.msra.mxu0 %v929
    %v931 = vand.u32 %v506, 4294901760
    %932 = vmatpush.msra.mxu0 %v931
    %v933 = vand.u32 %v505, 4294901760
    %934 = vmatpush.msra.mxu0 %v933
    %v935 = vand.u32 %v504, 4294901760
    %936 = vmatpush.msra.mxu0 %v935
    %v937 = vand.u32 %v500, 4294901760
    %938 = vmatmul.f32.gmra.mxu0 %v937
    %v939 = vpop.f32.mrf.mxu0
    %v940 = vadd.f32 %v891, %v939
    %v941 = vand.u32 %v501, 4294901760
    %942 = vmatmul.f32.gmra.mxu0 %v941
    %v943 = vpop.f32.mrf.mxu0
    %v944 = vadd.f32 %v895, %v943
    %v945 = vand.u32 %v502, 4294901760
    %946 = vmatmul.f32.gmra.mxu0 %v945
    %v947 = vpop.f32.mrf.mxu0
    %v948 = vadd.f32 %v899, %v947
    %v949 = vand.u32 %v503, 4294901760
    %950 = vmatmul.f32.gmra.mxu0 %v949
    %v951 = vpop.f32.mrf.mxu0
    %v952 = vadd.f32 %v903, %v951
    %953 = vdwg.mxu0
    %v954 = vld [vmem:[%s6] sm:$0x1]
    %v956 = vperm.slane %v954, 0
    %v958 = vmul.f32 %v940, %v956
    %v959 = vmul.f32 %v944, %v956
    %v960 = vmul.f32 %v948, %v956
    %v961 = vmul.f32 %v952, %v956
    %v962 = vld [vmem:[%s7] sm:$0x1]
    %v964 = vperm.slane %v962, 0
    %v966 = vadd.f32 %v958, %v964
    %v967 = vadd.f32 %v959, %v964
    %v968 = vadd.f32 %v960, %v964
    %v969 = vadd.f32 %v961, %v964
    %v970 = vadd.f32 %v496, %v966
    %v971 = vadd.f32 %v497, %v967
    %v972 = vadd.f32 %v498, %v968
    %v973 = vadd.f32 %v499, %v969
    %v974 = vmax.f32 %v970, 0.0
    %v975 = vmax.f32 %v971, 0.0
    %v976 = vmax.f32 %v972, 0.0
    %v977 = vmax.f32 %v973, 0.0
    %978 = vst [vmem:[#allocation2] sm:$0xff] %v974
    %979 = vst [vmem:[#allocation2 + $0x8] sm:$0xff] %v975
    %980 = vst [vmem:[#allocation2 + $0x10] sm:$0xff] %v976
    %981 = vst [vmem:[#allocation2 + $0x18] sm:$0xff] %v977
    // Predicated region
    $region34: #{bottleneck_pallas.5} parent=1 // pred_check
      _
    $region35: #{bottleneck_pallas.5} parent=1 // pred_check_branch
      %983 = sbr.rel (0) target = $region37
    $region36: #{bottleneck_pallas.5} parent=1 // pred_region
      %985 = vsyncadd [#allocation3], 0
      %s986 = sshll.u32 [#allocation2], 4
      %s987 = int_to_ptr.vmem [resolvable:$true] %s986
      %s988 = sshll.u32 %s8, 4
      %s989 = int_to_ptr.hbm [resolvable:$true] %s988
      %994 = dma.vmem_to_hbm [thread:$0]  %s987, 512, %s989, [#allocation3], 128, 128, 8
    $region37: #{bottleneck_pallas.5} parent=1 // pred_fallthru
      _
    // Predicated region
    $region38: #{bottleneck_pallas.5} parent=1 // pred_check
      _
    $region39: #{bottleneck_pallas.5} parent=1 // pred_check_branch
      %996 = sbr.rel (0) target = $region41
    $region40: #{bottleneck_pallas.5} parent=1 // pred_region
      %998 = dma.done [#allocation3], 512
    $region41: #{bottleneck_pallas.5} parent=1 // pred_fallthru
      _
    %999 = vsyncpa [#allocation3], 1

// kernel: bottleneck_pallas.4
$region0: #{bottleneck_pallas.4}
  #allocation0 [shape = 'u32[]', space=smem, size = 0x4, offset = 0x4, fixed_abs, tag = 'smem constant byte address 0x4 - core index']
  #allocation1 [shape = 'u32[72,128]{1,0:T(1,128)}', space=vmem, size = 0x9000, scoped, tag = 'internal scratch']
  %s0 = inlined_call_operand.vmem [shape: f32[2,20,5,128], index: 0, kind: input, shape index: {}]
  %s1 = inlined_call_operand.vmem [shape: f32[1152,128], index: 1, kind: input, shape index: {}]
  %s2 = inlined_call_operand.vmem [shape: f32[1,128], index: 2, kind: input, shape index: {}]
  %s3 = inlined_call_operand.vmem [shape: f32[1,128], index: 3, kind: input, shape index: {}]
  %s4 = inlined_call_operand.vmem [shape: f32[2,4,4,128], index: 4, kind: output, shape index: {}]
  %s5 = sld [smem:[#allocation0]]
  $region49: #{bottleneck_pallas.4} parent=0
    _
  %s7 = ssub.s32 1, %s5
  %s8 = scalar_select 0, %s7, %s5
  loop: start=0, step=1, limit=4
  $region2: #{bottleneck_pallas.4} parent=0 // loop_pre_header
    _
  $region3: #{bottleneck_pallas.4} parent=0 // loop_header
    %s10 = sphi 0, %s14
    %p11 = scmp.ge.s32.totalorder %s10, 4
    %s17 = sphi 0, %s29
    %s18 = sphi 0, %s25
    %s19 = sphi 0, %s17
    %s20 = sphi 0, %s18
    %s21 = sphi 0, %s19
    %s22 = sphi 0, %s20
    %s34 = sphi 0, %s36
    %s37 = sphi 0, %s34
    %s38 = sphi 0, %s37
    %s54 = sphi 0, %s38
    %s60 = sphi 0, %s62
    %s63 = sphi 0, %s60
    %s64 = sphi 0, %s63
    %s80 = sphi 0, %s64
    %s86 = sphi 0, %s88
    %s89 = sphi 0, %s86
    %s90 = sphi 0, %s89
    %s106 = sphi 0, %s90
    %s112 = sphi 0, %s114
    %s115 = sphi 0, %s112
    %s116 = sphi 0, %s115
    %s132 = sphi 0, %s116
    %s140 = sphi 0, %s142
    %s143 = sphi 0, %s140
    %s144 = sphi 0, %s143
    %s160 = sphi 0, %s144
  $region4: #{bottleneck_pallas.4} parent=0 // loop_header_branch
    %13 = sbr.rel (%p11) target = $region8
  $region5: #{bottleneck_pallas.4} parent=0 // loop_body
    %s15 = ssub.s32 %s10, 1
    %s16 = ssub.s32 %s10, 2
    %s23 = sadd.s32 1, %s18
    %p24 = scmp.ge.s32.totalorder %s23, 1
    %s25 = scalar_select %p24, 0, %s23
    %s26 = sadd.s32 1, %s17
    %s27 = scalar_select %p24, %s26, %s17
    %p28 = scmp.ge.s32.totalorder %s27, 2
    %s29 = scalar_select %p28, 0, %s27
    %s30 = ssub.s32 %s17, %s29
    %s31 = ssub.s32 %s18, %s25
    %s32 = sor.u32 %s30, %s31
    %p33 = scmp.eq.s32.totalorder %s32, 0
    %s35 = sadd.s32 %s34, 1
    %s36 = scalar_select %p33, %s34, %s35
    %p39 = pneg %p33
    %p40 = scmp.eq.s32.totalorder %s10, 1
    %p41 = por %p39, %p40
    %p42 = scmp.ne.s32.totalorder %s34, %s37
    %p43 = scmp.eq.s32.totalorder %s10, 0
    %p44 = por %p42, %p43
    %p45 = scmp.ne.s32.totalorder %s34, %s37
    %p46 = scmp.eq.s32.totalorder %s15, 1
    %p47 = por %p45, %p46
    %p48 = scmp.ne.s32.totalorder %s37, %s38
    %p49 = scmp.eq.s32.totalorder %s15, 0
    %p50 = por %p48, %p49
    %p51 = scmp.ne.s32.totalorder %s37, %s38
    %p52 = scmp.eq.s32.totalorder %s16, 1
    %p53 = por %p51, %p52
    %p55 = scmp.ne.s32.totalorder %s38, %s54
    %p56 = scmp.eq.s32.totalorder %s16, 0
    %p57 = por %p55, %p56
    %s58 = ssub.s32 %s18, %s25
    %p59 = scmp.eq.s32.totalorder %s58, 0
    %s61 = sadd.s32 %s60, 1
    %s62 = scalar_select %p59, %s60, %s61
    %p65 = pneg %p59
    %p66 = scmp.eq.s32.totalorder %s10, 1
    %p67 = por %p65, %p66
    %p68 = scmp.ne.s32.totalorder %s60, %s63
    %p69 = scmp.eq.s32.totalorder %s10, 0
    %p70 = por %p68, %p69
    %p71 = scmp.ne.s32.totalorder %s60, %s63
    %p72 = scmp.eq.s32.totalorder %s15, 1
    %p73 = por %p71, %p72
    %p74 = scmp.ne.s32.totalorder %s63, %s64
    %p75 = scmp.eq.s32.totalorder %s15, 0
    %p76 = por %p74, %p75
    %p77 = scmp.ne.s32.totalorder %s63, %s64
    %p78 = scmp.eq.s32.totalorder %s16, 1
    %p79 = por %p77, %p78
    %p81 = scmp.ne.s32.totalorder %s64, %s80
    %p82 = scmp.eq.s32.totalorder %s16, 0
    %p83 = por %p81, %p82
    %s84 = ssub.s32 %s18, %s25
    %p85 = scmp.eq.s32.totalorder %s84, 0
    %s87 = sadd.s32 %s86, 1
    %s88 = scalar_select %p85, %s86, %s87
    %p91 = pneg %p85
    %p92 = scmp.eq.s32.totalorder %s10, 1
    %p93 = por %p91, %p92
    %p94 = scmp.ne.s32.totalorder %s86, %s89
    %p95 = scmp.eq.s32.totalorder %s10, 0
    %p96 = por %p94, %p95
    %p97 = scmp.ne.s32.totalorder %s86, %s89
    %p98 = scmp.eq.s32.totalorder %s15, 1
    %p99 = por %p97, %p98
    %p100 = scmp.ne.s32.totalorder %s89, %s90
    %p101 = scmp.eq.s32.totalorder %s15, 0
    %p102 = por %p100, %p101
    %p103 = scmp.ne.s32.totalorder %s89, %s90
    %p104 = scmp.eq.s32.totalorder %s16, 1
    %p105 = por %p103, %p104
    %p107 = scmp.ne.s32.totalorder %s90, %s106
    %p108 = scmp.eq.s32.totalorder %s16, 0
    %p109 = por %p107, %p108
    %s110 = ssub.s32 %s18, %s25
    %p111 = scmp.eq.s32.totalorder %s110, 0
    %s113 = sadd.s32 %s112, 1
    %s114 = scalar_select %p111, %s112, %s113
    %p117 = pneg %p111
    %p118 = scmp.eq.s32.totalorder %s10, 1
    %p119 = por %p117, %p118
    %p120 = scmp.ne.s32.totalorder %s112, %s115
    %p121 = scmp.eq.s32.totalorder %s10, 0
    %p122 = por %p120, %p121
    %p123 = scmp.ne.s32.totalorder %s112, %s115
    %p124 = scmp.eq.s32.totalorder %s15, 1
    %p125 = por %p123, %p124
    %p126 = scmp.ne.s32.totalorder %s115, %s116
    %p127 = scmp.eq.s32.totalorder %s15, 0
    %p128 = por %p126, %p127
    %p129 = scmp.ne.s32.totalorder %s115, %s116
    %p130 = scmp.eq.s32.totalorder %s16, 1
    %p131 = por %p129, %p130
    %p133 = scmp.ne.s32.totalorder %s116, %s132
    %p134 = scmp.eq.s32.totalorder %s16, 0
    %p135 = por %p133, %p134
    %s136 = ssub.s32 %s17, %s29
    %s137 = ssub.s32 %s18, %s25
    %s138 = sor.u32 %s136, %s137
    %p139 = scmp.eq.s32.totalorder %s138, 0
    %s141 = sadd.s32 %s140, 1
    %s142 = scalar_select %p139, %s140, %s141
    %p145 = pneg %p139
    %p146 = scmp.eq.s32.totalorder %s10, 1
    %p147 = por %p145, %p146
    %p148 = scmp.ne.s32.totalorder %s140, %s143
    %p149 = scmp.eq.s32.totalorder %s10, 0
    %p150 = por %p148, %p149
    %p151 = scmp.ne.s32.totalorder %s140, %s143
    %p152 = scmp.eq.s32.totalorder %s15, 1
    %p153 = por %p151, %p152
    %p154 = scmp.ne.s32.totalorder %s143, %s144
    %p155 = scmp.eq.s32.totalorder %s15, 0
    %p156 = por %p154, %p155
    %p157 = scmp.ne.s32.totalorder %s143, %s144
    %p158 = scmp.eq.s32.totalorder %s16, 1
    %p159 = por %p157, %p158
    %p161 = scmp.ne.s32.totalorder %s144, %s160
    %p162 = scmp.eq.s32.totalorder %s16, 0
    %p163 = por %p161, %p162
    %p164 = scmp.le.s32.totalorder 1, %s10
    %p165 = scmp.lt.s32.totalorder %s10, 3
    %p166 = pnand %p164, %p165
    %p167 = pneg %p166
    // Predicated region
    $region9: #{bottleneck_pallas.4} parent=5 // pred_check
      _
    $region10: #{bottleneck_pallas.4} parent=5 // pred_check_branch
      %169 = sbr.rel (%p166) target = $region12
    $region11: #{bottleneck_pallas.4} parent=5 // pred_region
      %s170 = ssub.s32 %s10, 1
      // Predicated region
      $region13: #{bottleneck_pallas.4} parent=11 // pred_check
        %p171 = pneg %p76
      $region14: #{bottleneck_pallas.4} parent=11 // pred_check_branch
        %173 = sbr.rel (%p171) target = $region16
      $region15: #{bottleneck_pallas.4} parent=11 // pred_region
        %s174 = smul.u32 144, %s20
        %p175 = scmp.lt.s32.totalorder %s174, 143
        %s176 = scalar_select %p175, %s174, 143
        %s177 = smul.addr %s176, 8
        %s178 = scalar_lea.vmem %s1, %s177
        %s179 = smul.u32 144, %s20
      $region16: #{bottleneck_pallas.4} parent=11 // pred_fallthru
        _
      // Predicated region
      $region17: #{bottleneck_pallas.4} parent=11 // pred_check
        %p180 = pneg %p102
      $region18: #{bottleneck_pallas.4} parent=11 // pred_check_branch
        %182 = sbr.rel (%p180) target = $region20
      $region19: #{bottleneck_pallas.4} parent=11 // pred_region
        %p183 = scmp.lt.s32.totalorder %s20, 0
        %s184 = scalar_select %p183, %s20, 0
        %s185 = scalar_lea.vmem %s2, %s184
      $region20: #{bottleneck_pallas.4} parent=11 // pred_fallthru
        _
      // Predicated region
      $region21: #{bottleneck_pallas.4} parent=11 // pred_check
        %p186 = pneg %p128
      $region22: #{bottleneck_pallas.4} parent=11 // pred_check_branch
        %188 = sbr.rel (%p186) target = $region24
      $region23: #{bottleneck_pallas.4} parent=11 // pred_region
        %p189 = scmp.lt.s32.totalorder %s20, 0
        %s190 = scalar_select %p189, %s20, 0
        %s191 = scalar_lea.vmem %s3, %s190
      $region24: #{bottleneck_pallas.4} parent=11 // pred_fallthru
        _
    $region12: #{bottleneck_pallas.4} parent=5 // pred_fallthru
      _
    %p192 = scmp.lt.s32.totalorder %s10, 2
    // Predicated region
    $region25: #{bottleneck_pallas.4} parent=5 // pred_check
      %p193 = pneg %p192
    $region26: #{bottleneck_pallas.4} parent=5 // pred_check_branch
      %195 = sbr.rel (%p193) target = $region28
    $region27: #{bottleneck_pallas.4} parent=5 // pred_region
      // Predicated region
      $region29: #{bottleneck_pallas.4} parent=27 // pred_check
        %p196 = pneg %p44
      $region30: #{bottleneck_pallas.4} parent=27 // pred_check_branch
        %198 = sbr.rel (%p196) target = $region32
      $region31: #{bottleneck_pallas.4} parent=27 // pred_region
        %p199 = scmp.lt.s32.totalorder %s17, 1
        %s200 = scalar_select %p199, %s17, 1
        %p201 = scmp.lt.s32.totalorder %s18, 0
        %s202 = scalar_select %p201, %s18, 0
        %s203 = smul.addr %s200, 20
        %s204 = sadd.s32 %s202, %s203
        %s205 = smul.addr %s204, 8
        %s206 = scalar_lea.vmem %s0, %s205
      $region32: #{bottleneck_pallas.4} parent=27 // pred_fallthru
        _
    $region28: #{bottleneck_pallas.4} parent=5 // pred_fallthru
      _
    %p207 = scmp.le.s32.totalorder 1, %s10
    %p208 = scmp.lt.s32.totalorder %s10, 3
    %p209 = pnand %p207, %p208
    %p210 = pneg %p209
    // Predicated region
    $region33: #{bottleneck_pallas.4} parent=5 // pred_check
      _
    $region34: #{bottleneck_pallas.4} parent=5 // pred_check_branch
      %212 = sbr.rel (%p209) target = $region36
    $region35: #{bottleneck_pallas.4} parent=5 // pred_region
      %s213 = ssub.s32 %s10, 1
      %p214 = scmp.lt.s32.totalorder %s19, 1
      %s215 = scalar_select %p214, %s19, 1
      %p216 = scmp.lt.s32.totalorder %s20, 0
      %s217 = scalar_select %p216, %s20, 0
      %s218 = smul.addr %s215, 20
      %s219 = sadd.s32 %s217, %s218
      %s220 = smul.addr %s219, 8
      %s221 = scalar_lea.vmem %s0, %s220
      %p222 = pneg %p50
      %p223 = pneg %p47
      %s224 = smul.u32 144, %s20
      %p225 = scmp.lt.s32.totalorder %s224, 143
      %s226 = scalar_select %p225, %s224, 143
      %s227 = smul.addr %s226, 8
      %s228 = scalar_lea.vmem %s1, %s227
      %p229 = pneg %p76
      %p230 = pneg %p73
      %p231 = scmp.lt.s32.totalorder %s20, 0
      %s232 = scalar_select %p231, %s20, 0
      %s233 = scalar_lea.vmem %s2, %s232
      %p234 = pneg %p102
      %p235 = pneg %p99
      %p236 = scmp.lt.s32.totalorder %s20, 0
      %s237 = scalar_select %p236, %s20, 0
      %s238 = scalar_lea.vmem %s3, %s237
      %p239 = pneg %p128
      %p240 = pneg %p125
      %p241 = pneg %p156
      %p242 = pneg %p153
      %p243 = scmp.lt.s32.totalorder %s19, 1
      %s244 = scalar_select %p243, %s19, 1
      %p245 = scmp.lt.s32.totalorder %s20, 0
      %s246 = scalar_select %p245, %s20, 0
      %s247 = smul.addr %s244, 4
      %s248 = sadd.s32 %s246, %s247
      %s249 = smul.addr %s248, 4
      %s250 = scalar_lea.vmem %s4, %s249
      %p251 = scmp.lt.s32.totalorder %s19, 1
      %s252 = scalar_select %p251, %s19, 1
      %p253 = scmp.lt.s32.totalorder %s20, 0
      %s254 = scalar_select %p253, %s20, 0
      %s255 = smul.addr %s252, 20
      %s256 = sadd.s32 %s254, %s255
      %s257 = smul.addr %s256, 8
      %s258 = scalar_lea.vmem %s0, %s257
      %s259 = smul.u32 144, %s20
      %p260 = scmp.lt.s32.totalorder %s259, 143
      %s261 = scalar_select %p260, %s259, 143
      %s262 = smul.addr %s261, 8
      %s263 = scalar_lea.vmem %s1, %s262
      %s264 = smul.u32 144, %s20
      %p265 = scmp.lt.s32.totalorder %s20, 0
      %s266 = scalar_select %p265, %s20, 0
      %s267 = scalar_lea.vmem %s2, %s266
      %p268 = scmp.lt.s32.totalorder %s20, 0
      %s269 = scalar_select %p268, %s20, 0
      %s270 = scalar_lea.vmem %s3, %s269
      %p271 = scmp.lt.s32.totalorder %s19, 1
      %s272 = scalar_select %p271, %s19, 1
      %p273 = scmp.lt.s32.totalorder %s20, 0
      %s274 = scalar_select %p273, %s20, 0
      %s275 = smul.addr %s272, 4
      %s276 = sadd.s32 %s274, %s275
      %s277 = smul.addr %s276, 4
      %s278 = scalar_lea.vmem %s4, %s277
      %v279 = vld [vmem:[%s258] sm:$0xf]
      %v280 = vld [vmem:[%s258 + $0x8] sm:$0xf]
      %v281 = vld [vmem:[%s258 + $0x10] sm:$0xf]
      %v282 = vld [vmem:[%s258 + $0x18] sm:$0xf]
      %v283 = vld [vmem:[%s263] sm:$0xff]
      %v284 = vld [vmem:[%s263 + $0x8] sm:$0xff]
      %v285 = vld [vmem:[%s263 + $0x10] sm:$0xff]
      %v286 = vld [vmem:[%s263 + $0x18] sm:$0xff]
      %v287 = vld [vmem:[%s263 + $0x20] sm:$0xff]
      %v288 = vld [vmem:[%s263 + $0x28] sm:$0xff]
      %v289 = vld [vmem:[%s263 + $0x30] sm:$0xff]
      %v290 = vld [vmem:[%s263 + $0x38] sm:$0xff]
      %v291 = vld [vmem:[%s263 + $0x40] sm:$0xff]
      %v292 = vld [vmem:[%s263 + $0x48] sm:$0xff]
      %v293 = vld [vmem:[%s263 + $0x50] sm:$0xff]
      %v294 = vld [vmem:[%s263 + $0x58] sm:$0xff]
      %v295 = vld [vmem:[%s263 + $0x60] sm:$0xff]
      %v296 = vld [vmem:[%s263 + $0x68] sm:$0xff]
      %v297 = vld [vmem:[%s263 + $0x70] sm:$0xff]
      %v298 = vld [vmem:[%s263 + $0x78] sm:$0xff]
      %s299 = scalar_lea.vmem %s258, 40
      %v300 = vld [vmem:[%s299] sm:$0xf]
      %v301 = vld [vmem:[%s299 + $0x8] sm:$0xf]
      %v302 = vld [vmem:[%s299 + $0x10] sm:$0xf]
      %v303 = vld [vmem:[%s299 + $0x18] sm:$0xf]
      %v304 = vld [vmem:[%s263 + $0x80] sm:$0xff]
      %v305 = vld [vmem:[%s263 + $0x88] sm:$0xff]
      %v306 = vld [vmem:[%s263 + $0x90] sm:$0xff]
      %v307 = vld [vmem:[%s263 + $0x98] sm:$0xff]
      %v308 = vld [vmem:[%s263 + $0xa0] sm:$0xff]
      %v309 = vld [vmem:[%s263 + $0xa8] sm:$0xff]
      %v310 = vld [vmem:[%s263 + $0xb0] sm:$0xff]
      %v311 = vld [vmem:[%s263 + $0xb8] sm:$0xff]
      %v312 = vld [vmem:[%s263 + $0xc0] sm:$0xff]
      %v313 = vld [vmem:[%s263 + $0xc8] sm:$0xff]
      %v314 = vld [vmem:[%s263 + $0xd0] sm:$0xff]
      %v315 = vld [vmem:[%s263 + $0xd8] sm:$0xff]
      %v316 = vld [vmem:[%s263 + $0xe0] sm:$0xff]
      %v317 = vld [vmem:[%s263 + $0xe8] sm:$0xff]
      %v318 = vld [vmem:[%s263 + $0xf0] sm:$0xff]
      %v319 = vld [vmem:[%s263 + $0xf8] sm:$0xff]
      %324 = vst [vmem:[#allocation1] ss:$2 sm:$0xff] %v300
      %s325 = scalar_lea.vmem [#allocation1], 1
      %326 = vst [vmem:[%s325] ss:$2 sm:$0xff] %v301
      %s327 = scalar_lea.vmem [#allocation1], 16
      %328 = vst [vmem:[%s327] ss:$2 sm:$0xff] %v302
      %s329 = scalar_lea.vmem [#allocation1], 17
      %330 = vst [vmem:[%s329] ss:$2 sm:$0xff] %v303
      %v331 = vld.sshfl [vmem:[#allocation1] sm:$0xff pattern:$0x75316420]
      %v332 = vld.sshfl [vmem:[#allocation1 + $0x10] sm:$0xff pattern:$0x75316420]
      %v335 = vand.u32 %v319, 4294901760
      %336 = vmatpush.msra.mxu0 %v335
      %v337 = vand.u32 %v318, 4294901760
      %338 = vmatpush.msra.mxu0 %v337
      %v339 = vand.u32 %v317, 4294901760
      %340 = vmatpush.msra.mxu0 %v339
      %v341 = vand.u32 %v316, 4294901760
      %342 = vmatpush.msra.mxu0 %v341
      %v343 = vand.u32 %v315, 4294901760
      %344 = vmatpush.msra.mxu0 %v343
      %v345 = vand.u32 %v314, 4294901760
      %346 = vmatpush.msra.mxu0 %v345
      %v347 = vand.u32 %v313, 4294901760
      %348 = vmatpush.msra.mxu0 %v347
      %v349 = vand.u32 %v312, 4294901760
      %350 = vmatpush.msra.mxu0 %v349
      %v351 = vand.u32 %v311, 4294901760
      %352 = vmatpush.msra.mxu0 %v351
      %v353 = vand.u32 %v310, 4294901760
      %354 = vmatpush.msra.mxu0 %v353
      %v355 = vand.u32 %v309, 4294901760
      %356 = vmatpush.msra.mxu0 %v355
      %v357 = vand.u32 %v308, 4294901760
      %358 = vmatpush.msra.mxu0 %v357
      %v359 = vand.u32 %v307, 4294901760
      %360 = vmatpush.msra.mxu0 %v359
      %v361 = vand.u32 %v306, 4294901760
      %362 = vmatpush.msra.mxu0 %v361
      %v363 = vand.u32 %v305, 4294901760
      %364 = vmatpush.msra.mxu0 %v363
      %v365 = vand.u32 %v304, 4294901760
      %366 = vmatpush.msra.mxu0 %v365
      %v367 = vand.u32 %v331, 4294901760
      %v368 = vsub.f32 %v331, %v367
      %v369 = vand.u32 %v368, 4294901760
      %v370 = vsub.f32 %v368, %v369
      %v371 = vand.u32 %v370, 4294901760
      %372 = vmatmul.f32.gmra.mxu0 %v371
      %v373 = vpop.f32.mrf.mxu0
      %v374 = vadd.f32 0.0, %v373
      %v375 = vand.u32 %v332, 4294901760
      %v376 = vsub.f32 %v332, %v375
      %v377 = vand.u32 %v376, 4294901760
      %v378 = vsub.f32 %v376, %v377
      %v379 = vand.u32 %v378, 4294901760
      %380 = vmatmul.f32.gmra.mxu0 %v379
      %v381 = vpop.f32.mrf.mxu0
      %v382 = vadd.f32 0.0, %v381
      %383 = vdwg.mxu0
      %v384 = vand.u32 %v319, 4294901760
      %v385 = vsub.f32 %v319, %v384
      %v386 = vand.u32 %v385, 4294901760
      %v387 = vsub.f32 %v385, %v386
      %v388 = vand.u32 %v387, 4294901760
      %389 = vmatpush.msra.mxu0 %v388
      %v390 = vand.u32 %v318, 4294901760
      %v391 = vsub.f32 %v318, %v390
      %v392 = vand.u32 %v391, 4294901760
      %v393 = vsub.f32 %v391, %v392
      %v394 = vand.u32 %v393, 4294901760
      %395 = vmatpush.msra.mxu0 %v394
      %v396 = vand.u32 %v317, 4294901760
      %v397 = vsub.f32 %v317, %v396
      %v398 = vand.u32 %v397, 4294901760
      %v399 = vsub.f32 %v397, %v398
      %v400 = vand.u32 %v399, 4294901760
      %401 = vmatpush.msra.mxu0 %v400
      %v402 = vand.u32 %v316, 4294901760
      %v403 = vsub.f32 %v316, %v402
      %v404 = vand.u32 %v403, 4294901760
      %v405 = vsub.f32 %v403, %v404
      %v406 = vand.u32 %v405, 4294901760
      %407 = vmatpush.msra.mxu0 %v406
      %v408 = vand.u32 %v315, 4294901760
      %v409 = vsub.f32 %v315, %v408
      %v410 = vand.u32 %v409, 4294901760
      %v411 = vsub.f32 %v409, %v410
      %v412 = vand.u32 %v411, 4294901760
      %413 = vmatpush.msra.mxu0 %v412
      %v414 = vand.u32 %v314, 4294901760
      %v415 = vsub.f32 %v314, %v414
      %v416 = vand.u32 %v415, 4294901760
      %v417 = vsub.f32 %v415, %v416
      %v418 = vand.u32 %v417, 4294901760
      %419 = vmatpush.msra.mxu0 %v418
      %v420 = vand.u32 %v313, 4294901760
      %v421 = vsub.f32 %v313, %v420
      %v422 = vand.u32 %v421, 4294901760
      %v423 = vsub.f32 %v421, %v422
      %v424 = vand.u32 %v423, 4294901760
      %425 = vmatpush.msra.mxu0 %v424
      %v426 = vand.u32 %v312, 4294901760
      %v427 = vsub.f32 %v312, %v426
      %v428 = vand.u32 %v427, 4294901760
      %v429 = vsub.f32 %v427, %v428
      %v430 = vand.u32 %v429, 4294901760
      %431 = vmatpush.msra.mxu0 %v430
      %v432 = vand.u32 %v311, 4294901760
      %v433 = vsub.f32 %v311, %v432
      %v434 = vand.u32 %v433, 4294901760
      %v435 = vsub.f32 %v433, %v434
      %v436 = vand.u32 %v435, 4294901760
      %437 = vmatpush.msra.mxu0 %v436
      %v438 = vand.u32 %v310, 4294901760
      %v439 = vsub.f32 %v310, %v438
      %v440 = vand.u32 %v439, 4294901760
      %v441 = vsub.f32 %v439, %v440
      %v442 = vand.u32 %v441, 4294901760
      %443 = vmatpush.msra.mxu0 %v442
      %v444 = vand.u32 %v309, 4294901760
      %v445 = vsub.f32 %v309, %v444
      %v446 = vand.u32 %v445, 4294901760
      %v447 = vsub.f32 %v445, %v446
      %v448 = vand.u32 %v447, 4294901760
      %449 = vmatpush.msra.mxu0 %v448
      %v450 = vand.u32 %v308, 4294901760
      %v451 = vsub.f32 %v308, %v450
      %v452 = vand.u32 %v451, 4294901760
      %v453 = vsub.f32 %v451, %v452
      %v454 = vand.u32 %v453, 4294901760
      %455 = vmatpush.msra.mxu0 %v454
      %v456 = vand.u32 %v307, 4294901760
      %v457 = vsub.f32 %v307, %v456
      %v458 = vand.u32 %v457, 4294901760
      %v459 = vsub.f32 %v457, %v458
      %v460 = vand.u32 %v459, 4294901760
      %461 = vmatpush.msra.mxu0 %v460
      %v462 = vand.u32 %v306, 4294901760
      %v463 = vsub.f32 %v306, %v462
      %v464 = vand.u32 %v463, 4294901760
      %v465 = vsub.f32 %v463, %v464
      %v466 = vand.u32 %v465, 4294901760
      %467 = vmatpush.msra.mxu0 %v466
      %v468 = vand.u32 %v305, 4294901760
      %v469 = vsub.f32 %v305, %v468
      %v470 = vand.u32 %v469, 4294901760
      %v471 = vsub.f32 %v469, %v470
      %v472 = vand.u32 %v471, 4294901760
      %473 = vmatpush.msra.mxu0 %v472
      %v474 = vand.u32 %v304, 4294901760
      %v475 = vsub.f32 %v304, %v474
      %v476 = vand.u32 %v475, 4294901760
      %v477 = vsub.f32 %v475, %v476
      %v478 = vand.u32 %v477, 4294901760
      %479 = vmatpush.msra.mxu0 %v478
      %v480 = vand.u32 %v331, 4294901760
      %481 = vmatmul.f32.gmra.mxu0 %v480
      %v482 = vpop.f32.mrf.mxu0
      %v483 = vadd.f32 %v374, %v482
      %v484 = vand.u32 %v332, 4294901760
      %485 = vmatmul.f32.gmra.mxu0 %v484
      %v486 = vpop.f32.mrf.mxu0
      %v487 = vadd.f32 %v382, %v486
      %488 = vdwg.mxu0
      %v489 = vand.u32 %v319, 4294901760
      %v490 = vsub.f32 %v319, %v489
      %491 = vmatpush.msra.mxu0 %v490
      %v492 = vand.u32 %v318, 4294901760
      %v493 = vsub.f32 %v318, %v492
      %494 = vmatpush.msra.mxu0 %v493
      %v495 = vand.u32 %v317, 4294901760
      %v496 = vsub.f32 %v317, %v495
      %497 = vmatpush.msra.mxu0 %v496
      %v498 = vand.u32 %v316, 4294901760
      %v499 = vsub.f32 %v316, %v498
      %500 = vmatpush.msra.mxu0 %v499
      %v501 = vand.u32 %v315, 4294901760
      %v502 = vsub.f32 %v315, %v501
      %503 = vmatpush.msra.mxu0 %v502
      %v504 = vand.u32 %v314, 4294901760
      %v505 = vsub.f32 %v314, %v504
      %506 = vmatpush.msra.mxu0 %v505
      %v507 = vand.u32 %v313, 4294901760
      %v508 = vsub.f32 %v313, %v507
      %509 = vmatpush.msra.mxu0 %v508
      %v510 = vand.u32 %v312, 4294901760
      %v511 = vsub.f32 %v312, %v510
      %512 = vmatpush.msra.mxu0 %v511
      %v513 = vand.u32 %v311, 4294901760
      %v514 = vsub.f32 %v311, %v513
      %515 = vmatpush.msra.mxu0 %v514
      %v516 = vand.u32 %v310, 4294901760
      %v517 = vsub.f32 %v310, %v516
      %518 = vmatpush.msra.mxu0 %v517
      %v519 = vand.u32 %v309, 4294901760
      %v520 = vsub.f32 %v309, %v519
      %521 = vmatpush.msra.mxu0 %v520
      %v522 = vand.u32 %v308, 4294901760
      %v523 = vsub.f32 %v308, %v522
      %524 = vmatpush.msra.mxu0 %v523
      %v525 = vand.u32 %v307, 4294901760
      %v526 = vsub.f32 %v307, %v525
      %527 = vmatpush.msra.mxu0 %v526
      %v528 = vand.u32 %v306, 4294901760
      %v529 = vsub.f32 %v306, %v528
      %530 = vmatpush.msra.mxu0 %v529
      %v531 = vand.u32 %v305, 4294901760
      %v532 = vsub.f32 %v305, %v531
      %533 = vmatpush.msra.mxu0 %v532
      %v534 = vand.u32 %v304, 4294901760
      %v535 = vsub.f32 %v304, %v534
      %536 = vmatpush.msra.mxu0 %v535
      %v537 = vand.u32 %v331, 4294901760
      %v538 = vsub.f32 %v331, %v537
      %539 = vmatmul.f32.gmra.mxu0 %v538
      %v540 = vpop.f32.mrf.mxu0
      %v541 = vadd.f32 %v483, %v540
      %v542 = vand.u32 %v332, 4294901760
      %v543 = vsub.f32 %v332, %v542
      %544 = vmatmul.f32.gmra.mxu0 %v543
      %v545 = vpop.f32.mrf.mxu0
      %v546 = vadd.f32 %v487, %v545
      %547 = vdwg.mxu0
      %v548 = vand.u32 %v319, 4294901760
      %549 = vmatpush.msra.mxu0 %v548
      %v550 = vand.u32 %v318, 4294901760
      %551 = vmatpush.msra.mxu0 %v550
      %v552 = vand.u32 %v317, 4294901760
      %553 = vmatpush.msra.mxu0 %v552
      %v554 = vand.u32 %v316, 4294901760
      %555 = vmatpush.msra.mxu0 %v554
      %v556 = vand.u32 %v315, 4294901760
      %557 = vmatpush.msra.mxu0 %v556
      %v558 = vand.u32 %v314, 4294901760
      %559 = vmatpush.msra.mxu0 %v558
      %v560 = vand.u32 %v313, 4294901760
      %561 = vmatpush.msra.mxu0 %v560
      %v562 = vand.u32 %v312, 4294901760
      %563 = vmatpush.msra.mxu0 %v562
      %v564 = vand.u32 %v311, 4294901760
      %565 = vmatpush.msra.mxu0 %v564
      %v566 = vand.u32 %v310, 4294901760
      %567 = vmatpush.msra.mxu0 %v566
      %v568 = vand.u32 %v309, 4294901760
      %569 = vmatpush.msra.mxu0 %v568
      %v570 = vand.u32 %v308, 4294901760
      %571 = vmatpush.msra.mxu0 %v570
      %v572 = vand.u32 %v307, 4294901760
      %573 = vmatpush.msra.mxu0 %v572
      %v574 = vand.u32 %v306, 4294901760
      %575 = vmatpush.msra.mxu0 %v574
      %v576 = vand.u32 %v305, 4294901760
      %577 = vmatpush.msra.mxu0 %v576
      %v578 = vand.u32 %v304, 4294901760
      %579 = vmatpush.msra.mxu0 %v578
      %v580 = vand.u32 %v331, 4294901760
      %v581 = vsub.f32 %v331, %v580
      %v582 = vand.u32 %v581, 4294901760
      %583 = vmatmul.f32.gmra.mxu0 %v582
      %v584 = vpop.f32.mrf.mxu0
      %v585 = vadd.f32 %v541, %v584
      %v586 = vand.u32 %v332, 4294901760
      %v587 = vsub.f32 %v332, %v586
      %v588 = vand.u32 %v587, 4294901760
      %589 = vmatmul.f32.gmra.mxu0 %v588
      %v590 = vpop.f32.mrf.mxu0
      %v591 = vadd.f32 %v546, %v590
      %592 = vdwg.mxu0
      %v593 = vand.u32 %v319, 4294901760
      %v594 = vsub.f32 %v319, %v593
      %v595 = vand.u32 %v594, 4294901760
      %596 = vmatpush.msra.mxu0 %v595
      %v597 = vand.u32 %v318, 4294901760
      %v598 = vsub.f32 %v318, %v597
      %v599 = vand.u32 %v598, 4294901760
      %600 = vmatpush.msra.mxu0 %v599
      %v601 = vand.u32 %v317, 4294901760
      %v602 = vsub.f32 %v317, %v601
      %v603 = vand.u32 %v602, 4294901760
      %604 = vmatpush.msra.mxu0 %v603
      %v605 = vand.u32 %v316, 4294901760
      %v606 = vsub.f32 %v316, %v605
      %v607 = vand.u32 %v606, 4294901760
      %608 = vmatpush.msra.mxu0 %v607
      %v609 = vand.u32 %v315, 4294901760
      %v610 = vsub.f32 %v315, %v609
      %v611 = vand.u32 %v610, 4294901760
      %612 = vmatpush.msra.mxu0 %v611
      %v613 = vand.u32 %v314, 4294901760
      %v614 = vsub.f32 %v314, %v613
      %v615 = vand.u32 %v614, 4294901760
      %616 = vmatpush.msra.mxu0 %v615
      %v617 = vand.u32 %v313, 4294901760
      %v618 = vsub.f32 %v313, %v617
      %v619 = vand.u32 %v618, 4294901760
      %620 = vmatpush.msra.mxu0 %v619
      %v621 = vand.u32 %v312, 4294901760
      %v622 = vsub.f32 %v312, %v621
      %v623 = vand.u32 %v622, 4294901760
      %624 = vmatpush.msra.mxu0 %v623
      %v625 = vand.u32 %v311, 4294901760
      %v626 = vsub.f32 %v311, %v625
      %v627 = vand.u32 %v626, 4294901760
      %628 = vmatpush.msra.mxu0 %v627
      %v629 = vand.u32 %v310, 4294901760
      %v630 = vsub.f32 %v310, %v629
      %v631 = vand.u32 %v630, 4294901760
      %632 = vmatpush.msra.mxu0 %v631
      %v633 = vand.u32 %v309, 4294901760
      %v634 = vsub.f32 %v309, %v633
      %v635 = vand.u32 %v634, 4294901760
      %636 = vmatpush.msra.mxu0 %v635
      %v637 = vand.u32 %v308, 4294901760
      %v638 = vsub.f32 %v308, %v637
      %v639 = vand.u32 %v638, 4294901760
      %640 = vmatpush.msra.mxu0 %v639
      %v641 = vand.u32 %v307, 4294901760
      %v642 = vsub.f32 %v307, %v641
      %v643 = vand.u32 %v642, 4294901760
      %644 = vmatpush.msra.mxu0 %v643
      %v645 = vand.u32 %v306, 4294901760
      %v646 = vsub.f32 %v306, %v645
      %v647 = vand.u32 %v646, 4294901760
      %648 = vmatpush.msra.mxu0 %v647
      %v649 = vand.u32 %v305, 4294901760
      %v650 = vsub.f32 %v305, %v649
      %v651 = vand.u32 %v650, 4294901760
      %652 = vmatpush.msra.mxu0 %v651
      %v653 = vand.u32 %v304, 4294901760
      %v654 = vsub.f32 %v304, %v653
      %v655 = vand.u32 %v654, 4294901760
      %656 = vmatpush.msra.mxu0 %v655
      %v657 = vand.u32 %v331, 4294901760
      %658 = vmatmul.f32.gmra.mxu0 %v657
      %v659 = vpop.f32.mrf.mxu0
      %v660 = vadd.f32 %v585, %v659
      %v661 = vand.u32 %v332, 4294901760
      %662 = vmatmul.f32.gmra.mxu0 %v661
      %v663 = vpop.f32.mrf.mxu0
      %v664 = vadd.f32 %v591, %v663
      %665 = vdwg.mxu0
      %v666 = vand.u32 %v319, 4294901760
      %667 = vmatpush.msra.mxu0 %v666
      %v668 = vand.u32 %v318, 4294901760
      %669 = vmatpush.msra.mxu0 %v668
      %v670 = vand.u32 %v317, 4294901760
      %671 = vmatpush.msra.mxu0 %v670
      %v672 = vand.u32 %v316, 4294901760
      %673 = vmatpush.msra.mxu0 %v672
      %v674 = vand.u32 %v315, 4294901760
      %675 = vmatpush.msra.mxu0 %v674
      %v676 = vand.u32 %v314, 4294901760
      %677 = vmatpush.msra.mxu0 %v676
      %v678 = vand.u32 %v313, 4294901760
      %679 = vmatpush.msra.mxu0 %v678
      %v680 = vand.u32 %v312, 4294901760
      %681 = vmatpush.msra.mxu0 %v680
      %v682 = vand.u32 %v311, 4294901760
      %683 = vmatpush.msra.mxu0 %v682
      %v684 = vand.u32 %v310, 4294901760
      %685 = vmatpush.msra.mxu0 %v684
      %v686 = vand.u32 %v309, 4294901760
      %687 = vmatpush.msra.mxu0 %v686
      %v688 = vand.u32 %v308, 4294901760
      %689 = vmatpush.msra.mxu0 %v688
      %v690 = vand.u32 %v307, 4294901760
      %691 = vmatpush.msra.mxu0 %v690
      %v692 = vand.u32 %v306, 4294901760
      %693 = vmatpush.msra.mxu0 %v692
      %v694 = vand.u32 %v305, 4294901760
      %695 = vmatpush.msra.mxu0 %v694
      %v696 = vand.u32 %v304, 4294901760
      %697 = vmatpush.msra.mxu0 %v696
      %v698 = vand.u32 %v331, 4294901760
      %699 = vmatmul.f32.gmra.mxu0 %v698
      %v700 = vpop.f32.mrf.mxu0
      %v701 = vadd.f32 %v660, %v700
      %v702 = vand.u32 %v332, 4294901760
      %703 = vmatmul.f32.gmra.mxu0 %v702
      %v704 = vpop.f32.mrf.mxu0
      %v705 = vadd.f32 %v664, %v704
      %706 = vdwg.mxu0
      %711 = vst [vmem:[#allocation1] ss:$2 sm:$0xff] %v279
      %s712 = scalar_lea.vmem [#allocation1], 1
      %713 = vst [vmem:[%s712] ss:$2 sm:$0xff] %v280
      %s714 = scalar_lea.vmem [#allocation1], 16
      %715 = vst [vmem:[%s714] ss:$2 sm:$0xff] %v281
      %s716 = scalar_lea.vmem [#allocation1], 17
      %717 = vst [vmem:[%s716] ss:$2 sm:$0xff] %v282
      %v718 = vld.sshfl [vmem:[#allocation1] sm:$0xff pattern:$0x75316420]
      %v719 = vld.sshfl [vmem:[#allocation1 + $0x10] sm:$0xff pattern:$0x75316420]
      %v722 = vand.u32 %v298, 4294901760
      %723 = vmatpush.msra.mxu0 %v722
      %v724 = vand.u32 %v297, 4294901760
      %725 = vmatpush.msra.mxu0 %v724
      %v726 = vand.u32 %v296, 4294901760
      %727 = vmatpush.msra.mxu0 %v726
      %v728 = vand.u32 %v295, 4294901760
      %729 = vmatpush.msra.mxu0 %v728
      %v730 = vand.u32 %v294, 4294901760
      %731 = vmatpush.msra.mxu0 %v730
      %v732 = vand.u32 %v293, 4294901760
      %733 = vmatpush.msra.mxu0 %v732
      %v734 = vand.u32 %v292, 4294901760
      %735 = vmatpush.msra.mxu0 %v734
      %v736 = vand.u32 %v291, 4294901760
      %737 = vmatpush.msra.mxu0 %v736
      %v738 = vand.u32 %v290, 4294901760
      %739 = vmatpush.msra.mxu0 %v738
      %v740 = vand.u32 %v289, 4294901760
      %741 = vmatpush.msra.mxu0 %v740
      %v742 = vand.u32 %v288, 4294901760
      %743 = vmatpush.msra.mxu0 %v742
      %v744 = vand.u32 %v287, 4294901760
      %745 = vmatpush.msra.mxu0 %v744
      %v746 = vand.u32 %v286, 4294901760
      %747 = vmatpush.msra.mxu0 %v746
      %v748 = vand.u32 %v285, 4294901760
      %749 = vmatpush.msra.mxu0 %v748
      %v750 = vand.u32 %v284, 4294901760
      %751 = vmatpush.msra.mxu0 %v750
      %v752 = vand.u32 %v283, 4294901760
      %753 = vmatpush.msra.mxu0 %v752
      %v754 = vand.u32 %v718, 4294901760
      %v755 = vsub.f32 %v718, %v754
      %v756 = vand.u32 %v755, 4294901760
      %v757 = vsub.f32 %v755, %v756
      %v758 = vand.u32 %v757, 4294901760
      %759 = vmatmul.f32.gmra.mxu0 %v758
      %v760 = vpop.f32.mrf.mxu0
      %v761 = vadd.f32 %v701, %v760
      %v762 = vand.u32 %v719, 4294901760
      %v763 = vsub.f32 %v719, %v762
      %v764 = vand.u32 %v763, 4294901760
      %v765 = vsub.f32 %v763, %v764
      %v766 = vand.u32 %v765, 4294901760
      %767 = vmatmul.f32.gmra.mxu0 %v766
      %v768 = vpop.f32.mrf.mxu0
      %v769 = vadd.f32 %v705, %v768
      %770 = vdwg.mxu0
      %v771 = vand.u32 %v298, 4294901760
      %v772 = vsub.f32 %v298, %v771
      %v773 = vand.u32 %v772, 4294901760
      %v774 = vsub.f32 %v772, %v773
      %v775 = vand.u32 %v774, 4294901760
      %776 = vmatpush.msra.mxu0 %v775
      %v777 = vand.u32 %v297, 4294901760
      %v778 = vsub.f32 %v297, %v777
      %v779 = vand.u32 %v778, 4294901760
      %v780 = vsub.f32 %v778, %v779
      %v781 = vand.u32 %v780, 4294901760
      %782 = vmatpush.msra.mxu0 %v781
      %v783 = vand.u32 %v296, 4294901760
      %v784 = vsub.f32 %v296, %v783
      %v785 = vand.u32 %v784, 4294901760
      %v786 = vsub.f32 %v784, %v785
      %v787 = vand.u32 %v786, 4294901760
      %788 = vmatpush.msra.mxu0 %v787
      %v789 = vand.u32 %v295, 4294901760
      %v790 = vsub.f32 %v295, %v789
      %v791 = vand.u32 %v790, 4294901760
      %v792 = vsub.f32 %v790, %v791
      %v793 = vand.u32 %v792, 4294901760
      %794 = vmatpush.msra.mxu0 %v793
      %v795 = vand.u32 %v294, 4294901760
      %v796 = vsub.f32 %v294, %v795
      %v797 = vand.u32 %v796, 4294901760
      %v798 = vsub.f32 %v796, %v797
      %v799 = vand.u32 %v798, 4294901760
      %800 = vmatpush.msra.mxu0 %v799
      %v801 = vand.u32 %v293, 4294901760
      %v802 = vsub.f32 %v293, %v801
      %v803 = vand.u32 %v802, 4294901760
      %v804 = vsub.f32 %v802, %v803
      %v805 = vand.u32 %v804, 4294901760
      %806 = vmatpush.msra.mxu0 %v805
      %v807 = vand.u32 %v292, 4294901760
      %v808 = vsub.f32 %v292, %v807
      %v809 = vand.u32 %v808, 4294901760
      %v810 = vsub.f32 %v808, %v809
      %v811 = vand.u32 %v810, 4294901760
      %812 = vmatpush.msra.mxu0 %v811
      %v813 = vand.u32 %v291, 4294901760
      %v814 = vsub.f32 %v291, %v813
      %v815 = vand.u32 %v814, 4294901760
      %v816 = vsub.f32 %v814, %v815
      %v817 = vand.u32 %v816, 4294901760
      %818 = vmatpush.msra.mxu0 %v817
      %v819 = vand.u32 %v290, 4294901760
      %v820 = vsub.f32 %v290, %v819
      %v821 = vand.u32 %v820, 4294901760
      %v822 = vsub.f32 %v820, %v821
      %v823 = vand.u32 %v822, 4294901760
      %824 = vmatpush.msra.mxu0 %v823
      %v825 = vand.u32 %v289, 4294901760
      %v826 = vsub.f32 %v289, %v825
      %v827 = vand.u32 %v826, 4294901760
      %v828 = vsub.f32 %v826, %v827
      %v829 = vand.u32 %v828, 4294901760
      %830 = vmatpush.msra.mxu0 %v829
      %v831 = vand.u32 %v288, 4294901760
      %v832 = vsub.f32 %v288, %v831
      %v833 = vand.u32 %v832, 4294901760
      %v834 = vsub.f32 %v832, %v833
      %v835 = vand.u32 %v834, 4294901760
      %836 = vmatpush.msra.mxu0 %v835
      %v837 = vand.u32 %v287, 4294901760
      %v838 = vsub.f32 %v287, %v837
      %v839 = vand.u32 %v838, 4294901760
      %v840 = vsub.f32 %v838, %v839
      %v841 = vand.u32 %v840, 4294901760
      %842 = vmatpush.msra.mxu0 %v841
      %v843 = vand.u32 %v286, 4294901760
      %v844 = vsub.f32 %v286, %v843
      %v845 = vand.u32 %v844, 4294901760
      %v846 = vsub.f32 %v844, %v845
      %v847 = vand.u32 %v846, 4294901760
      %848 = vmatpush.msra.mxu0 %v847
      %v849 = vand.u32 %v285, 4294901760
      %v850 = vsub.f32 %v285, %v849
      %v851 = vand.u32 %v850, 4294901760
      %v852 = vsub.f32 %v850, %v851
      %v853 = vand.u32 %v852, 4294901760
      %854 = vmatpush.msra.mxu0 %v853
      %v855 = vand.u32 %v284, 4294901760
      %v856 = vsub.f32 %v284, %v855
      %v857 = vand.u32 %v856, 4294901760
      %v858 = vsub.f32 %v856, %v857
      %v859 = vand.u32 %v858, 4294901760
      %860 = vmatpush.msra.mxu0 %v859
      %v861 = vand.u32 %v283, 4294901760
      %v862 = vsub.f32 %v283, %v861
      %v863 = vand.u32 %v862, 4294901760
      %v864 = vsub.f32 %v862, %v863
      %v865 = vand.u32 %v864, 4294901760
      %866 = vmatpush.msra.mxu0 %v865
      %v867 = vand.u32 %v718, 4294901760
      %868 = vmatmul.f32.gmra.mxu0 %v867
      %v869 = vpop.f32.mrf.mxu0
      %v870 = vadd.f32 %v761, %v869
      %v871 = vand.u32 %v719, 4294901760
      %872 = vmatmul.f32.gmra.mxu0 %v871
      %v873 = vpop.f32.mrf.mxu0
      %v874 = vadd.f32 %v769, %v873
      %875 = vdwg.mxu0
      %v876 = vand.u32 %v298, 4294901760
      %v877 = vsub.f32 %v298, %v876
      %878 = vmatpush.msra.mxu0 %v877
      %v879 = vand.u32 %v297, 4294901760
      %v880 = vsub.f32 %v297, %v879
      %881 = vmatpush.msra.mxu0 %v880
      %v882 = vand.u32 %v296, 4294901760
      %v883 = vsub.f32 %v296, %v882
      %884 = vmatpush.msra.mxu0 %v883
      %v885 = vand.u32 %v295, 4294901760
      %v886 = vsub.f32 %v295, %v885
      %887 = vmatpush.msra.mxu0 %v886
      %v888 = vand.u32 %v294, 4294901760
      %v889 = vsub.f32 %v294, %v888
      %890 = vmatpush.msra.mxu0 %v889
      %v891 = vand.u32 %v293, 4294901760
      %v892 = vsub.f32 %v293, %v891
      %893 = vmatpush.msra.mxu0 %v892
      %v894 = vand.u32 %v292, 4294901760
      %v895 = vsub.f32 %v292, %v894
      %896 = vmatpush.msra.mxu0 %v895
      %v897 = vand.u32 %v291, 4294901760
      %v898 = vsub.f32 %v291, %v897
      %899 = vmatpush.msra.mxu0 %v898
      %v900 = vand.u32 %v290, 4294901760
      %v901 = vsub.f32 %v290, %v900
      %902 = vmatpush.msra.mxu0 %v901
      %v903 = vand.u32 %v289, 4294901760
      %v904 = vsub.f32 %v289, %v903
      %905 = vmatpush.msra.mxu0 %v904
      %v906 = vand.u32 %v288, 4294901760
      %v907 = vsub.f32 %v288, %v906
      %908 = vmatpush.msra.mxu0 %v907
      %v909 = vand.u32 %v287, 4294901760
      %v910 = vsub.f32 %v287, %v909
      %911 = vmatpush.msra.mxu0 %v910
      %v912 = vand.u32 %v286, 4294901760
      %v913 = vsub.f32 %v286, %v912
      %914 = vmatpush.msra.mxu0 %v913
      %v915 = vand.u32 %v285, 4294901760
      %v916 = vsub.f32 %v285, %v915
      %917 = vmatpush.msra.mxu0 %v916
      %v918 = vand.u32 %v284, 4294901760
      %v919 = vsub.f32 %v284, %v918
      %920 = vmatpush.msra.mxu0 %v919
      %v921 = vand.u32 %v283, 4294901760
      %v922 = vsub.f32 %v283, %v921
      %923 = vmatpush.msra.mxu0 %v922
      %v924 = vand.u32 %v718, 4294901760
      %v925 = vsub.f32 %v718, %v924
      %926 = vmatmul.f32.gmra.mxu0 %v925
      %v927 = vpop.f32.mrf.mxu0
      %v928 = vadd.f32 %v870, %v927
      %v929 = vand.u32 %v719, 4294901760
      %v930 = vsub.f32 %v719, %v929
      %931 = vmatmul.f32.gmra.mxu0 %v930
      %v932 = vpop.f32.mrf.mxu0
      %v933 = vadd.f32 %v874, %v932
      %934 = vdwg.mxu0
      %v935 = vand.u32 %v298, 4294901760
      %936 = vmatpush.msra.mxu0 %v935
      %v937 = vand.u32 %v297, 4294901760
      %938 = vmatpush.msra.mxu0 %v937
      %v939 = vand.u32 %v296, 4294901760
      %940 = vmatpush.msra.mxu0 %v939
      %v941 = vand.u32 %v295, 4294901760
      %942 = vmatpush.msra.mxu0 %v941
      %v943 = vand.u32 %v294, 4294901760
      %944 = vmatpush.msra.mxu0 %v943
      %v945 = vand.u32 %v293, 4294901760
      %946 = vmatpush.msra.mxu0 %v945
      %v947 = vand.u32 %v292, 4294901760
      %948 = vmatpush.msra.mxu0 %v947
      %v949 = vand.u32 %v291, 4294901760
      %950 = vmatpush.msra.mxu0 %v949
      %v951 = vand.u32 %v290, 4294901760
      %952 = vmatpush.msra.mxu0 %v951
      %v953 = vand.u32 %v289, 4294901760
      %954 = vmatpush.msra.mxu0 %v953
      %v955 = vand.u32 %v288, 4294901760
      %956 = vmatpush.msra.mxu0 %v955
      %v957 = vand.u32 %v287, 4294901760
      %958 = vmatpush.msra.mxu0 %v957
      %v959 = vand.u32 %v286, 4294901760
      %960 = vmatpush.msra.mxu0 %v959
      %v961 = vand.u32 %v285, 4294901760
      %962 = vmatpush.msra.mxu0 %v961
      %v963 = vand.u32 %v284, 4294901760
      %964 = vmatpush.msra.mxu0 %v963
      %v965 = vand.u32 %v283, 4294901760
      %966 = vmatpush.msra.mxu0 %v965
      %v967 = vand.u32 %v718, 4294901760
      %v968 = vsub.f32 %v718, %v967
      %v969 = vand.u32 %v968, 4294901760
      %970 = vmatmul.f32.gmra.mxu0 %v969
      %v971 = vpop.f32.mrf.mxu0
      %v972 = vadd.f32 %v928, %v971
      %v973 = vand.u32 %v719, 4294901760
      %v974 = vsub.f32 %v719, %v973
      %v975 = vand.u32 %v974, 4294901760
      %976 = vmatmul.f32.gmra.mxu0 %v975
      %v977 = vpop.f32.mrf.mxu0
      %v978 = vadd.f32 %v933, %v977
      %979 = vdwg.mxu0
      %v980 = vand.u32 %v298, 4294901760
      %v981 = vsub.f32 %v298, %v980
      %v982 = vand.u32 %v981, 4294901760
      %983 = vmatpush.msra.mxu0 %v982
      %v984 = vand.u32 %v297, 4294901760
      %v985 = vsub.f32 %v297, %v984
      %v986 = vand.u32 %v985, 4294901760
      %987 = vmatpush.msra.mxu0 %v986
      %v988 = vand.u32 %v296, 4294901760
      %v989 = vsub.f32 %v296, %v988
      %v990 = vand.u32 %v989, 4294901760
      %991 = vmatpush.msra.mxu0 %v990
      %v992 = vand.u32 %v295, 4294901760
      %v993 = vsub.f32 %v295, %v992
      %v994 = vand.u32 %v993, 4294901760
      %995 = vmatpush.msra.mxu0 %v994
      %v996 = vand.u32 %v294, 4294901760
      %v997 = vsub.f32 %v294, %v996
      %v998 = vand.u32 %v997, 4294901760
      %999 = vmatpush.msra.mxu0 %v998
      %v1000 = vand.u32 %v293, 4294901760
      %v1001 = vsub.f32 %v293, %v1000
      %v1002 = vand.u32 %v1001, 4294901760
      %1003 = vmatpush.msra.mxu0 %v1002
      %v1004 = vand.u32 %v292, 4294901760
      %v1005 = vsub.f32 %v292, %v1004
      %v1006 = vand.u32 %v1005, 4294901760
      %1007 = vmatpush.msra.mxu0 %v1006
      %v1008 = vand.u32 %v291, 4294901760
      %v1009 = vsub.f32 %v291, %v1008
      %v1010 = vand.u32 %v1009, 4294901760
      %1011 = vmatpush.msra.mxu0 %v1010
      %v1012 = vand.u32 %v290, 4294901760
      %v1013 = vsub.f32 %v290, %v1012
      %v1014 = vand.u32 %v1013, 4294901760
      %1015 = vmatpush.msra.mxu0 %v1014
      %v1016 = vand.u32 %v289, 4294901760
      %v1017 = vsub.f32 %v289, %v1016
      %v1018 = vand.u32 %v1017, 4294901760
      %1019 = vmatpush.msra.mxu0 %v1018
      %v1020 = vand.u32 %v288, 4294901760
      %v1021 = vsub.f32 %v288, %v1020
      %v1022 = vand.u32 %v1021, 4294901760
      %1023 = vmatpush.msra.mxu0 %v1022
      %v1024 = vand.u32 %v287, 4294901760
      %v1025 = vsub.f32 %v287, %v1024
      %v1026 = vand.u32 %v1025, 4294901760
      %1027 = vmatpush.msra.mxu0 %v1026
      %v1028 = vand.u32 %v286, 4294901760
      %v1029 = vsub.f32 %v286, %v1028
      %v1030 = vand.u32 %v1029, 4294901760
      %1031 = vmatpush.msra.mxu0 %v1030
      %v1032 = vand.u32 %v285, 4294901760
      %v1033 = vsub.f32 %v285, %v1032
      %v1034 = vand.u32 %v1033, 4294901760
      %1035 = vmatpush.msra.mxu0 %v1034
      %v1036 = vand.u32 %v284, 4294901760
      %v1037 = vsub.f32 %v284, %v1036
      %v1038 = vand.u32 %v1037, 4294901760
      %1039 = vmatpush.msra.mxu0 %v1038
      %v1040 = vand.u32 %v283, 4294901760
      %v1041 = vsub.f32 %v283, %v1040
      %v1042 = vand.u32 %v1041, 4294901760
      %1043 = vmatpush.msra.mxu0 %v1042
      %v1044 = vand.u32 %v718, 4294901760
      %1045 = vmatmul.f32.gmra.mxu0 %v1044
      %v1046 = vpop.f32.mrf.mxu0
      %v1047 = vadd.f32 %v972, %v1046
      %v1048 = vand.u32 %v719, 4294901760
      %1049 = vmatmul.f32.gmra.mxu0 %v1048
      %v1050 = vpop.f32.mrf.mxu0
      %v1051 = vadd.f32 %v978, %v1050
      %1052 = vdwg.mxu0
      %v1053 = vand.u32 %v298, 4294901760
      %1054 = vmatpush.msra.mxu0 %v1053
      %v1055 = vand.u32 %v297, 4294901760
      %1056 = vmatpush.msra.mxu0 %v1055
      %v1057 = vand.u32 %v296, 4294901760
      %1058 = vmatpush.msra.mxu0 %v1057
      %v1059 = vand.u32 %v295, 4294901760
      %1060 = vmatpush.msra.mxu0 %v1059
      %v1061 = vand.u32 %v294, 4294901760
      %1062 = vmatpush.msra.mxu0 %v1061
      %v1063 = vand.u32 %v293, 4294901760
      %1064 = vmatpush.msra.mxu0 %v1063
      %v1065 = vand.u32 %v292, 4294901760
      %1066 = vmatpush.msra.mxu0 %v1065
      %v1067 = vand.u32 %v291, 4294901760
      %1068 = vmatpush.msra.mxu0 %v1067
      %v1069 = vand.u32 %v290, 4294901760
      %1070 = vmatpush.msra.mxu0 %v1069
      %v1071 = vand.u32 %v289, 4294901760
      %1072 = vmatpush.msra.mxu0 %v1071
      %v1073 = vand.u32 %v288, 4294901760
      %1074 = vmatpush.msra.mxu0 %v1073
      %v1075 = vand.u32 %v287, 4294901760
      %1076 = vmatpush.msra.mxu0 %v1075
      %v1077 = vand.u32 %v286, 4294901760
      %1078 = vmatpush.msra.mxu0 %v1077
      %v1079 = vand.u32 %v285, 4294901760
      %1080 = vmatpush.msra.mxu0 %v1079
      %v1081 = vand.u32 %v284, 4294901760
      %1082 = vmatpush.msra.mxu0 %v1081
      %v1083 = vand.u32 %v283, 4294901760
      %1084 = vmatpush.msra.mxu0 %v1083
      %v1085 = vand.u32 %v718, 4294901760
      %1086 = vmatmul.f32.gmra.mxu0 %v1085
      %v1087 = vpop.f32.mrf.mxu0
      %v1088 = vadd.f32 %v1047, %v1087
      %v1089 = vand.u32 %v719, 4294901760
      %1090 = vmatmul.f32.gmra.mxu0 %v1089
      %v1091 = vpop.f32.mrf.mxu0
      %v1092 = vadd.f32 %v1051, %v1091
      %1093 = vdwg.mxu0
      %v1094 = vld [vmem:[%s258 + $0x1] sm:$0xf]
      %v1095 = vld [vmem:[%s258 + $0x9] sm:$0xf]
      %v1096 = vld [vmem:[%s258 + $0x11] sm:$0xf]
      %v1097 = vld [vmem:[%s258 + $0x19] sm:$0xf]
      %v1098 = vld [vmem:[%s263 + $0x100] sm:$0xff]
      %v1099 = vld [vmem:[%s263 + $0x108] sm:$0xff]
      %v1100 = vld [vmem:[%s263 + $0x110] sm:$0xff]
      %v1101 = vld [vmem:[%s263 + $0x118] sm:$0xff]
      %v1102 = vld [vmem:[%s263 + $0x120] sm:$0xff]
      %v1103 = vld [vmem:[%s263 + $0x128] sm:$0xff]
      %v1104 = vld [vmem:[%s263 + $0x130] sm:$0xff]
      %v1105 = vld [vmem:[%s263 + $0x138] sm:$0xff]
      %v1106 = vld [vmem:[%s263 + $0x140] sm:$0xff]
      %v1107 = vld [vmem:[%s263 + $0x148] sm:$0xff]
      %v1108 = vld [vmem:[%s263 + $0x150] sm:$0xff]
      %v1109 = vld [vmem:[%s263 + $0x158] sm:$0xff]
      %v1110 = vld [vmem:[%s263 + $0x160] sm:$0xff]
      %v1111 = vld [vmem:[%s263 + $0x168] sm:$0xff]
      %v1112 = vld [vmem:[%s263 + $0x170] sm:$0xff]
      %v1113 = vld [vmem:[%s263 + $0x178] sm:$0xff]
      %1118 = vst [vmem:[#allocation1] ss:$2 sm:$0xff] %v1094
      %s1119 = scalar_lea.vmem [#allocation1], 1
      %1120 = vst [vmem:[%s1119] ss:$2 sm:$0xff] %v1095
      %s1121 = scalar_lea.vmem [#allocation1], 16
      %1122 = vst [vmem:[%s1121] ss:$2 sm:$0xff] %v1096
      %s1123 = scalar_lea.vmem [#allocation1], 17
      %1124 = vst [vmem:[%s1123] ss:$2 sm:$0xff] %v1097
      %v1125 = vld.sshfl [vmem:[#allocation1] sm:$0xff pattern:$0x75316420]
      %v1126 = vld.sshfl [vmem:[#allocation1 + $0x10] sm:$0xff pattern:$0x75316420]
      %v1129 = vand.u32 %v1113, 4294901760
      %1130 = vmatpush.msra.mxu0 %v1129
      %v1131 = vand.u32 %v1112, 4294901760
      %1132 = vmatpush.msra.mxu0 %v1131
      %v1133 = vand.u32 %v1111, 4294901760
      %1134 = vmatpush.msra.mxu0 %v1133
      %v1135 = vand.u32 %v1110, 4294901760
      %1136 = vmatpush.msra.mxu0 %v1135
      %v1137 = vand.u32 %v1109, 4294901760
      %1138 = vmatpush.msra.mxu0 %v1137
      %v1139 = vand.u32 %v1108, 4294901760
      %1140 = vmatpush.msra.mxu0 %v1139
      %v1141 = vand.u32 %v1107, 4294901760
      %1142 = vmatpush.msra.mxu0 %v1141
      %v1143 = vand.u32 %v1106, 4294901760
      %1144 = vmatpush.msra.mxu0 %v1143
      %v1145 = vand.u32 %v1105, 4294901760
      %1146 = vmatpush.msra.mxu0 %v1145
      %v1147 = vand.u32 %v1104, 4294901760
      %1148 = vmatpush.msra.mxu0 %v1147
      %v1149 = vand.u32 %v1103, 4294901760
      %1150 = vmatpush.msra.mxu0 %v1149
      %v1151 = vand.u32 %v1102, 4294901760
      %1152 = vmatpush.msra.mxu0 %v1151
      %v1153 = vand.u32 %v1101, 4294901760
      %1154 = vmatpush.msra.mxu0 %v1153
      %v1155 = vand.u32 %v1100, 4294901760
      %1156 = vmatpush.msra.mxu0 %v1155
      %v1157 = vand.u32 %v1099, 4294901760
      %1158 = vmatpush.msra.mxu0 %v1157
      %v1159 = vand.u32 %v1098, 4294901760
      %1160 = vmatpush.msra.mxu0 %v1159
      %v1161 = vand.u32 %v1125, 4294901760
      %v1162 = vsub.f32 %v1125, %v1161
      %v1163 = vand.u32 %v1162, 4294901760
      %v1164 = vsub.f32 %v1162, %v1163
      %v1165 = vand.u32 %v1164, 4294901760
      %1166 = vmatmul.f32.gmra.mxu0 %v1165
      %v1167 = vpop.f32.mrf.mxu0
      %v1168 = vadd.f32 0.0, %v1167
      %v1169 = vand.u32 %v1126, 4294901760
      %v1170 = vsub.f32 %v1126, %v1169
      %v1171 = vand.u32 %v1170, 4294901760
      %v1172 = vsub.f32 %v1170, %v1171
      %v1173 = vand.u32 %v1172, 4294901760
      %1174 = vmatmul.f32.gmra.mxu0 %v1173
      %v1175 = vpop.f32.mrf.mxu0
      %v1176 = vadd.f32 0.0, %v1175
      %1177 = vdwg.mxu0
      %v1178 = vand.u32 %v1113, 4294901760
      %v1179 = vsub.f32 %v1113, %v1178
      %v1180 = vand.u32 %v1179, 4294901760
      %v1181 = vsub.f32 %v1179, %v1180
      %v1182 = vand.u32 %v1181, 4294901760
      %1183 = vmatpush.msra.mxu0 %v1182
      %v1184 = vand.u32 %v1112, 4294901760
      %v1185 = vsub.f32 %v1112, %v1184
      %v1186 = vand.u32 %v1185, 4294901760
      %v1187 = vsub.f32 %v1185, %v1186
      %v1188 = vand.u32 %v1187, 4294901760
      %1189 = vmatpush.msra.mxu0 %v1188
      %v1190 = vand.u32 %v1111, 4294901760
      %v1191 = vsub.f32 %v1111, %v1190
      %v1192 = vand.u32 %v1191, 4294901760
      %v1193 = vsub.f32 %v1191, %v1192
      %v1194 = vand.u32 %v1193, 4294901760
      %1195 = vmatpush.msra.mxu0 %v1194
      %v1196 = vand.u32 %v1110, 4294901760
      %v1197 = vsub.f32 %v1110, %v1196
      %v1198 = vand.u32 %v1197, 4294901760
      %v1199 = vsub.f32 %v1197, %v1198
      %v1200 = vand.u32 %v1199, 4294901760
      %1201 = vmatpush.msra.mxu0 %v1200
      %v1202 = vand.u32 %v1109, 4294901760
      %v1203 = vsub.f32 %v1109, %v1202
      %v1204 = vand.u32 %v1203, 4294901760
      %v1205 = vsub.f32 %v1203, %v1204
      %v1206 = vand.u32 %v1205, 4294901760
      %1207 = vmatpush.msra.mxu0 %v1206
      %v1208 = vand.u32 %v1108, 4294901760
      %v1209 = vsub.f32 %v1108, %v1208
      %v1210 = vand.u32 %v1209, 4294901760
      %v1211 = vsub.f32 %v1209, %v1210
      %v1212 = vand.u32 %v1211, 4294901760
      %1213 = vmatpush.msra.mxu0 %v1212
      %v1214 = vand.u32 %v1107, 4294901760
      %v1215 = vsub.f32 %v1107, %v1214
      %v1216 = vand.u32 %v1215, 4294901760
      %v1217 = vsub.f32 %v1215, %v1216
      %v1218 = vand.u32 %v1217, 4294901760
      %1219 = vmatpush.msra.mxu0 %v1218
      %v1220 = vand.u32 %v1106, 4294901760
      %v1221 = vsub.f32 %v1106, %v1220
      %v1222 = vand.u32 %v1221, 4294901760
      %v1223 = vsub.f32 %v1221, %v1222
      %v1224 = vand.u32 %v1223, 4294901760
      %1225 = vmatpush.msra.mxu0 %v1224
      %v1226 = vand.u32 %v1105, 4294901760
      %v1227 = vsub.f32 %v1105, %v1226
      %v1228 = vand.u32 %v1227, 4294901760
      %v1229 = vsub.f32 %v1227, %v1228
      %v1230 = vand.u32 %v1229, 4294901760
      %1231 = vmatpush.msra.mxu0 %v1230
      %v1232 = vand.u32 %v1104, 4294901760
      %v1233 = vsub.f32 %v1104, %v1232
      %v1234 = vand.u32 %v1233, 4294901760
      %v1235 = vsub.f32 %v1233, %v1234
      %v1236 = vand.u32 %v1235, 4294901760
      %1237 = vmatpush.msra.mxu0 %v1236
      %v1238 = vand.u32 %v1103, 4294901760
      %v1239 = vsub.f32 %v1103, %v1238
      %v1240 = vand.u32 %v1239, 4294901760
      %v1241 = vsub.f32 %v1239, %v1240
      %v1242 = vand.u32 %v1241, 4294901760
      %1243 = vmatpush.msra.mxu0 %v1242
      %v1244 = vand.u32 %v1102, 4294901760
      %v1245 = vsub.f32 %v1102, %v1244
      %v1246 = vand.u32 %v1245, 4294901760
      %v1247 = vsub.f32 %v1245, %v1246
      %v1248 = vand.u32 %v1247, 4294901760
      %1249 = vmatpush.msra.mxu0 %v1248
      %v1250 = vand.u32 %v1101, 4294901760
      %v1251 = vsub.f32 %v1101, %v1250
      %v1252 = vand.u32 %v1251, 4294901760
      %v1253 = vsub.f32 %v1251, %v1252
      %v1254 = vand.u32 %v1253, 4294901760
      %1255 = vmatpush.msra.mxu0 %v1254
      %v1256 = vand.u32 %v1100, 4294901760
      %v1257 = vsub.f32 %v1100, %v1256
      %v1258 = vand.u32 %v1257, 4294901760
      %v1259 = vsub.f32 %v1257, %v1258
      %v1260 = vand.u32 %v1259, 4294901760
      %1261 = vmatpush.msra.mxu0 %v1260
      %v1262 = vand.u32 %v1099, 4294901760
      %v1263 = vsub.f32 %v1099, %v1262
      %v1264 = vand.u32 %v1263, 4294901760
      %v1265 = vsub.f32 %v1263, %v1264
      %v1266 = vand.u32 %v1265, 4294901760
      %1267 = vmatpush.msra.mxu0 %v1266
      %v1268 = vand.u32 %v1098, 4294901760
      %v1269 = vsub.f32 %v1098, %v1268
      %v1270 = vand.u32 %v1269, 4294901760
      %v1271 = vsub.f32 %v1269, %v1270
      %v1272 = vand.u32 %v1271, 4294901760
      %1273 = vmatpush.msra.mxu0 %v1272
      %v1274 = vand.u32 %v1125, 4294901760
      %1275 = vmatmul.f32.gmra.mxu0 %v1274
      %v1276 = vpop.f32.mrf.mxu0
      %v1277 = vadd.f32 %v1168, %v1276
      %v1278 = vand.u32 %v1126, 4294901760
      %1279 = vmatmul.f32.gmra.mxu0 %v1278
      %v1280 = vpop.f32.mrf.mxu0
      %v1281 = vadd.f32 %v1176, %v1280
      %1282 = vdwg.mxu0
      %v1283 = vand.u32 %v1113, 4294901760
      %v1284 = vsub.f32 %v1113, %v1283
      %1285 = vmatpush.msra.mxu0 %v1284
      %v1286 = vand.u32 %v1112, 4294901760
      %v1287 = vsub.f32 %v1112, %v1286
      %1288 = vmatpush.msra.mxu0 %v1287
      %v1289 = vand.u32 %v1111, 4294901760
      %v1290 = vsub.f32 %v1111, %v1289
      %1291 = vmatpush.msra.mxu0 %v1290
      %v1292 = vand.u32 %v1110, 4294901760
      %v1293 = vsub.f32 %v1110, %v1292
      %1294 = vmatpush.msra.mxu0 %v1293
      %v1295 = vand.u32 %v1109, 4294901760
      %v1296 = vsub.f32 %v1109, %v1295
      %1297 = vmatpush.msra.mxu0 %v1296
      %v1298 = vand.u32 %v1108, 4294901760
      %v1299 = vsub.f32 %v1108, %v1298
      %1300 = vmatpush.msra.mxu0 %v1299
      %v1301 = vand.u32 %v1107, 4294901760
      %v1302 = vsub.f32 %v1107, %v1301
      %1303 = vmatpush.msra.mxu0 %v1302
      %v1304 = vand.u32 %v1106, 4294901760
      %v1305 = vsub.f32 %v1106, %v1304
      %1306 = vmatpush.msra.mxu0 %v1305
      %v1307 = vand.u32 %v1105, 4294901760
      %v1308 = vsub.f32 %v1105, %v1307
      %1309 = vmatpush.msra.mxu0 %v1308
      %v1310 = vand.u32 %v1104, 4294901760
      %v1311 = vsub.f32 %v1104, %v1310
      %1312 = vmatpush.msra.mxu0 %v1311
      %v1313 = vand.u32 %v1103, 4294901760
      %v1314 = vsub.f32 %v1103, %v1313
      %1315 = vmatpush.msra.mxu0 %v1314
      %v1316 = vand.u32 %v1102, 4294901760
      %v1317 = vsub.f32 %v1102, %v1316
      %1318 = vmatpush.msra.mxu0 %v1317
      %v1319 = vand.u32 %v1101, 4294901760
      %v1320 = vsub.f32 %v1101, %v1319
      %1321 = vmatpush.msra.mxu0 %v1320
      %v1322 = vand.u32 %v1100, 4294901760
      %v1323 = vsub.f32 %v1100, %v1322
      %1324 = vmatpush.msra.mxu0 %v1323
      %v1325 = vand.u32 %v1099, 4294901760
      %v1326 = vsub.f32 %v1099, %v1325
      %1327 = vmatpush.msra.mxu0 %v1326
      %v1328 = vand.u32 %v1098, 4294901760
      %v1329 = vsub.f32 %v1098, %v1328
      %1330 = vmatpush.msra.mxu0 %v1329
      %v1331 = vand.u32 %v1125, 4294901760
      %v1332 = vsub.f32 %v1125, %v1331
      %1333 = vmatmul.f32.gmra.mxu0 %v1332
      %v1334 = vpop.f32.mrf.mxu0
      %v1335 = vadd.f32 %v1277, %v1334
      %v1336 = vand.u32 %v1126, 4294901760
      %v1337 = vsub.f32 %v1126, %v1336
      %1338 = vmatmul.f32.gmra.mxu0 %v1337
      %v1339 = vpop.f32.mrf.mxu0
      %v1340 = vadd.f32 %v1281, %v1339
      %1341 = vdwg.mxu0
      %v1342 = vand.u32 %v1113, 4294901760
      %1343 = vmatpush.msra.mxu0 %v1342
      %v1344 = vand.u32 %v1112, 4294901760
      %1345 = vmatpush.msra.mxu0 %v1344
      %v1346 = vand.u32 %v1111, 4294901760
      %1347 = vmatpush.msra.mxu0 %v1346
      %v1348 = vand.u32 %v1110, 4294901760
      %1349 = vmatpush.msra.mxu0 %v1348
      %v1350 = vand.u32 %v1109, 4294901760
      %1351 = vmatpush.msra.mxu0 %v1350
      %v1352 = vand.u32 %v1108, 4294901760
      %1353 = vmatpush.msra.mxu0 %v1352
      %v1354 = vand.u32 %v1107, 4294901760
      %1355 = vmatpush.msra.mxu0 %v1354
      %v1356 = vand.u32 %v1106, 4294901760
      %1357 = vmatpush.msra.mxu0 %v1356
      %v1358 = vand.u32 %v1105, 4294901760
      %1359 = vmatpush.msra.mxu0 %v1358
      %v1360 = vand.u32 %v1104, 4294901760
      %1361 = vmatpush.msra.mxu0 %v1360
      %v1362 = vand.u32 %v1103, 4294901760
      %1363 = vmatpush.msra.mxu0 %v1362
      %v1364 = vand.u32 %v1102, 4294901760
      %1365 = vmatpush.msra.mxu0 %v1364
      %v1366 = vand.u32 %v1101, 4294901760
      %1367 = vmatpush.msra.mxu0 %v1366
      %v1368 = vand.u32 %v1100, 4294901760
      %1369 = vmatpush.msra.mxu0 %v1368
      %v1370 = vand.u32 %v1099, 4294901760
      %1371 = vmatpush.msra.mxu0 %v1370
      %v1372 = vand.u32 %v1098, 4294901760
      %1373 = vmatpush.msra.mxu0 %v1372
      %v1374 = vand.u32 %v1125, 4294901760
      %v1375 = vsub.f32 %v1125, %v1374
      %v1376 = vand.u32 %v1375, 4294901760
      %1377 = vmatmul.f32.gmra.mxu0 %v1376
      %v1378 = vpop.f32.mrf.mxu0
      %v1379 = vadd.f32 %v1335, %v1378
      %v1380 = vand.u32 %v1126, 4294901760
      %v1381 = vsub.f32 %v1126, %v1380
      %v1382 = vand.u32 %v1381, 4294901760
      %1383 = vmatmul.f32.gmra.mxu0 %v1382
      %v1384 = vpop.f32.mrf.mxu0
      %v1385 = vadd.f32 %v1340, %v1384
      %1386 = vdwg.mxu0
      %v1387 = vand.u32 %v1113, 4294901760
      %v1388 = vsub.f32 %v1113, %v1387
      %v1389 = vand.u32 %v1388, 4294901760
      %1390 = vmatpush.msra.mxu0 %v1389
      %v1391 = vand.u32 %v1112, 4294901760
      %v1392 = vsub.f32 %v1112, %v1391
      %v1393 = vand.u32 %v1392, 4294901760
      %1394 = vmatpush.msra.mxu0 %v1393
      %v1395 = vand.u32 %v1111, 4294901760
      %v1396 = vsub.f32 %v1111, %v1395
      %v1397 = vand.u32 %v1396, 4294901760
      %1398 = vmatpush.msra.mxu0 %v1397
      %v1399 = vand.u32 %v1110, 4294901760
      %v1400 = vsub.f32 %v1110, %v1399
      %v1401 = vand.u32 %v1400, 4294901760
      %1402 = vmatpush.msra.mxu0 %v1401
      %v1403 = vand.u32 %v1109, 4294901760
      %v1404 = vsub.f32 %v1109, %v1403
      %v1405 = vand.u32 %v1404, 4294901760
      %1406 = vmatpush.msra.mxu0 %v1405
      %v1407 = vand.u32 %v1108, 4294901760
      %v1408 = vsub.f32 %v1108, %v1407
      %v1409 = vand.u32 %v1408, 4294901760
      %1410 = vmatpush.msra.mxu0 %v1409
      %v1411 = vand.u32 %v1107, 4294901760
      %v1412 = vsub.f32 %v1107, %v1411
      %v1413 = vand.u32 %v1412, 4294901760
      %1414 = vmatpush.msra.mxu0 %v1413
      %v1415 = vand.u32 %v1106, 4294901760
      %v1416 = vsub.f32 %v1106, %v1415
      %v1417 = vand.u32 %v1416, 4294901760
      %1418 = vmatpush.msra.mxu0 %v1417
      %v1419 = vand.u32 %v1105, 4294901760
      %v1420 = vsub.f32 %v1105, %v1419
      %v1421 = vand.u32 %v1420, 4294901760
      %1422 = vmatpush.msra.mxu0 %v1421
      %v1423 = vand.u32 %v1104, 4294901760
      %v1424 = vsub.f32 %v1104, %v1423
      %v1425 = vand.u32 %v1424, 4294901760
      %1426 = vmatpush.msra.mxu0 %v1425
      %v1427 = vand.u32 %v1103, 4294901760
      %v1428 = vsub.f32 %v1103, %v1427
      %v1429 = vand.u32 %v1428, 4294901760
      %1430 = vmatpush.msra.mxu0 %v1429
      %v1431 = vand.u32 %v1102, 4294901760
      %v1432 = vsub.f32 %v1102, %v1431
      %v1433 = vand.u32 %v1432, 4294901760
      %1434 = vmatpush.msra.mxu0 %v1433
      %v1435 = vand.u32 %v1101, 4294901760
      %v1436 = vsub.f32 %v1101, %v1435
      %v1437 = vand.u32 %v1436, 4294901760
      %1438 = vmatpush.msra.mxu0 %v1437
      %v1439 = vand.u32 %v1100, 4294901760
      %v1440 = vsub.f32 %v1100, %v1439
      %v1441 = vand.u32 %v1440, 4294901760
      %1442 = vmatpush.msra.mxu0 %v1441
      %v1443 = vand.u32 %v1099, 4294901760
      %v1444 = vsub.f32 %v1099, %v1443
      %v1445 = vand.u32 %v1444, 4294901760
      %1446 = vmatpush.msra.mxu0 %v1445
      %v1447 = vand.u32 %v1098, 4294901760
      %v1448 = vsub.f32 %v1098, %v1447
      %v1449 = vand.u32 %v1448, 4294901760
      %1450 = vmatpush.msra.mxu0 %v1449
      %v1451 = vand.u32 %v1125, 4294901760
      %1452 = vmatmul.f32.gmra.mxu0 %v1451
      %v1453 = vpop.f32.mrf.mxu0
      %v1454 = vadd.f32 %v1379, %v1453
      %v1455 = vand.u32 %v1126, 4294901760
      %1456 = vmatmul.f32.gmra.mxu0 %v1455
      %v1457 = vpop.f32.mrf.mxu0
      %v1458 = vadd.f32 %v1385, %v1457
      %1459 = vdwg.mxu0
      %v1460 = vand.u32 %v1113, 4294901760
      %1461 = vmatpush.msra.mxu0 %v1460
      %v1462 = vand.u32 %v1112, 4294901760
      %1463 = vmatpush.msra.mxu0 %v1462
      %v1464 = vand.u32 %v1111, 4294901760
      %1465 = vmatpush.msra.mxu0 %v1464
      %v1466 = vand.u32 %v1110, 4294901760
      %1467 = vmatpush.msra.mxu0 %v1466
      %v1468 = vand.u32 %v1109, 4294901760
      %1469 = vmatpush.msra.mxu0 %v1468
      %v1470 = vand.u32 %v1108, 4294901760
      %1471 = vmatpush.msra.mxu0 %v1470
      %v1472 = vand.u32 %v1107, 4294901760
      %1473 = vmatpush.msra.mxu0 %v1472
      %v1474 = vand.u32 %v1106, 4294901760
      %1475 = vmatpush.msra.mxu0 %v1474
      %v1476 = vand.u32 %v1105, 4294901760
      %1477 = vmatpush.msra.mxu0 %v1476
      %v1478 = vand.u32 %v1104, 4294901760
      %1479 = vmatpush.msra.mxu0 %v1478
      %v1480 = vand.u32 %v1103, 4294901760
      %1481 = vmatpush.msra.mxu0 %v1480
      %v1482 = vand.u32 %v1102, 4294901760
      %1483 = vmatpush.msra.mxu0 %v1482
      %v1484 = vand.u32 %v1101, 4294901760
      %1485 = vmatpush.msra.mxu0 %v1484
      %v1486 = vand.u32 %v1100, 4294901760
      %1487 = vmatpush.msra.mxu0 %v1486
      %v1488 = vand.u32 %v1099, 4294901760
      %1489 = vmatpush.msra.mxu0 %v1488
      %v1490 = vand.u32 %v1098, 4294901760
      %1491 = vmatpush.msra.mxu0 %v1490
      %v1492 = vand.u32 %v1125, 4294901760
      %1493 = vmatmul.f32.gmra.mxu0 %v1492
      %v1494 = vpop.f32.mrf.mxu0
      %v1495 = vadd.f32 %v1454, %v1494
      %v1496 = vand.u32 %v1126, 4294901760
      %1497 = vmatmul.f32.gmra.mxu0 %v1496
      %v1498 = vpop.f32.mrf.mxu0
      %v1499 = vadd.f32 %v1458, %v1498
      %1500 = vdwg.mxu0
      %v1501 = vadd.f32 %v1088, %v1495
      %v1502 = vadd.f32 %v1092, %v1499
      %s1503 = scalar_lea.vmem %s258, 80
      %v1504 = vld [vmem:[%s1503] sm:$0xf]
      %v1505 = vld [vmem:[%s1503 + $0x8] sm:$0xf]
      %v1506 = vld [vmem:[%s1503 + $0x10] sm:$0xf]
      %v1507 = vld [vmem:[%s1503 + $0x18] sm:$0xf]
      %v1508 = vld [vmem:[%s263 + $0x180] sm:$0xff]
      %v1509 = vld [vmem:[%s263 + $0x188] sm:$0xff]
      %v1510 = vld [vmem:[%s263 + $0x190] sm:$0xff]
      %v1511 = vld [vmem:[%s263 + $0x198] sm:$0xff]
      %v1512 = vld [vmem:[%s263 + $0x1a0] sm:$0xff]
      %v1513 = vld [vmem:[%s263 + $0x1a8] sm:$0xff]
      %v1514 = vld [vmem:[%s263 + $0x1b0] sm:$0xff]
      %v1515 = vld [vmem:[%s263 + $0x1b8] sm:$0xff]
      %v1516 = vld [vmem:[%s263 + $0x1c0] sm:$0xff]
      %v1517 = vld [vmem:[%s263 + $0x1c8] sm:$0xff]
      %v1518 = vld [vmem:[%s263 + $0x1d0] sm:$0xff]
      %v1519 = vld [vmem:[%s263 + $0x1d8] sm:$0xff]
      %v1520 = vld [vmem:[%s263 + $0x1e0] sm:$0xff]
      %v1521 = vld [vmem:[%s263 + $0x1e8] sm:$0xff]
      %v1522 = vld [vmem:[%s263 + $0x1f0] sm:$0xff]
      %v1523 = vld [vmem:[%s263 + $0x1f8] sm:$0xff]
      %1528 = vst [vmem:[#allocation1] ss:$2 sm:$0xff] %v1504
      %s1529 = scalar_lea.vmem [#allocation1], 1
      %1530 = vst [vmem:[%s1529] ss:$2 sm:$0xff] %v1505
      %s1531 = scalar_lea.vmem [#allocation1], 16
      %1532 = vst [vmem:[%s1531] ss:$2 sm:$0xff] %v1506
      %s1533 = scalar_lea.vmem [#allocation1], 17
      %1534 = vst [vmem:[%s1533] ss:$2 sm:$0xff] %v1507
      %v1535 = vld.sshfl [vmem:[#allocation1] sm:$0xff pattern:$0x75316420]
      %v1536 = vld.sshfl [vmem:[#allocation1 + $0x10] sm:$0xff pattern:$0x75316420]
      %v1539 = vand.u32 %v1523, 4294901760
      %1540 = vmatpush.msra.mxu0 %v1539
      %v1541 = vand.u32 %v1522, 4294901760
      %1542 = vmatpush.msra.mxu0 %v1541
      %v1543 = vand.u32 %v1521, 4294901760
      %1544 = vmatpush.msra.mxu0 %v1543
      %v1545 = vand.u32 %v1520, 4294901760
      %1546 = vmatpush.msra.mxu0 %v1545
      %v1547 = vand.u32 %v1519, 4294901760
      %1548 = vmatpush.msra.mxu0 %v1547
      %v1549 = vand.u32 %v1518, 4294901760
      %1550 = vmatpush.msra.mxu0 %v1549
      %v1551 = vand.u32 %v1517, 4294901760
      %1552 = vmatpush.msra.mxu0 %v1551
      %v1553 = vand.u32 %v1516, 4294901760
      %1554 = vmatpush.msra.mxu0 %v1553
      %v1555 = vand.u32 %v1515, 4294901760
      %1556 = vmatpush.msra.mxu0 %v1555
      %v1557 = vand.u32 %v1514, 4294901760
      %1558 = vmatpush.msra.mxu0 %v1557
      %v1559 = vand.u32 %v1513, 4294901760
      %1560 = vmatpush.msra.mxu0 %v1559
      %v1561 = vand.u32 %v1512, 4294901760
      %1562 = vmatpush.msra.mxu0 %v1561
      %v1563 = vand.u32 %v1511, 4294901760
      %1564 = vmatpush.msra.mxu0 %v1563
      %v1565 = vand.u32 %v1510, 4294901760
      %1566 = vmatpush.msra.mxu0 %v1565
      %v1567 = vand.u32 %v1509, 4294901760
      %1568 = vmatpush.msra.mxu0 %v1567
      %v1569 = vand.u32 %v1508, 4294901760
      %1570 = vmatpush.msra.mxu0 %v1569
      %v1571 = vand.u32 %v1535, 4294901760
      %v1572 = vsub.f32 %v1535, %v1571
      %v1573 = vand.u32 %v1572, 4294901760
      %v1574 = vsub.f32 %v1572, %v1573
      %v1575 = vand.u32 %v1574, 4294901760
      %1576 = vmatmul.f32.gmra.mxu0 %v1575
      %v1577 = vpop.f32.mrf.mxu0
      %v1578 = vadd.f32 0.0, %v1577
      %v1579 = vand.u32 %v1536, 4294901760
      %v1580 = vsub.f32 %v1536, %v1579
      %v1581 = vand.u32 %v1580, 4294901760
      %v1582 = vsub.f32 %v1580, %v1581
      %v1583 = vand.u32 %v1582, 4294901760
      %1584 = vmatmul.f32.gmra.mxu0 %v1583
      %v1585 = vpop.f32.mrf.mxu0
      %v1586 = vadd.f32 0.0, %v1585
      %1587 = vdwg.mxu0
      %v1588 = vand.u32 %v1523, 4294901760
      %v1589 = vsub.f32 %v1523, %v1588
      %v1590 = vand.u32 %v1589, 4294901760
      %v1591 = vsub.f32 %v1589, %v1590
      %v1592 = vand.u32 %v1591, 4294901760
      %1593 = vmatpush.msra.mxu0 %v1592
      %v1594 = vand.u32 %v1522, 4294901760
      %v1595 = vsub.f32 %v1522, %v1594
      %v1596 = vand.u32 %v1595, 4294901760
      %v1597 = vsub.f32 %v1595, %v1596
      %v1598 = vand.u32 %v1597, 4294901760
      %1599 = vmatpush.msra.mxu0 %v1598
      %v1600 = vand.u32 %v1521, 4294901760
      %v1601 = vsub.f32 %v1521, %v1600
      %v1602 = vand.u32 %v1601, 4294901760
      %v1603 = vsub.f32 %v1601, %v1602
      %v1604 = vand.u32 %v1603, 4294901760
      %1605 = vmatpush.msra.mxu0 %v1604
      %v1606 = vand.u32 %v1520, 4294901760
      %v1607 = vsub.f32 %v1520, %v1606
      %v1608 = vand.u32 %v1607, 4294901760
      %v1609 = vsub.f32 %v1607, %v1608
      %v1610 = vand.u32 %v1609, 4294901760
      %1611 = vmatpush.msra.mxu0 %v1610
      %v1612 = vand.u32 %v1519, 4294901760
      %v1613 = vsub.f32 %v1519, %v1612
      %v1614 = vand.u32 %v1613, 4294901760
      %v1615 = vsub.f32 %v1613, %v1614
      %v1616 = vand.u32 %v1615, 4294901760
      %1617 = vmatpush.msra.mxu0 %v1616
      %v1618 = vand.u32 %v1518, 4294901760
      %v1619 = vsub.f32 %v1518, %v1618
      %v1620 = vand.u32 %v1619, 4294901760
      %v1621 = vsub.f32 %v1619, %v1620
      %v1622 = vand.u32 %v1621, 4294901760
      %1623 = vmatpush.msra.mxu0 %v1622
      %v1624 = vand.u32 %v1517, 4294901760
      %v1625 = vsub.f32 %v1517, %v1624
      %v1626 = vand.u32 %v1625, 4294901760
      %v1627 = vsub.f32 %v1625, %v1626
      %v1628 = vand.u32 %v1627, 4294901760
      %1629 = vmatpush.msra.mxu0 %v1628
      %v1630 = vand.u32 %v1516, 4294901760
      %v1631 = vsub.f32 %v1516, %v1630
      %v1632 = vand.u32 %v1631, 4294901760
      %v1633 = vsub.f32 %v1631, %v1632
      %v1634 = vand.u32 %v1633, 4294901760
      %1635 = vmatpush.msra.mxu0 %v1634
      %v1636 = vand.u32 %v1515, 4294901760
      %v1637 = vsub.f32 %v1515, %v1636
      %v1638 = vand.u32 %v1637, 4294901760
      %v1639 = vsub.f32 %v1637, %v1638
      %v1640 = vand.u32 %v1639, 4294901760
      %1641 = vmatpush.msra.mxu0 %v1640
      %v1642 = vand.u32 %v1514, 4294901760
      %v1643 = vsub.f32 %v1514, %v1642
      %v1644 = vand.u32 %v1643, 4294901760
      %v1645 = vsub.f32 %v1643, %v1644
      %v1646 = vand.u32 %v1645, 4294901760
      %1647 = vmatpush.msra.mxu0 %v1646
      %v1648 = vand.u32 %v1513, 4294901760
      %v1649 = vsub.f32 %v1513, %v1648
      %v1650 = vand.u32 %v1649, 4294901760
      %v1651 = vsub.f32 %v1649, %v1650
      %v1652 = vand.u32 %v1651, 4294901760
      %1653 = vmatpush.msra.mxu0 %v1652
      %v1654 = vand.u32 %v1512, 4294901760
      %v1655 = vsub.f32 %v1512, %v1654
      %v1656 = vand.u32 %v1655, 4294901760
      %v1657 = vsub.f32 %v1655, %v1656
      %v1658 = vand.u32 %v1657, 4294901760
      %1659 = vmatpush.msra.mxu0 %v1658
      %v1660 = vand.u32 %v1511, 4294901760
      %v1661 = vsub.f32 %v1511, %v1660
      %v1662 = vand.u32 %v1661, 4294901760
      %v1663 = vsub.f32 %v1661, %v1662
      %v1664 = vand.u32 %v1663, 4294901760
      %1665 = vmatpush.msra.mxu0 %v1664
      %v1666 = vand.u32 %v1510, 4294901760
      %v1667 = vsub.f32 %v1510, %v1666
      %v1668 = vand.u32 %v1667, 4294901760
      %v1669 = vsub.f32 %v1667, %v1668
      %v1670 = vand.u32 %v1669, 4294901760
      %1671 = vmatpush.msra.mxu0 %v1670
      %v1672 = vand.u32 %v1509, 4294901760
      %v1673 = vsub.f32 %v1509, %v1672
      %v1674 = vand.u32 %v1673, 4294901760
      %v1675 = vsub.f32 %v1673, %v1674
      %v1676 = vand.u32 %v1675, 4294901760
      %1677 = vmatpush.msra.mxu0 %v1676
      %v1678 = vand.u32 %v1508, 4294901760
      %v1679 = vsub.f32 %v1508, %v1678
      %v1680 = vand.u32 %v1679, 4294901760
      %v1681 = vsub.f32 %v1679, %v1680
      %v1682 = vand.u32 %v1681, 4294901760
      %1683 = vmatpush.msra.mxu0 %v1682
      %v1684 = vand.u32 %v1535, 4294901760
      %1685 = vmatmul.f32.gmra.mxu0 %v1684
      %v1686 = vpop.f32.mrf.mxu0
      %v1687 = vadd.f32 %v1578, %v1686
      %v1688 = vand.u32 %v1536, 4294901760
      %1689 = vmatmul.f32.gmra.mxu0 %v1688
      %v1690 = vpop.f32.mrf.mxu0
      %v1691 = vadd.f32 %v1586, %v1690
      %1692 = vdwg.mxu0
      %v1693 = vand.u32 %v1523, 4294901760
      %v1694 = vsub.f32 %v1523, %v1693
      %1695 = vmatpush.msra.mxu0 %v1694
      %v1696 = vand.u32 %v1522, 4294901760
      %v1697 = vsub.f32 %v1522, %v1696
      %1698 = vmatpush.msra.mxu0 %v1697
      %v1699 = vand.u32 %v1521, 4294901760
      %v1700 = vsub.f32 %v1521, %v1699
      %1701 = vmatpush.msra.mxu0 %v1700
      %v1702 = vand.u32 %v1520, 4294901760
      %v1703 = vsub.f32 %v1520, %v1702
      %1704 = vmatpush.msra.mxu0 %v1703
      %v1705 = vand.u32 %v1519, 4294901760
      %v1706 = vsub.f32 %v1519, %v1705
      %1707 = vmatpush.msra.mxu0 %v1706
      %v1708 = vand.u32 %v1518, 4294901760
      %v1709 = vsub.f32 %v1518, %v1708
      %1710 = vmatpush.msra.mxu0 %v1709
      %v1711 = vand.u32 %v1517, 4294901760
      %v1712 = vsub.f32 %v1517, %v1711
      %1713 = vmatpush.msra.mxu0 %v1712
      %v1714 = vand.u32 %v1516, 4294901760
      %v1715 = vsub.f32 %v1516, %v1714
      %1716 = vmatpush.msra.mxu0 %v1715
      %v1717 = vand.u32 %v1515, 4294901760
      %v1718 = vsub.f32 %v1515, %v1717
      %1719 = vmatpush.msra.mxu0 %v1718
      %v1720 = vand.u32 %v1514, 4294901760
      %v1721 = vsub.f32 %v1514, %v1720
      %1722 = vmatpush.msra.mxu0 %v1721
      %v1723 = vand.u32 %v1513, 4294901760
      %v1724 = vsub.f32 %v1513, %v1723
      %1725 = vmatpush.msra.mxu0 %v1724
      %v1726 = vand.u32 %v1512, 4294901760
      %v1727 = vsub.f32 %v1512, %v1726
      %1728 = vmatpush.msra.mxu0 %v1727
      %v1729 = vand.u32 %v1511, 4294901760
      %v1730 = vsub.f32 %v1511, %v1729
      %1731 = vmatpush.msra.mxu0 %v1730
      %v1732 = vand.u32 %v1510, 4294901760
      %v1733 = vsub.f32 %v1510, %v1732
      %1734 = vmatpush.msra.mxu0 %v1733
      %v1735 = vand.u32 %v1509, 4294901760
      %v1736 = vsub.f32 %v1509, %v1735
      %1737 = vmatpush.msra.mxu0 %v1736
      %v1738 = vand.u32 %v1508, 4294901760
      %v1739 = vsub.f32 %v1508, %v1738
      %1740 = vmatpush.msra.mxu0 %v1739
      %v1741 = vand.u32 %v1535, 4294901760
      %v1742 = vsub.f32 %v1535, %v1741
      %1743 = vmatmul.f32.gmra.mxu0 %v1742
      %v1744 = vpop.f32.mrf.mxu0
      %v1745 = vadd.f32 %v1687, %v1744
      %v1746 = vand.u32 %v1536, 4294901760
      %v1747 = vsub.f32 %v1536, %v1746
      %1748 = vmatmul.f32.gmra.mxu0 %v1747
      %v1749 = vpop.f32.mrf.mxu0
      %v1750 = vadd.f32 %v1691, %v1749
      %1751 = vdwg.mxu0
      %v1752 = vand.u32 %v1523, 4294901760
      %1753 = vmatpush.msra.mxu0 %v1752
      %v1754 = vand.u32 %v1522, 4294901760
      %1755 = vmatpush.msra.mxu0 %v1754
      %v1756 = vand.u32 %v1521, 4294901760
      %1757 = vmatpush.msra.mxu0 %v1756
      %v1758 = vand.u32 %v1520, 4294901760
      %1759 = vmatpush.msra.mxu0 %v1758
      %v1760 = vand.u32 %v1519, 4294901760
      %1761 = vmatpush.msra.mxu0 %v1760
      %v1762 = vand.u32 %v1518, 4294901760
      %1763 = vmatpush.msra.mxu0 %v1762
      %v1764 = vand.u32 %v1517, 4294901760
      %1765 = vmatpush.msra.mxu0 %v1764
      %v1766 = vand.u32 %v1516, 4294901760
      %1767 = vmatpush.msra.mxu0 %v1766
      %v1768 = vand.u32 %v1515, 4294901760
      %1769 = vmatpush.msra.mxu0 %v1768
      %v1770 = vand.u32 %v1514, 4294901760
      %1771 = vmatpush.msra.mxu0 %v1770
      %v1772 = vand.u32 %v1513, 4294901760
      %1773 = vmatpush.msra.mxu0 %v1772
      %v1774 = vand.u32 %v1512, 4294901760
      %1775 = vmatpush.msra.mxu0 %v1774
      %v1776 = vand.u32 %v1511, 4294901760
      %1777 = vmatpush.msra.mxu0 %v1776
      %v1778 = vand.u32 %v1510, 4294901760
      %1779 = vmatpush.msra.mxu0 %v1778
      %v1780 = vand.u32 %v1509, 4294901760
      %1781 = vmatpush.msra.mxu0 %v1780
      %v1782 = vand.u32 %v1508, 4294901760
      %1783 = vmatpush.msra.mxu0 %v1782
      %v1784 = vand.u32 %v1535, 4294901760
      %v1785 = vsub.f32 %v1535, %v1784
      %v1786 = vand.u32 %v1785, 4294901760
      %1787 = vmatmul.f32.gmra.mxu0 %v1786
      %v1788 = vpop.f32.mrf.mxu0
      %v1789 = vadd.f32 %v1745, %v1788
      %v1790 = vand.u32 %v1536, 4294901760
      %v1791 = vsub.f32 %v1536, %v1790
      %v1792 = vand.u32 %v1791, 4294901760
      %1793 = vmatmul.f32.gmra.mxu0 %v1792
      %v1794 = vpop.f32.mrf.mxu0
      %v1795 = vadd.f32 %v1750, %v1794
      %1796 = vdwg.mxu0
      %v1797 = vand.u32 %v1523, 4294901760
      %v1798 = vsub.f32 %v1523, %v1797
      %v1799 = vand.u32 %v1798, 4294901760
      %1800 = vmatpush.msra.mxu0 %v1799
      %v1801 = vand.u32 %v1522, 4294901760
      %v1802 = vsub.f32 %v1522, %v1801
      %v1803 = vand.u32 %v1802, 4294901760
      %1804 = vmatpush.msra.mxu0 %v1803
      %v1805 = vand.u32 %v1521, 4294901760
      %v1806 = vsub.f32 %v1521, %v1805
      %v1807 = vand.u32 %v1806, 4294901760
      %1808 = vmatpush.msra.mxu0 %v1807
      %v1809 = vand.u32 %v1520, 4294901760
      %v1810 = vsub.f32 %v1520, %v1809
      %v1811 = vand.u32 %v1810, 4294901760
      %1812 = vmatpush.msra.mxu0 %v1811
      %v1813 = vand.u32 %v1519, 4294901760
      %v1814 = vsub.f32 %v1519, %v1813
      %v1815 = vand.u32 %v1814, 4294901760
      %1816 = vmatpush.msra.mxu0 %v1815
      %v1817 = vand.u32 %v1518, 4294901760
      %v1818 = vsub.f32 %v1518, %v1817
      %v1819 = vand.u32 %v1818, 4294901760
      %1820 = vmatpush.msra.mxu0 %v1819
      %v1821 = vand.u32 %v1517, 4294901760
      %v1822 = vsub.f32 %v1517, %v1821
      %v1823 = vand.u32 %v1822, 4294901760
      %1824 = vmatpush.msra.mxu0 %v1823
      %v1825 = vand.u32 %v1516, 4294901760
      %v1826 = vsub.f32 %v1516, %v1825
      %v1827 = vand.u32 %v1826, 4294901760
      %1828 = vmatpush.msra.mxu0 %v1827
      %v1829 = vand.u32 %v1515, 4294901760
      %v1830 = vsub.f32 %v1515, %v1829
      %v1831 = vand.u32 %v1830, 4294901760
      %1832 = vmatpush.msra.mxu0 %v1831
      %v1833 = vand.u32 %v1514, 4294901760
      %v1834 = vsub.f32 %v1514, %v1833
      %v1835 = vand.u32 %v1834, 4294901760
      %1836 = vmatpush.msra.mxu0 %v1835
      %v1837 = vand.u32 %v1513, 4294901760
      %v1838 = vsub.f32 %v1513, %v1837
      %v1839 = vand.u32 %v1838, 4294901760
      %1840 = vmatpush.msra.mxu0 %v1839
      %v1841 = vand.u32 %v1512, 4294901760
      %v1842 = vsub.f32 %v1512, %v1841
      %v1843 = vand.u32 %v1842, 4294901760
      %1844 = vmatpush.msra.mxu0 %v1843
      %v1845 = vand.u32 %v1511, 4294901760
      %v1846 = vsub.f32 %v1511, %v1845
      %v1847 = vand.u32 %v1846, 4294901760
      %1848 = vmatpush.msra.mxu0 %v1847
      %v1849 = vand.u32 %v1510, 4294901760
      %v1850 = vsub.f32 %v1510, %v1849
      %v1851 = vand.u32 %v1850, 4294901760
      %1852 = vmatpush.msra.mxu0 %v1851
      %v1853 = vand.u32 %v1509, 4294901760
      %v1854 = vsub.f32 %v1509, %v1853
      %v1855 = vand.u32 %v1854, 4294901760
      %1856 = vmatpush.msra.mxu0 %v1855
      %v1857 = vand.u32 %v1508, 4294901760
      %v1858 = vsub.f32 %v1508, %v1857
      %v1859 = vand.u32 %v1858, 4294901760
      %1860 = vmatpush.msra.mxu0 %v1859
      %v1861 = vand.u32 %v1535, 4294901760
      %1862 = vmatmul.f32.gmra.mxu0 %v1861
      %v1863 = vpop.f32.mrf.mxu0
      %v1864 = vadd.f32 %v1789, %v1863
      %v1865 = vand.u32 %v1536, 4294901760
      %1866 = vmatmul.f32.gmra.mxu0 %v1865
      %v1867 = vpop.f32.mrf.mxu0
      %v1868 = vadd.f32 %v1795, %v1867
      %1869 = vdwg.mxu0
      %v1870 = vand.u32 %v1523, 4294901760
      %1871 = vmatpush.msra.mxu0 %v1870
      %v1872 = vand.u32 %v1522, 4294901760
      %1873 = vmatpush.msra.mxu0 %v1872
      %v1874 = vand.u32 %v1521, 4294901760
      %1875 = vmatpush.msra.mxu0 %v1874
      %v1876 = vand.u32 %v1520, 4294901760
      %1877 = vmatpush.msra.mxu0 %v1876
      %v1878 = vand.u32 %v1519, 4294901760
      %1879 = vmatpush.msra.mxu0 %v1878
      %v1880 = vand.u32 %v1518, 4294901760
      %1881 = vmatpush.msra.mxu0 %v1880
      %v1882 = vand.u32 %v1517, 4294901760
      %1883 = vmatpush.msra.mxu0 %v1882
      %v1884 = vand.u32 %v1516, 4294901760
      %1885 = vmatpush.msra.mxu0 %v1884
      %v1886 = vand.u32 %v1515, 4294901760
      %1887 = vmatpush.msra.mxu0 %v1886
      %v1888 = vand.u32 %v1514, 4294901760
      %1889 = vmatpush.msra.mxu0 %v1888
      %v1890 = vand.u32 %v1513, 4294901760
      %1891 = vmatpush.msra.mxu0 %v1890
      %v1892 = vand.u32 %v1512, 4294901760
      %1893 = vmatpush.msra.mxu0 %v1892
      %v1894 = vand.u32 %v1511, 4294901760
      %1895 = vmatpush.msra.mxu0 %v1894
      %v1896 = vand.u32 %v1510, 4294901760
      %1897 = vmatpush.msra.mxu0 %v1896
      %v1898 = vand.u32 %v1509, 4294901760
      %1899 = vmatpush.msra.mxu0 %v1898
      %v1900 = vand.u32 %v1508, 4294901760
      %1901 = vmatpush.msra.mxu0 %v1900
      %v1902 = vand.u32 %v1535, 4294901760
      %1903 = vmatmul.f32.gmra.mxu0 %v1902
      %v1904 = vpop.f32.mrf.mxu0
      %v1905 = vadd.f32 %v1864, %v1904
      %v1906 = vand.u32 %v1536, 4294901760
      %1907 = vmatmul.f32.gmra.mxu0 %v1906
      %v1908 = vpop.f32.mrf.mxu0
      %v1909 = vadd.f32 %v1868, %v1908
      %1910 = vdwg.mxu0
      %v1911 = vadd.f32 %v1501, %v1905
      %v1912 = vadd.f32 %v1502, %v1909
      %s1913 = scalar_lea.vmem %s258, 120
      %v1914 = vld [vmem:[%s1913] sm:$0xf]
      %v1915 = vld [vmem:[%s1913 + $0x8] sm:$0xf]
      %v1916 = vld [vmem:[%s1913 + $0x10] sm:$0xf]
      %v1917 = vld [vmem:[%s1913 + $0x18] sm:$0xf]
      %v1918 = vld [vmem:[%s263 + $0x200] sm:$0xff]
      %v1919 = vld [vmem:[%s263 + $0x208] sm:$0xff]
      %v1920 = vld [vmem:[%s263 + $0x210] sm:$0xff]
      %v1921 = vld [vmem:[%s263 + $0x218] sm:$0xff]
      %v1922 = vld [vmem:[%s263 + $0x220] sm:$0xff]
      %v1923 = vld [vmem:[%s263 + $0x228] sm:$0xff]
      %v1924 = vld [vmem:[%s263 + $0x230] sm:$0xff]
      %v1925 = vld [vmem:[%s263 + $0x238] sm:$0xff]
      %v1926 = vld [vmem:[%s263 + $0x240] sm:$0xff]
      %v1927 = vld [vmem:[%s263 + $0x248] sm:$0xff]
      %v1928 = vld [vmem:[%s263 + $0x250] sm:$0xff]
      %v1929 = vld [vmem:[%s263 + $0x258] sm:$0xff]
      %v1930 = vld [vmem:[%s263 + $0x260] sm:$0xff]
      %v1931 = vld [vmem:[%s263 + $0x268] sm:$0xff]
      %v1932 = vld [vmem:[%s263 + $0x270] sm:$0xff]
      %v1933 = vld [vmem:[%s263 + $0x278] sm:$0xff]
      %1938 = vst [vmem:[#allocation1] ss:$2 sm:$0xff] %v1914
      %s1939 = scalar_lea.vmem [#allocation1], 1
      %1940 = vst [vmem:[%s1939] ss:$2 sm:$0xff] %v1915
      %s1941 = scalar_lea.vmem [#allocation1], 16
      %1942 = vst [vmem:[%s1941] ss:$2 sm:$0xff] %v1916
      %s1943 = scalar_lea.vmem [#allocation1], 17
      %1944 = vst [vmem:[%s1943] ss:$2 sm:$0xff] %v1917
      %v1945 = vld.sshfl [vmem:[#allocation1] sm:$0xff pattern:$0x75316420]
      %v1946 = vld.sshfl [vmem:[#allocation1 + $0x10] sm:$0xff pattern:$0x75316420]
      %v1949 = vand.u32 %v1933, 4294901760
      %1950 = vmatpush.msra.mxu0 %v1949
      %v1951 = vand.u32 %v1932, 4294901760
      %1952 = vmatpush.msra.mxu0 %v1951
      %v1953 = vand.u32 %v1931, 4294901760
      %1954 = vmatpush.msra.mxu0 %v1953
      %v1955 = vand.u32 %v1930, 4294901760
      %1956 = vmatpush.msra.mxu0 %v1955
      %v1957 = vand.u32 %v1929, 4294901760
      %1958 = vmatpush.msra.mxu0 %v1957
      %v1959 = vand.u32 %v1928, 4294901760
      %1960 = vmatpush.msra.mxu0 %v1959
      %v1961 = vand.u32 %v1927, 4294901760
      %1962 = vmatpush.msra.mxu0 %v1961
      %v1963 = vand.u32 %v1926, 4294901760
      %1964 = vmatpush.msra.mxu0 %v1963
      %v1965 = vand.u32 %v1925, 4294901760
      %1966 = vmatpush.msra.mxu0 %v1965
      %v1967 = vand.u32 %v1924, 4294901760
      %1968 = vmatpush.msra.mxu0 %v1967
      %v1969 = vand.u32 %v1923, 4294901760
      %1970 = vmatpush.msra.mxu0 %v1969
      %v1971 = vand.u32 %v1922, 4294901760
      %1972 = vmatpush.msra.mxu0 %v1971
      %v1973 = vand.u32 %v1921, 4294901760
      %1974 = vmatpush.msra.mxu0 %v1973
      %v1975 = vand.u32 %v1920, 4294901760
      %1976 = vmatpush.msra.mxu0 %v1975
      %v1977 = vand.u32 %v1919, 4294901760
      %1978 = vmatpush.msra.mxu0 %v1977
      %v1979 = vand.u32 %v1918, 4294901760
      %1980 = vmatpush.msra.mxu0 %v1979
      %v1981 = vand.u32 %v1945, 4294901760
      %v1982 = vsub.f32 %v1945, %v1981
      %v1983 = vand.u32 %v1982, 4294901760
      %v1984 = vsub.f32 %v1982, %v1983
      %v1985 = vand.u32 %v1984, 4294901760
      %1986 = vmatmul.f32.gmra.mxu0 %v1985
      %v1987 = vpop.f32.mrf.mxu0
      %v1988 = vadd.f32 0.0, %v1987
      %v1989 = vand.u32 %v1946, 4294901760
      %v1990 = vsub.f32 %v1946, %v1989
      %v1991 = vand.u32 %v1990, 4294901760
      %v1992 = vsub.f32 %v1990, %v1991
      %v1993 = vand.u32 %v1992, 4294901760
      %1994 = vmatmul.f32.gmra.mxu0 %v1993
      %v1995 = vpop.f32.mrf.mxu0
      %v1996 = vadd.f32 0.0, %v1995
      %1997 = vdwg.mxu0
      %v1998 = vand.u32 %v1933, 4294901760
      %v1999 = vsub.f32 %v1933, %v1998
      %v2000 = vand.u32 %v1999, 4294901760
      %v2001 = vsub.f32 %v1999, %v2000
      %v2002 = vand.u32 %v2001, 4294901760
      %2003 = vmatpush.msra.mxu0 %v2002
      %v2004 = vand.u32 %v1932, 4294901760
      %v2005 = vsub.f32 %v1932, %v2004
      %v2006 = vand.u32 %v2005, 4294901760
      %v2007 = vsub.f32 %v2005, %v2006
      %v2008 = vand.u32 %v2007, 4294901760
      %2009 = vmatpush.msra.mxu0 %v2008
      %v2010 = vand.u32 %v1931, 4294901760
      %v2011 = vsub.f32 %v1931, %v2010
      %v2012 = vand.u32 %v2011, 4294901760
      %v2013 = vsub.f32 %v2011, %v2012
      %v2014 = vand.u32 %v2013, 4294901760
      %2015 = vmatpush.msra.mxu0 %v2014
      %v2016 = vand.u32 %v1930, 4294901760
      %v2017 = vsub.f32 %v1930, %v2016
      %v2018 = vand.u32 %v2017, 4294901760
      %v2019 = vsub.f32 %v2017, %v2018
      %v2020 = vand.u32 %v2019, 4294901760
      %2021 = vmatpush.msra.mxu0 %v2020
      %v2022 = vand.u32 %v1929, 4294901760
      %v2023 = vsub.f32 %v1929, %v2022
      %v2024 = vand.u32 %v2023, 4294901760
      %v2025 = vsub.f32 %v2023, %v2024
      %v2026 = vand.u32 %v2025, 4294901760
      %2027 = vmatpush.msra.mxu0 %v2026
      %v2028 = vand.u32 %v1928, 4294901760
      %v2029 = vsub.f32 %v1928, %v2028
      %v2030 = vand.u32 %v2029, 4294901760
      %v2031 = vsub.f32 %v2029, %v2030
      %v2032 = vand.u32 %v2031, 4294901760
      %2033 = vmatpush.msra.mxu0 %v2032
      %v2034 = vand.u32 %v1927, 4294901760
      %v2035 = vsub.f32 %v1927, %v2034
      %v2036 = vand.u32 %v2035, 4294901760
      %v2037 = vsub.f32 %v2035, %v2036
      %v2038 = vand.u32 %v2037, 4294901760
      %2039 = vmatpush.msra.mxu0 %v2038
      %v2040 = vand.u32 %v1926, 4294901760
      %v2041 = vsub.f32 %v1926, %v2040
      %v2042 = vand.u32 %v2041, 4294901760
      %v2043 = vsub.f32 %v2041, %v2042
      %v2044 = vand.u32 %v2043, 4294901760
      %2045 = vmatpush.msra.mxu0 %v2044
      %v2046 = vand.u32 %v1925, 4294901760
      %v2047 = vsub.f32 %v1925, %v2046
      %v2048 = vand.u32 %v2047, 4294901760
      %v2049 = vsub.f32 %v2047, %v2048
      %v2050 = vand.u32 %v2049, 4294901760
      %2051 = vmatpush.msra.mxu0 %v2050
      %v2052 = vand.u32 %v1924, 4294901760
      %v2053 = vsub.f32 %v1924, %v2052
      %v2054 = vand.u32 %v2053, 4294901760
      %v2055 = vsub.f32 %v2053, %v2054
      %v2056 = vand.u32 %v2055, 4294901760
      %2057 = vmatpush.msra.mxu0 %v2056
      %v2058 = vand.u32 %v1923, 4294901760
      %v2059 = vsub.f32 %v1923, %v2058
      %v2060 = vand.u32 %v2059, 4294901760
      %v2061 = vsub.f32 %v2059, %v2060
      %v2062 = vand.u32 %v2061, 4294901760
      %2063 = vmatpush.msra.mxu0 %v2062
      %v2064 = vand.u32 %v1922, 4294901760
      %v2065 = vsub.f32 %v1922, %v2064
      %v2066 = vand.u32 %v2065, 4294901760
      %v2067 = vsub.f32 %v2065, %v2066
      %v2068 = vand.u32 %v2067, 4294901760
      %2069 = vmatpush.msra.mxu0 %v2068
      %v2070 = vand.u32 %v1921, 4294901760
      %v2071 = vsub.f32 %v1921, %v2070
      %v2072 = vand.u32 %v2071, 4294901760
      %v2073 = vsub.f32 %v2071, %v2072
      %v2074 = vand.u32 %v2073, 4294901760
      %2075 = vmatpush.msra.mxu0 %v2074
      %v2076 = vand.u32 %v1920, 4294901760
      %v2077 = vsub.f32 %v1920, %v2076
      %v2078 = vand.u32 %v2077, 4294901760
      %v2079 = vsub.f32 %v2077, %v2078
      %v2080 = vand.u32 %v2079, 4294901760
      %2081 = vmatpush.msra.mxu0 %v2080
      %v2082 = vand.u32 %v1919, 4294901760
      %v2083 = vsub.f32 %v1919, %v2082
      %v2084 = vand.u32 %v2083, 4294901760
      %v2085 = vsub.f32 %v2083, %v2084
      %v2086 = vand.u32 %v2085, 4294901760
      %2087 = vmatpush.msra.mxu0 %v2086
      %v2088 = vand.u32 %v1918, 4294901760
      %v2089 = vsub.f32 %v1918, %v2088
      %v2090 = vand.u32 %v2089, 4294901760
      %v2091 = vsub.f32 %v2089, %v2090
      %v2092 = vand.u32 %v2091, 4294901760
      %2093 = vmatpush.msra.mxu0 %v2092
      %v2094 = vand.u32 %v1945, 4294901760
      %2095 = vmatmul.f32.gmra.mxu0 %v2094
      %v2096 = vpop.f32.mrf.mxu0
      %v2097 = vadd.f32 %v1988, %v2096
      %v2098 = vand.u32 %v1946, 4294901760
      %2099 = vmatmul.f32.gmra.mxu0 %v2098
      %v2100 = vpop.f32.mrf.mxu0
      %v2101 = vadd.f32 %v1996, %v2100
      %2102 = vdwg.mxu0
      %v2103 = vand.u32 %v1933, 4294901760
      %v2104 = vsub.f32 %v1933, %v2103
      %2105 = vmatpush.msra.mxu0 %v2104
      %v2106 = vand.u32 %v1932, 4294901760
      %v2107 = vsub.f32 %v1932, %v2106
      %2108 = vmatpush.msra.mxu0 %v2107
      %v2109 = vand.u32 %v1931, 4294901760
      %v2110 = vsub.f32 %v1931, %v2109
      %2111 = vmatpush.msra.mxu0 %v2110
      %v2112 = vand.u32 %v1930, 4294901760
      %v2113 = vsub.f32 %v1930, %v2112
      %2114 = vmatpush.msra.mxu0 %v2113
      %v2115 = vand.u32 %v1929, 4294901760
      %v2116 = vsub.f32 %v1929, %v2115
      %2117 = vmatpush.msra.mxu0 %v2116
      %v2118 = vand.u32 %v1928, 4294901760
      %v2119 = vsub.f32 %v1928, %v2118
      %2120 = vmatpush.msra.mxu0 %v2119
      %v2121 = vand.u32 %v1927, 4294901760
      %v2122 = vsub.f32 %v1927, %v2121
      %2123 = vmatpush.msra.mxu0 %v2122
      %v2124 = vand.u32 %v1926, 4294901760
      %v2125 = vsub.f32 %v1926, %v2124
      %2126 = vmatpush.msra.mxu0 %v2125
      %v2127 = vand.u32 %v1925, 4294901760
      %v2128 = vsub.f32 %v1925, %v2127
      %2129 = vmatpush.msra.mxu0 %v2128
      %v2130 = vand.u32 %v1924, 4294901760
      %v2131 = vsub.f32 %v1924, %v2130
      %2132 = vmatpush.msra.mxu0 %v2131
      %v2133 = vand.u32 %v1923, 4294901760
      %v2134 = vsub.f32 %v1923, %v2133
      %2135 = vmatpush.msra.mxu0 %v2134
      %v2136 = vand.u32 %v1922, 4294901760
      %v2137 = vsub.f32 %v1922, %v2136
      %2138 = vmatpush.msra.mxu0 %v2137
      %v2139 = vand.u32 %v1921, 4294901760
      %v2140 = vsub.f32 %v1921, %v2139
      %2141 = vmatpush.msra.mxu0 %v2140
      %v2142 = vand.u32 %v1920, 4294901760
      %v2143 = vsub.f32 %v1920, %v2142
      %2144 = vmatpush.msra.mxu0 %v2143
      %v2145 = vand.u32 %v1919, 4294901760
      %v2146 = vsub.f32 %v1919, %v2145
      %2147 = vmatpush.msra.mxu0 %v2146
      %v2148 = vand.u32 %v1918, 4294901760
      %v2149 = vsub.f32 %v1918, %v2148
      %2150 = vmatpush.msra.mxu0 %v2149
      %v2151 = vand.u32 %v1945, 4294901760
      %v2152 = vsub.f32 %v1945, %v2151
      %2153 = vmatmul.f32.gmra.mxu0 %v2152
      %v2154 = vpop.f32.mrf.mxu0
      %v2155 = vadd.f32 %v2097, %v2154
      %v2156 = vand.u32 %v1946, 4294901760
      %v2157 = vsub.f32 %v1946, %v2156
      %2158 = vmatmul.f32.gmra.mxu0 %v2157
      %v2159 = vpop.f32.mrf.mxu0
      %v2160 = vadd.f32 %v2101, %v2159
      %2161 = vdwg.mxu0
      %v2162 = vand.u32 %v1933, 4294901760
      %2163 = vmatpush.msra.mxu0 %v2162
      %v2164 = vand.u32 %v1932, 4294901760
      %2165 = vmatpush.msra.mxu0 %v2164
      %v2166 = vand.u32 %v1931, 4294901760
      %2167 = vmatpush.msra.mxu0 %v2166
      %v2168 = vand.u32 %v1930, 4294901760
      %2169 = vmatpush.msra.mxu0 %v2168
      %v2170 = vand.u32 %v1929, 4294901760
      %2171 = vmatpush.msra.mxu0 %v2170
      %v2172 = vand.u32 %v1928, 4294901760
      %2173 = vmatpush.msra.mxu0 %v2172
      %v2174 = vand.u32 %v1927, 4294901760
      %2175 = vmatpush.msra.mxu0 %v2174
      %v2176 = vand.u32 %v1926, 4294901760
      %2177 = vmatpush.msra.mxu0 %v2176
      %v2178 = vand.u32 %v1925, 4294901760
      %2179 = vmatpush.msra.mxu0 %v2178
      %v2180 = vand.u32 %v1924, 4294901760
      %2181 = vmatpush.msra.mxu0 %v2180
      %v2182 = vand.u32 %v1923, 4294901760
      %2183 = vmatpush.msra.mxu0 %v2182
      %v2184 = vand.u32 %v1922, 4294901760
      %2185 = vmatpush.msra.mxu0 %v2184
      %v2186 = vand.u32 %v1921, 4294901760
      %2187 = vmatpush.msra.mxu0 %v2186
      %v2188 = vand.u32 %v1920, 4294901760
      %2189 = vmatpush.msra.mxu0 %v2188
      %v2190 = vand.u32 %v1919, 4294901760
      %2191 = vmatpush.msra.mxu0 %v2190
      %v2192 = vand.u32 %v1918, 4294901760
      %2193 = vmatpush.msra.mxu0 %v2192
      %v2194 = vand.u32 %v1945, 4294901760
      %v2195 = vsub.f32 %v1945, %v2194
      %v2196 = vand.u32 %v2195, 4294901760
      %2197 = vmatmul.f32.gmra.mxu0 %v2196
      %v2198 = vpop.f32.mrf.mxu0
      %v2199 = vadd.f32 %v2155, %v2198
      %v2200 = vand.u32 %v1946, 4294901760
      %v2201 = vsub.f32 %v1946, %v2200
      %v2202 = vand.u32 %v2201, 4294901760
      %2203 = vmatmul.f32.gmra.mxu0 %v2202
      %v2204 = vpop.f32.mrf.mxu0
      %v2205 = vadd.f32 %v2160, %v2204
      %2206 = vdwg.mxu0
      %v2207 = vand.u32 %v1933, 4294901760
      %v2208 = vsub.f32 %v1933, %v2207
      %v2209 = vand.u32 %v2208, 4294901760
      %2210 = vmatpush.msra.mxu0 %v2209
      %v2211 = vand.u32 %v1932, 4294901760
      %v2212 = vsub.f32 %v1932, %v2211
      %v2213 = vand.u32 %v2212, 4294901760
      %2214 = vmatpush.msra.mxu0 %v2213
      %v2215 = vand.u32 %v1931, 4294901760
      %v2216 = vsub.f32 %v1931, %v2215
      %v2217 = vand.u32 %v2216, 4294901760
      %2218 = vmatpush.msra.mxu0 %v2217
      %v2219 = vand.u32 %v1930, 4294901760
      %v2220 = vsub.f32 %v1930, %v2219
      %v2221 = vand.u32 %v2220, 4294901760
      %2222 = vmatpush.msra.mxu0 %v2221
      %v2223 = vand.u32 %v1929, 4294901760
      %v2224 = vsub.f32 %v1929, %v2223
      %v2225 = vand.u32 %v2224, 4294901760
      %2226 = vmatpush.msra.mxu0 %v2225
      %v2227 = vand.u32 %v1928, 4294901760
      %v2228 = vsub.f32 %v1928, %v2227
      %v2229 = vand.u32 %v2228, 4294901760
      %2230 = vmatpush.msra.mxu0 %v2229
      %v2231 = vand.u32 %v1927, 4294901760
      %v2232 = vsub.f32 %v1927, %v2231
      %v2233 = vand.u32 %v2232, 4294901760
      %2234 = vmatpush.msra.mxu0 %v2233
      %v2235 = vand.u32 %v1926, 4294901760
      %v2236 = vsub.f32 %v1926, %v2235
      %v2237 = vand.u32 %v2236, 4294901760
      %2238 = vmatpush.msra.mxu0 %v2237
      %v2239 = vand.u32 %v1925, 4294901760
      %v2240 = vsub.f32 %v1925, %v2239
      %v2241 = vand.u32 %v2240, 4294901760
      %2242 = vmatpush.msra.mxu0 %v2241
      %v2243 = vand.u32 %v1924, 4294901760
      %v2244 = vsub.f32 %v1924, %v2243
      %v2245 = vand.u32 %v2244, 4294901760
      %2246 = vmatpush.msra.mxu0 %v2245
      %v2247 = vand.u32 %v1923, 4294901760
      %v2248 = vsub.f32 %v1923, %v2247
      %v2249 = vand.u32 %v2248, 4294901760
      %2250 = vmatpush.msra.mxu0 %v2249
      %v2251 = vand.u32 %v1922, 4294901760
      %v2252 = vsub.f32 %v1922, %v2251
      %v2253 = vand.u32 %v2252, 4294901760
      %2254 = vmatpush.msra.mxu0 %v2253
      %v2255 = vand.u32 %v1921, 4294901760
      %v2256 = vsub.f32 %v1921, %v2255
      %v2257 = vand.u32 %v2256, 4294901760
      %2258 = vmatpush.msra.mxu0 %v2257
      %v2259 = vand.u32 %v1920, 4294901760
      %v2260 = vsub.f32 %v1920, %v2259
      %v2261 = vand.u32 %v2260, 4294901760
      %2262 = vmatpush.msra.mxu0 %v2261
      %v2263 = vand.u32 %v1919, 4294901760
      %v2264 = vsub.f32 %v1919, %v2263
      %v2265 = vand.u32 %v2264, 4294901760
      %2266 = vmatpush.msra.mxu0 %v2265
      %v2267 = vand.u32 %v1918, 4294901760
      %v2268 = vsub.f32 %v1918, %v2267
      %v2269 = vand.u32 %v2268, 4294901760
      %2270 = vmatpush.msra.mxu0 %v2269
      %v2271 = vand.u32 %v1945, 4294901760
      %2272 = vmatmul.f32.gmra.mxu0 %v2271
      %v2273 = vpop.f32.mrf.mxu0
      %v2274 = vadd.f32 %v2199, %v2273
      %v2275 = vand.u32 %v1946, 4294901760
      %2276 = vmatmul.f32.gmra.mxu0 %v2275
      %v2277 = vpop.f32.mrf.mxu0
      %v2278 = vadd.f32 %v2205, %v2277
      %2279 = vdwg.mxu0
      %v2280 = vand.u32 %v1933, 4294901760
      %2281 = vmatpush.msra.mxu0 %v2280
      %v2282 = vand.u32 %v1932, 4294901760
      %2283 = vmatpush.msra.mxu0 %v2282
      %v2284 = vand.u32 %v1931, 4294901760
      %2285 = vmatpush.msra.mxu0 %v2284
      %v2286 = vand.u32 %v1930, 4294901760
      %2287 = vmatpush.msra.mxu0 %v2286
      %v2288 = vand.u32 %v1929, 4294901760
      %2289 = vmatpush.msra.mxu0 %v2288
      %v2290 = vand.u32 %v1928, 4294901760
      %2291 = vmatpush.msra.mxu0 %v2290
      %v2292 = vand.u32 %v1927, 4294901760
      %2293 = vmatpush.msra.mxu0 %v2292
      %v2294 = vand.u32 %v1926, 4294901760
      %2295 = vmatpush.msra.mxu0 %v2294
      %v2296 = vand.u32 %v1925, 4294901760
      %2297 = vmatpush.msra.mxu0 %v2296
      %v2298 = vand.u32 %v1924, 4294901760
      %2299 = vmatpush.msra.mxu0 %v2298
      %v2300 = vand.u32 %v1923, 4294901760
      %2301 = vmatpush.msra.mxu0 %v2300
      %v2302 = vand.u32 %v1922, 4294901760
      %2303 = vmatpush.msra.mxu0 %v2302
      %v2304 = vand.u32 %v1921, 4294901760
      %2305 = vmatpush.msra.mxu0 %v2304
      %v2306 = vand.u32 %v1920, 4294901760
      %2307 = vmatpush.msra.mxu0 %v2306
      %v2308 = vand.u32 %v1919, 4294901760
      %2309 = vmatpush.msra.mxu0 %v2308
      %v2310 = vand.u32 %v1918, 4294901760
      %2311 = vmatpush.msra.mxu0 %v2310
      %v2312 = vand.u32 %v1945, 4294901760
      %2313 = vmatmul.f32.gmra.mxu0 %v2312
      %v2314 = vpop.f32.mrf.mxu0
      %v2315 = vadd.f32 %v2274, %v2314
      %v2316 = vand.u32 %v1946, 4294901760
      %2317 = vmatmul.f32.gmra.mxu0 %v2316
      %v2318 = vpop.f32.mrf.mxu0
      %v2319 = vadd.f32 %v2278, %v2318
      %2320 = vdwg.mxu0
      %v2321 = vadd.f32 %v1911, %v2315
      %v2322 = vadd.f32 %v1912, %v2319
      %v2323 = vld [vmem:[%s1503 + $0x1] sm:$0xf]
      %v2324 = vld [vmem:[%s1503 + $0x9] sm:$0xf]
      %v2325 = vld [vmem:[%s1503 + $0x11] sm:$0xf]
      %v2326 = vld [vmem:[%s1503 + $0x19] sm:$0xf]
      %v2327 = vld [vmem:[%s263 + $0x280] sm:$0xff]
      %v2328 = vld [vmem:[%s263 + $0x288] sm:$0xff]
      %v2329 = vld [vmem:[%s263 + $0x290] sm:$0xff]
      %v2330 = vld [vmem:[%s263 + $0x298] sm:$0xff]
      %v2331 = vld [vmem:[%s263 + $0x2a0] sm:$0xff]
      %v2332 = vld [vmem:[%s263 + $0x2a8] sm:$0xff]
      %v2333 = vld [vmem:[%s263 + $0x2b0] sm:$0xff]
      %v2334 = vld [vmem:[%s263 + $0x2b8] sm:$0xff]
      %v2335 = vld [vmem:[%s263 + $0x2c0] sm:$0xff]
      %v2336 = vld [vmem:[%s263 + $0x2c8] sm:$0xff]
      %v2337 = vld [vmem:[%s263 + $0x2d0] sm:$0xff]
      %v2338 = vld [vmem:[%s263 + $0x2d8] sm:$0xff]
      %v2339 = vld [vmem:[%s263 + $0x2e0] sm:$0xff]
      %v2340 = vld [vmem:[%s263 + $0x2e8] sm:$0xff]
      %v2341 = vld [vmem:[%s263 + $0x2f0] sm:$0xff]
      %v2342 = vld [vmem:[%s263 + $0x2f8] sm:$0xff]
      %2347 = vst [vmem:[#allocation1] ss:$2 sm:$0xff] %v2323
      %s2348 = scalar_lea.vmem [#allocation1], 1
      %2349 = vst [vmem:[%s2348] ss:$2 sm:$0xff] %v2324
      %s2350 = scalar_lea.vmem [#allocation1], 16
      %2351 = vst [vmem:[%s2350] ss:$2 sm:$0xff] %v2325
      %s2352 = scalar_lea.vmem [#allocation1], 17
      %2353 = vst [vmem:[%s2352] ss:$2 sm:$0xff] %v2326
      %v2354 = vld.sshfl [vmem:[#allocation1] sm:$0xff pattern:$0x75316420]
      %v2355 = vld.sshfl [vmem:[#allocation1 + $0x10] sm:$0xff pattern:$0x75316420]
      %v2358 = vand.u32 %v2342, 4294901760
      %2359 = vmatpush.msra.mxu0 %v2358
      %v2360 = vand.u32 %v2341, 4294901760
      %2361 = vmatpush.msra.mxu0 %v2360
      %v2362 = vand.u32 %v2340, 4294901760
      %2363 = vmatpush.msra.mxu0 %v2362
      %v2364 = vand.u32 %v2339, 4294901760
      %2365 = vmatpush.msra.mxu0 %v2364
      %v2366 = vand.u32 %v2338, 4294901760
      %2367 = vmatpush.msra.mxu0 %v2366
      %v2368 = vand.u32 %v2337, 4294901760
      %2369 = vmatpush.msra.mxu0 %v2368
      %v2370 = vand.u32 %v2336, 4294901760
      %2371 = vmatpush.msra.mxu0 %v2370
      %v2372 = vand.u32 %v2335, 4294901760
      %2373 = vmatpush.msra.mxu0 %v2372
      %v2374 = vand.u32 %v2334, 4294901760
      %2375 = vmatpush.msra.mxu0 %v2374
      %v2376 = vand.u32 %v2333, 4294901760
      %2377 = vmatpush.msra.mxu0 %v2376
      %v2378 = vand.u32 %v2332, 4294901760
      %2379 = vmatpush.msra.mxu0 %v2378
      %v2380 = vand.u32 %v2331, 4294901760
      %2381 = vmatpush.msra.mxu0 %v2380
      %v2382 = vand.u32 %v2330, 4294901760
      %2383 = vmatpush.msra.mxu0 %v2382
      %v2384 = vand.u32 %v2329, 4294901760
      %2385 = vmatpush.msra.mxu0 %v2384
      %v2386 = vand.u32 %v2328, 4294901760
      %2387 = vmatpush.msra.mxu0 %v2386
      %v2388 = vand.u32 %v2327, 4294901760
      %2389 = vmatpush.msra.mxu0 %v2388
      %v2390 = vand.u32 %v2354, 4294901760
      %v2391 = vsub.f32 %v2354, %v2390
      %v2392 = vand.u32 %v2391, 4294901760
      %v2393 = vsub.f32 %v2391, %v2392
      %v2394 = vand.u32 %v2393, 4294901760
      %2395 = vmatmul.f32.gmra.mxu0 %v2394
      %v2396 = vpop.f32.mrf.mxu0
      %v2397 = vadd.f32 0.0, %v2396
      %v2398 = vand.u32 %v2355, 4294901760
      %v2399 = vsub.f32 %v2355, %v2398
      %v2400 = vand.u32 %v2399, 4294901760
      %v2401 = vsub.f32 %v2399, %v2400
      %v2402 = vand.u32 %v2401, 4294901760
      %2403 = vmatmul.f32.gmra.mxu0 %v2402
      %v2404 = vpop.f32.mrf.mxu0
      %v2405 = vadd.f32 0.0, %v2404
      %2406 = vdwg.mxu0
      %v2407 = vand.u32 %v2342, 4294901760
      %v2408 = vsub.f32 %v2342, %v2407
      %v2409 = vand.u32 %v2408, 4294901760
      %v2410 = vsub.f32 %v2408, %v2409
      %v2411 = vand.u32 %v2410, 4294901760
      %2412 = vmatpush.msra.mxu0 %v2411
      %v2413 = vand.u32 %v2341, 4294901760
      %v2414 = vsub.f32 %v2341, %v2413
      %v2415 = vand.u32 %v2414, 4294901760
      %v2416 = vsub.f32 %v2414, %v2415
      %v2417 = vand.u32 %v2416, 4294901760
      %2418 = vmatpush.msra.mxu0 %v2417
      %v2419 = vand.u32 %v2340, 4294901760
      %v2420 = vsub.f32 %v2340, %v2419
      %v2421 = vand.u32 %v2420, 4294901760
      %v2422 = vsub.f32 %v2420, %v2421
      %v2423 = vand.u32 %v2422, 4294901760
      %2424 = vmatpush.msra.mxu0 %v2423
      %v2425 = vand.u32 %v2339, 4294901760
      %v2426 = vsub.f32 %v2339, %v2425
      %v2427 = vand.u32 %v2426, 4294901760
      %v2428 = vsub.f32 %v2426, %v2427
      %v2429 = vand.u32 %v2428, 4294901760
      %2430 = vmatpush.msra.mxu0 %v2429
      %v2431 = vand.u32 %v2338, 4294901760
      %v2432 = vsub.f32 %v2338, %v2431
      %v2433 = vand.u32 %v2432, 4294901760
      %v2434 = vsub.f32 %v2432, %v2433
      %v2435 = vand.u32 %v2434, 4294901760
      %2436 = vmatpush.msra.mxu0 %v2435
      %v2437 = vand.u32 %v2337, 4294901760
      %v2438 = vsub.f32 %v2337, %v2437
      %v2439 = vand.u32 %v2438, 4294901760
      %v2440 = vsub.f32 %v2438, %v2439
      %v2441 = vand.u32 %v2440, 4294901760
      %2442 = vmatpush.msra.mxu0 %v2441
      %v2443 = vand.u32 %v2336, 4294901760
      %v2444 = vsub.f32 %v2336, %v2443
      %v2445 = vand.u32 %v2444, 4294901760
      %v2446 = vsub.f32 %v2444, %v2445
      %v2447 = vand.u32 %v2446, 4294901760
      %2448 = vmatpush.msra.mxu0 %v2447
      %v2449 = vand.u32 %v2335, 4294901760
      %v2450 = vsub.f32 %v2335, %v2449
      %v2451 = vand.u32 %v2450, 4294901760
      %v2452 = vsub.f32 %v2450, %v2451
      %v2453 = vand.u32 %v2452, 4294901760
      %2454 = vmatpush.msra.mxu0 %v2453
      %v2455 = vand.u32 %v2334, 4294901760
      %v2456 = vsub.f32 %v2334, %v2455
      %v2457 = vand.u32 %v2456, 4294901760
      %v2458 = vsub.f32 %v2456, %v2457
      %v2459 = vand.u32 %v2458, 4294901760
      %2460 = vmatpush.msra.mxu0 %v2459
      %v2461 = vand.u32 %v2333, 4294901760
      %v2462 = vsub.f32 %v2333, %v2461
      %v2463 = vand.u32 %v2462, 4294901760
      %v2464 = vsub.f32 %v2462, %v2463
      %v2465 = vand.u32 %v2464, 4294901760
      %2466 = vmatpush.msra.mxu0 %v2465
      %v2467 = vand.u32 %v2332, 4294901760
      %v2468 = vsub.f32 %v2332, %v2467
      %v2469 = vand.u32 %v2468, 4294901760
      %v2470 = vsub.f32 %v2468, %v2469
      %v2471 = vand.u32 %v2470, 4294901760
      %2472 = vmatpush.msra.mxu0 %v2471
      %v2473 = vand.u32 %v2331, 4294901760
      %v2474 = vsub.f32 %v2331, %v2473
      %v2475 = vand.u32 %v2474, 4294901760
      %v2476 = vsub.f32 %v2474, %v2475
      %v2477 = vand.u32 %v2476, 4294901760
      %2478 = vmatpush.msra.mxu0 %v2477
      %v2479 = vand.u32 %v2330, 4294901760
      %v2480 = vsub.f32 %v2330, %v2479
      %v2481 = vand.u32 %v2480, 4294901760
      %v2482 = vsub.f32 %v2480, %v2481
      %v2483 = vand.u32 %v2482, 4294901760
      %2484 = vmatpush.msra.mxu0 %v2483
      %v2485 = vand.u32 %v2329, 4294901760
      %v2486 = vsub.f32 %v2329, %v2485
      %v2487 = vand.u32 %v2486, 4294901760
      %v2488 = vsub.f32 %v2486, %v2487
      %v2489 = vand.u32 %v2488, 4294901760
      %2490 = vmatpush.msra.mxu0 %v2489
      %v2491 = vand.u32 %v2328, 4294901760
      %v2492 = vsub.f32 %v2328, %v2491
      %v2493 = vand.u32 %v2492, 4294901760
      %v2494 = vsub.f32 %v2492, %v2493
      %v2495 = vand.u32 %v2494, 4294901760
      %2496 = vmatpush.msra.mxu0 %v2495
      %v2497 = vand.u32 %v2327, 4294901760
      %v2498 = vsub.f32 %v2327, %v2497
      %v2499 = vand.u32 %v2498, 4294901760
      %v2500 = vsub.f32 %v2498, %v2499
      %v2501 = vand.u32 %v2500, 4294901760
      %2502 = vmatpush.msra.mxu0 %v2501
      %v2503 = vand.u32 %v2354, 4294901760
      %2504 = vmatmul.f32.gmra.mxu0 %v2503
      %v2505 = vpop.f32.mrf.mxu0
      %v2506 = vadd.f32 %v2397, %v2505
      %v2507 = vand.u32 %v2355, 4294901760
      %2508 = vmatmul.f32.gmra.mxu0 %v2507
      %v2509 = vpop.f32.mrf.mxu0
      %v2510 = vadd.f32 %v2405, %v2509
      %2511 = vdwg.mxu0
      %v2512 = vand.u32 %v2342, 4294901760
      %v2513 = vsub.f32 %v2342, %v2512
      %2514 = vmatpush.msra.mxu0 %v2513
      %v2515 = vand.u32 %v2341, 4294901760
      %v2516 = vsub.f32 %v2341, %v2515
      %2517 = vmatpush.msra.mxu0 %v2516
      %v2518 = vand.u32 %v2340, 4294901760
      %v2519 = vsub.f32 %v2340, %v2518
      %2520 = vmatpush.msra.mxu0 %v2519
      %v2521 = vand.u32 %v2339, 4294901760
      %v2522 = vsub.f32 %v2339, %v2521
      %2523 = vmatpush.msra.mxu0 %v2522
      %v2524 = vand.u32 %v2338, 4294901760
      %v2525 = vsub.f32 %v2338, %v2524
      %2526 = vmatpush.msra.mxu0 %v2525
      %v2527 = vand.u32 %v2337, 4294901760
      %v2528 = vsub.f32 %v2337, %v2527
      %2529 = vmatpush.msra.mxu0 %v2528
      %v2530 = vand.u32 %v2336, 4294901760
      %v2531 = vsub.f32 %v2336, %v2530
      %2532 = vmatpush.msra.mxu0 %v2531
      %v2533 = vand.u32 %v2335, 4294901760
      %v2534 = vsub.f32 %v2335, %v2533
      %2535 = vmatpush.msra.mxu0 %v2534
      %v2536 = vand.u32 %v2334, 4294901760
      %v2537 = vsub.f32 %v2334, %v2536
      %2538 = vmatpush.msra.mxu0 %v2537
      %v2539 = vand.u32 %v2333, 4294901760
      %v2540 = vsub.f32 %v2333, %v2539
      %2541 = vmatpush.msra.mxu0 %v2540
      %v2542 = vand.u32 %v2332, 4294901760
      %v2543 = vsub.f32 %v2332, %v2542
      %2544 = vmatpush.msra.mxu0 %v2543
      %v2545 = vand.u32 %v2331, 4294901760
      %v2546 = vsub.f32 %v2331, %v2545
      %2547 = vmatpush.msra.mxu0 %v2546
      %v2548 = vand.u32 %v2330, 4294901760
      %v2549 = vsub.f32 %v2330, %v2548
      %2550 = vmatpush.msra.mxu0 %v2549
      %v2551 = vand.u32 %v2329, 4294901760
      %v2552 = vsub.f32 %v2329, %v2551
      %2553 = vmatpush.msra.mxu0 %v2552
      %v2554 = vand.u32 %v2328, 4294901760
      %v2555 = vsub.f32 %v2328, %v2554
      %2556 = vmatpush.msra.mxu0 %v2555
      %v2557 = vand.u32 %v2327, 4294901760
      %v2558 = vsub.f32 %v2327, %v2557
      %2559 = vmatpush.msra.mxu0 %v2558
      %v2560 = vand.u32 %v2354, 4294901760
      %v2561 = vsub.f32 %v2354, %v2560
      %2562 = vmatmul.f32.gmra.mxu0 %v2561
      %v2563 = vpop.f32.mrf.mxu0
      %v2564 = vadd.f32 %v2506, %v2563
      %v2565 = vand.u32 %v2355, 4294901760
      %v2566 = vsub.f32 %v2355, %v2565
      %2567 = vmatmul.f32.gmra.mxu0 %v2566
      %v2568 = vpop.f32.mrf.mxu0
      %v2569 = vadd.f32 %v2510, %v2568
      %2570 = vdwg.mxu0
      %v2571 = vand.u32 %v2342, 4294901760
      %2572 = vmatpush.msra.mxu0 %v2571
      %v2573 = vand.u32 %v2341, 4294901760
      %2574 = vmatpush.msra.mxu0 %v2573
      %v2575 = vand.u32 %v2340, 4294901760
      %2576 = vmatpush.msra.mxu0 %v2575
      %v2577 = vand.u32 %v2339, 4294901760
      %2578 = vmatpush.msra.mxu0 %v2577
      %v2579 = vand.u32 %v2338, 4294901760
      %2580 = vmatpush.msra.mxu0 %v2579
      %v2581 = vand.u32 %v2337, 4294901760
      %2582 = vmatpush.msra.mxu0 %v2581
      %v2583 = vand.u32 %v2336, 4294901760
      %2584 = vmatpush.msra.mxu0 %v2583
      %v2585 = vand.u32 %v2335, 4294901760
      %2586 = vmatpush.msra.mxu0 %v2585
      %v2587 = vand.u32 %v2334, 4294901760
      %2588 = vmatpush.msra.mxu0 %v2587
      %v2589 = vand.u32 %v2333, 4294901760
      %2590 = vmatpush.msra.mxu0 %v2589
      %v2591 = vand.u32 %v2332, 4294901760
      %2592 = vmatpush.msra.mxu0 %v2591
      %v2593 = vand.u32 %v2331, 4294901760
      %2594 = vmatpush.msra.mxu0 %v2593
      %v2595 = vand.u32 %v2330, 4294901760
      %2596 = vmatpush.msra.mxu0 %v2595
      %v2597 = vand.u32 %v2329, 4294901760
      %2598 = vmatpush.msra.mxu0 %v2597
      %v2599 = vand.u32 %v2328, 4294901760
      %2600 = vmatpush.msra.mxu0 %v2599
      %v2601 = vand.u32 %v2327, 4294901760
      %2602 = vmatpush.msra.mxu0 %v2601
      %v2603 = vand.u32 %v2354, 4294901760
      %v2604 = vsub.f32 %v2354, %v2603
      %v2605 = vand.u32 %v2604, 4294901760
      %2606 = vmatmul.f32.gmra.mxu0 %v2605
      %v2607 = vpop.f32.mrf.mxu0
      %v2608 = vadd.f32 %v2564, %v2607
      %v2609 = vand.u32 %v2355, 4294901760
      %v2610 = vsub.f32 %v2355, %v2609
      %v2611 = vand.u32 %v2610, 4294901760
      %2612 = vmatmul.f32.gmra.mxu0 %v2611
      %v2613 = vpop.f32.mrf.mxu0
      %v2614 = vadd.f32 %v2569, %v2613
      %2615 = vdwg.mxu0
      %v2616 = vand.u32 %v2342, 4294901760
      %v2617 = vsub.f32 %v2342, %v2616
      %v2618 = vand.u32 %v2617, 4294901760
      %2619 = vmatpush.msra.mxu0 %v2618
      %v2620 = vand.u32 %v2341, 4294901760
      %v2621 = vsub.f32 %v2341, %v2620
      %v2622 = vand.u32 %v2621, 4294901760
      %2623 = vmatpush.msra.mxu0 %v2622
      %v2624 = vand.u32 %v2340, 4294901760
      %v2625 = vsub.f32 %v2340, %v2624
      %v2626 = vand.u32 %v2625, 4294901760
      %2627 = vmatpush.msra.mxu0 %v2626
      %v2628 = vand.u32 %v2339, 4294901760
      %v2629 = vsub.f32 %v2339, %v2628
      %v2630 = vand.u32 %v2629, 4294901760
      %2631 = vmatpush.msra.mxu0 %v2630
      %v2632 = vand.u32 %v2338, 4294901760
      %v2633 = vsub.f32 %v2338, %v2632
      %v2634 = vand.u32 %v2633, 4294901760
      %2635 = vmatpush.msra.mxu0 %v2634
      %v2636 = vand.u32 %v2337, 4294901760
      %v2637 = vsub.f32 %v2337, %v2636
      %v2638 = vand.u32 %v2637, 4294901760
      %2639 = vmatpush.msra.mxu0 %v2638
      %v2640 = vand.u32 %v2336, 4294901760
      %v2641 = vsub.f32 %v2336, %v2640
      %v2642 = vand.u32 %v2641, 4294901760
      %2643 = vmatpush.msra.mxu0 %v2642
      %v2644 = vand.u32 %v2335, 4294901760
      %v2645 = vsub.f32 %v2335, %v2644
      %v2646 = vand.u32 %v2645, 4294901760
      %2647 = vmatpush.msra.mxu0 %v2646
      %v2648 = vand.u32 %v2334, 4294901760
      %v2649 = vsub.f32 %v2334, %v2648
      %v2650 = vand.u32 %v2649, 4294901760
      %2651 = vmatpush.msra.mxu0 %v2650
      %v2652 = vand.u32 %v2333, 4294901760
      %v2653 = vsub.f32 %v2333, %v2652
      %v2654 = vand.u32 %v2653, 4294901760
      %2655 = vmatpush.msra.mxu0 %v2654
      %v2656 = vand.u32 %v2332, 4294901760
      %v2657 = vsub.f32 %v2332, %v2656
      %v2658 = vand.u32 %v2657, 4294901760
      %2659 = vmatpush.msra.mxu0 %v2658
      %v2660 = vand.u32 %v2331, 4294901760
      %v2661 = vsub.f32 %v2331, %v2660
      %v2662 = vand.u32 %v2661, 4294901760
      %2663 = vmatpush.msra.mxu0 %v2662
      %v2664 = vand.u32 %v2330, 4294901760
      %v2665 = vsub.f32 %v2330, %v2664
      %v2666 = vand.u32 %v2665, 4294901760
      %2667 = vmatpush.msra.mxu0 %v2666
      %v2668 = vand.u32 %v2329, 4294901760
      %v2669 = vsub.f32 %v2329, %v2668
      %v2670 = vand.u32 %v2669, 4294901760
      %2671 = vmatpush.msra.mxu0 %v2670
      %v2672 = vand.u32 %v2328, 4294901760
      %v2673 = vsub.f32 %v2328, %v2672
      %v2674 = vand.u32 %v2673, 4294901760
      %2675 = vmatpush.msra.mxu0 %v2674
      %v2676 = vand.u32 %v2327, 4294901760
      %v2677 = vsub.f32 %v2327, %v2676
      %v2678 = vand.u32 %v2677, 4294901760
      %2679 = vmatpush.msra.mxu0 %v2678
      %v2680 = vand.u32 %v2354, 4294901760
      %2681 = vmatmul.f32.gmra.mxu0 %v2680
      %v2682 = vpop.f32.mrf.mxu0
      %v2683 = vadd.f32 %v2608, %v2682
      %v2684 = vand.u32 %v2355, 4294901760
      %2685 = vmatmul.f32.gmra.mxu0 %v2684
      %v2686 = vpop.f32.mrf.mxu0
      %v2687 = vadd.f32 %v2614, %v2686
      %2688 = vdwg.mxu0
      %v2689 = vand.u32 %v2342, 4294901760
      %2690 = vmatpush.msra.mxu0 %v2689
      %v2691 = vand.u32 %v2341, 4294901760
      %2692 = vmatpush.msra.mxu0 %v2691
      %v2693 = vand.u32 %v2340, 4294901760
      %2694 = vmatpush.msra.mxu0 %v2693
      %v2695 = vand.u32 %v2339, 4294901760
      %2696 = vmatpush.msra.mxu0 %v2695
      %v2697 = vand.u32 %v2338, 4294901760
      %2698 = vmatpush.msra.mxu0 %v2697
      %v2699 = vand.u32 %v2337, 4294901760
      %2700 = vmatpush.msra.mxu0 %v2699
      %v2701 = vand.u32 %v2336, 4294901760
      %2702 = vmatpush.msra.mxu0 %v2701
      %v2703 = vand.u32 %v2335, 4294901760
      %2704 = vmatpush.msra.mxu0 %v2703
      %v2705 = vand.u32 %v2334, 4294901760
      %2706 = vmatpush.msra.mxu0 %v2705
      %v2707 = vand.u32 %v2333, 4294901760
      %2708 = vmatpush.msra.mxu0 %v2707
      %v2709 = vand.u32 %v2332, 4294901760
      %2710 = vmatpush.msra.mxu0 %v2709
      %v2711 = vand.u32 %v2331, 4294901760
      %2712 = vmatpush.msra.mxu0 %v2711
      %v2713 = vand.u32 %v2330, 4294901760
      %2714 = vmatpush.msra.mxu0 %v2713
      %v2715 = vand.u32 %v2329, 4294901760
      %2716 = vmatpush.msra.mxu0 %v2715
      %v2717 = vand.u32 %v2328, 4294901760
      %2718 = vmatpush.msra.mxu0 %v2717
      %v2719 = vand.u32 %v2327, 4294901760
      %2720 = vmatpush.msra.mxu0 %v2719
      %v2721 = vand.u32 %v2354, 4294901760
      %2722 = vmatmul.f32.gmra.mxu0 %v2721
      %v2723 = vpop.f32.mrf.mxu0
      %v2724 = vadd.f32 %v2683, %v2723
      %v2725 = vand.u32 %v2355, 4294901760
      %2726 = vmatmul.f32.gmra.mxu0 %v2725
      %v2727 = vpop.f32.mrf.mxu0
      %v2728 = vadd.f32 %v2687, %v2727
      %2729 = vdwg.mxu0
      %v2730 = vadd.f32 %v2321, %v2724
      %v2731 = vadd.f32 %v2322, %v2728
      %s2732 = scalar_lea.vmem %s258, 8
      %v2733 = vld [vmem:[%s2732] sm:$0xf]
      %v2734 = vld [vmem:[%s2732 + $0x8] sm:$0xf]
      %v2735 = vld [vmem:[%s2732 + $0x10] sm:$0xf]
      %v2736 = vld [vmem:[%s2732 + $0x18] sm:$0xf]
      %v2737 = vld [vmem:[%s263 + $0x300] sm:$0xff]
      %v2738 = vld [vmem:[%s263 + $0x308] sm:$0xff]
      %v2739 = vld [vmem:[%s263 + $0x310] sm:$0xff]
      %v2740 = vld [vmem:[%s263 + $0x318] sm:$0xff]
      %v2741 = vld [vmem:[%s263 + $0x320] sm:$0xff]
      %v2742 = vld [vmem:[%s263 + $0x328] sm:$0xff]
      %v2743 = vld [vmem:[%s263 + $0x330] sm:$0xff]
      %v2744 = vld [vmem:[%s263 + $0x338] sm:$0xff]
      %v2745 = vld [vmem:[%s263 + $0x340] sm:$0xff]
      %v2746 = vld [vmem:[%s263 + $0x348] sm:$0xff]
      %v2747 = vld [vmem:[%s263 + $0x350] sm:$0xff]
      %v2748 = vld [vmem:[%s263 + $0x358] sm:$0xff]
      %v2749 = vld [vmem:[%s263 + $0x360] sm:$0xff]
      %v2750 = vld [vmem:[%s263 + $0x368] sm:$0xff]
      %v2751 = vld [vmem:[%s263 + $0x370] sm:$0xff]
      %v2752 = vld [vmem:[%s263 + $0x378] sm:$0xff]
      %2757 = vst [vmem:[#allocation1] ss:$2 sm:$0xff] %v2733
      %s2758 = scalar_lea.vmem [#allocation1], 1
      %2759 = vst [vmem:[%s2758] ss:$2 sm:$0xff] %v2734
      %s2760 = scalar_lea.vmem [#allocation1], 16
      %2761 = vst [vmem:[%s2760] ss:$2 sm:$0xff] %v2735
      %s2762 = scalar_lea.vmem [#allocation1], 17
      %2763 = vst [vmem:[%s2762] ss:$2 sm:$0xff] %v2736
      %v2764 = vld.sshfl [vmem:[#allocation1] sm:$0xff pattern:$0x75316420]
      %v2765 = vld.sshfl [vmem:[#allocation1 + $0x10] sm:$0xff pattern:$0x75316420]
      %v2768 = vand.u32 %v2752, 4294901760
      %2769 = vmatpush.msra.mxu0 %v2768
      %v2770 = vand.u32 %v2751, 4294901760
      %2771 = vmatpush.msra.mxu0 %v2770
      %v2772 = vand.u32 %v2750, 4294901760
      %2773 = vmatpush.msra.mxu0 %v2772
      %v2774 = vand.u32 %v2749, 4294901760
      %2775 = vmatpush.msra.mxu0 %v2774
      %v2776 = vand.u32 %v2748, 4294901760
      %2777 = vmatpush.msra.mxu0 %v2776
      %v2778 = vand.u32 %v2747, 4294901760
      %2779 = vmatpush.msra.mxu0 %v2778
      %v2780 = vand.u32 %v2746, 4294901760
      %2781 = vmatpush.msra.mxu0 %v2780
      %v2782 = vand.u32 %v2745, 4294901760
      %2783 = vmatpush.msra.mxu0 %v2782
      %v2784 = vand.u32 %v2744, 4294901760
      %2785 = vmatpush.msra.mxu0 %v2784
      %v2786 = vand.u32 %v2743, 4294901760
      %2787 = vmatpush.msra.mxu0 %v2786
      %v2788 = vand.u32 %v2742, 4294901760
      %2789 = vmatpush.msra.mxu0 %v2788
      %v2790 = vand.u32 %v2741, 4294901760
      %2791 = vmatpush.msra.mxu0 %v2790
      %v2792 = vand.u32 %v2740, 4294901760
      %2793 = vmatpush.msra.mxu0 %v2792
      %v2794 = vand.u32 %v2739, 4294901760
      %2795 = vmatpush.msra.mxu0 %v2794
      %v2796 = vand.u32 %v2738, 4294901760
      %2797 = vmatpush.msra.mxu0 %v2796
      %v2798 = vand.u32 %v2737, 4294901760
      %2799 = vmatpush.msra.mxu0 %v2798
      %v2800 = vand.u32 %v2764, 4294901760
      %v2801 = vsub.f32 %v2764, %v2800
      %v2802 = vand.u32 %v2801, 4294901760
      %v2803 = vsub.f32 %v2801, %v2802
      %v2804 = vand.u32 %v2803, 4294901760
      %2805 = vmatmul.f32.gmra.mxu0 %v2804
      %v2806 = vpop.f32.mrf.mxu0
      %v2807 = vadd.f32 0.0, %v2806
      %v2808 = vand.u32 %v2765, 4294901760
      %v2809 = vsub.f32 %v2765, %v2808
      %v2810 = vand.u32 %v2809, 4294901760
      %v2811 = vsub.f32 %v2809, %v2810
      %v2812 = vand.u32 %v2811, 4294901760
      %2813 = vmatmul.f32.gmra.mxu0 %v2812
      %v2814 = vpop.f32.mrf.mxu0
      %v2815 = vadd.f32 0.0, %v2814
      %2816 = vdwg.mxu0
      %v2817 = vand.u32 %v2752, 4294901760
      %v2818 = vsub.f32 %v2752, %v2817
      %v2819 = vand.u32 %v2818, 4294901760
      %v2820 = vsub.f32 %v2818, %v2819
      %v2821 = vand.u32 %v2820, 4294901760
      %2822 = vmatpush.msra.mxu0 %v2821
      %v2823 = vand.u32 %v2751, 4294901760
      %v2824 = vsub.f32 %v2751, %v2823
      %v2825 = vand.u32 %v2824, 4294901760
      %v2826 = vsub.f32 %v2824, %v2825
      %v2827 = vand.u32 %v2826, 4294901760
      %2828 = vmatpush.msra.mxu0 %v2827
      %v2829 = vand.u32 %v2750, 4294901760
      %v2830 = vsub.f32 %v2750, %v2829
      %v2831 = vand.u32 %v2830, 4294901760
      %v2832 = vsub.f32 %v2830, %v2831
      %v2833 = vand.u32 %v2832, 4294901760
      %2834 = vmatpush.msra.mxu0 %v2833
      %v2835 = vand.u32 %v2749, 4294901760
      %v2836 = vsub.f32 %v2749, %v2835
      %v2837 = vand.u32 %v2836, 4294901760
      %v2838 = vsub.f32 %v2836, %v2837
      %v2839 = vand.u32 %v2838, 4294901760
      %2840 = vmatpush.msra.mxu0 %v2839
      %v2841 = vand.u32 %v2748, 4294901760
      %v2842 = vsub.f32 %v2748, %v2841
      %v2843 = vand.u32 %v2842, 4294901760
      %v2844 = vsub.f32 %v2842, %v2843
      %v2845 = vand.u32 %v2844, 4294901760
      %2846 = vmatpush.msra.mxu0 %v2845
      %v2847 = vand.u32 %v2747, 4294901760
      %v2848 = vsub.f32 %v2747, %v2847
      %v2849 = vand.u32 %v2848, 4294901760
      %v2850 = vsub.f32 %v2848, %v2849
      %v2851 = vand.u32 %v2850, 4294901760
      %2852 = vmatpush.msra.mxu0 %v2851
      %v2853 = vand.u32 %v2746, 4294901760
      %v2854 = vsub.f32 %v2746, %v2853
      %v2855 = vand.u32 %v2854, 4294901760
      %v2856 = vsub.f32 %v2854, %v2855
      %v2857 = vand.u32 %v2856, 4294901760
      %2858 = vmatpush.msra.mxu0 %v2857
      %v2859 = vand.u32 %v2745, 4294901760
      %v2860 = vsub.f32 %v2745, %v2859
      %v2861 = vand.u32 %v2860, 4294901760
      %v2862 = vsub.f32 %v2860, %v2861
      %v2863 = vand.u32 %v2862, 4294901760
      %2864 = vmatpush.msra.mxu0 %v2863
      %v2865 = vand.u32 %v2744, 4294901760
      %v2866 = vsub.f32 %v2744, %v2865
      %v2867 = vand.u32 %v2866, 4294901760
      %v2868 = vsub.f32 %v2866, %v2867
      %v2869 = vand.u32 %v2868, 4294901760
      %2870 = vmatpush.msra.mxu0 %v2869
      %v2871 = vand.u32 %v2743, 4294901760
      %v2872 = vsub.f32 %v2743, %v2871
      %v2873 = vand.u32 %v2872, 4294901760
      %v2874 = vsub.f32 %v2872, %v2873
      %v2875 = vand.u32 %v2874, 4294901760
      %2876 = vmatpush.msra.mxu0 %v2875
      %v2877 = vand.u32 %v2742, 4294901760
      %v2878 = vsub.f32 %v2742, %v2877
      %v2879 = vand.u32 %v2878, 4294901760
      %v2880 = vsub.f32 %v2878, %v2879
      %v2881 = vand.u32 %v2880, 4294901760
      %2882 = vmatpush.msra.mxu0 %v2881
      %v2883 = vand.u32 %v2741, 4294901760
      %v2884 = vsub.f32 %v2741, %v2883
      %v2885 = vand.u32 %v2884, 4294901760
      %v2886 = vsub.f32 %v2884, %v2885
      %v2887 = vand.u32 %v2886, 4294901760
      %2888 = vmatpush.msra.mxu0 %v2887
      %v2889 = vand.u32 %v2740, 4294901760
      %v2890 = vsub.f32 %v2740, %v2889
      %v2891 = vand.u32 %v2890, 4294901760
      %v2892 = vsub.f32 %v2890, %v2891
      %v2893 = vand.u32 %v2892, 4294901760
      %2894 = vmatpush.msra.mxu0 %v2893
      %v2895 = vand.u32 %v2739, 4294901760
      %v2896 = vsub.f32 %v2739, %v2895
      %v2897 = vand.u32 %v2896, 4294901760
      %v2898 = vsub.f32 %v2896, %v2897
      %v2899 = vand.u32 %v2898, 4294901760
      %2900 = vmatpush.msra.mxu0 %v2899
      %v2901 = vand.u32 %v2738, 4294901760
      %v2902 = vsub.f32 %v2738, %v2901
      %v2903 = vand.u32 %v2902, 4294901760
      %v2904 = vsub.f32 %v2902, %v2903
      %v2905 = vand.u32 %v2904, 4294901760
      %2906 = vmatpush.msra.mxu0 %v2905
      %v2907 = vand.u32 %v2737, 4294901760
      %v2908 = vsub.f32 %v2737, %v2907
      %v2909 = vand.u32 %v2908, 4294901760
      %v2910 = vsub.f32 %v2908, %v2909
      %v2911 = vand.u32 %v2910, 4294901760
      %2912 = vmatpush.msra.mxu0 %v2911
      %v2913 = vand.u32 %v2764, 4294901760
      %2914 = vmatmul.f32.gmra.mxu0 %v2913
      %v2915 = vpop.f32.mrf.mxu0
      %v2916 = vadd.f32 %v2807, %v2915
      %v2917 = vand.u32 %v2765, 4294901760
      %2918 = vmatmul.f32.gmra.mxu0 %v2917
      %v2919 = vpop.f32.mrf.mxu0
      %v2920 = vadd.f32 %v2815, %v2919
      %2921 = vdwg.mxu0
      %v2922 = vand.u32 %v2752, 4294901760
      %v2923 = vsub.f32 %v2752, %v2922
      %2924 = vmatpush.msra.mxu0 %v2923
      %v2925 = vand.u32 %v2751, 4294901760
      %v2926 = vsub.f32 %v2751, %v2925
      %2927 = vmatpush.msra.mxu0 %v2926
      %v2928 = vand.u32 %v2750, 4294901760
      %v2929 = vsub.f32 %v2750, %v2928
      %2930 = vmatpush.msra.mxu0 %v2929
      %v2931 = vand.u32 %v2749, 4294901760
      %v2932 = vsub.f32 %v2749, %v2931
      %2933 = vmatpush.msra.mxu0 %v2932
      %v2934 = vand.u32 %v2748, 4294901760
      %v2935 = vsub.f32 %v2748, %v2934
      %2936 = vmatpush.msra.mxu0 %v2935
      %v2937 = vand.u32 %v2747, 4294901760
      %v2938 = vsub.f32 %v2747, %v2937
      %2939 = vmatpush.msra.mxu0 %v2938
      %v2940 = vand.u32 %v2746, 4294901760
      %v2941 = vsub.f32 %v2746, %v2940
      %2942 = vmatpush.msra.mxu0 %v2941
      %v2943 = vand.u32 %v2745, 4294901760
      %v2944 = vsub.f32 %v2745, %v2943
      %2945 = vmatpush.msra.mxu0 %v2944
      %v2946 = vand.u32 %v2744, 4294901760
      %v2947 = vsub.f32 %v2744, %v2946
      %2948 = vmatpush.msra.mxu0 %v2947
      %v2949 = vand.u32 %v2743, 4294901760
      %v2950 = vsub.f32 %v2743, %v2949
      %2951 = vmatpush.msra.mxu0 %v2950
      %v2952 = vand.u32 %v2742, 4294901760
      %v2953 = vsub.f32 %v2742, %v2952
      %2954 = vmatpush.msra.mxu0 %v2953
      %v2955 = vand.u32 %v2741, 4294901760
      %v2956 = vsub.f32 %v2741, %v2955
      %2957 = vmatpush.msra.mxu0 %v2956
      %v2958 = vand.u32 %v2740, 4294901760
      %v2959 = vsub.f32 %v2740, %v2958
      %2960 = vmatpush.msra.mxu0 %v2959
      %v2961 = vand.u32 %v2739, 4294901760
      %v2962 = vsub.f32 %v2739, %v2961
      %2963 = vmatpush.msra.mxu0 %v2962
      %v2964 = vand.u32 %v2738, 4294901760
      %v2965 = vsub.f32 %v2738, %v2964
      %2966 = vmatpush.msra.mxu0 %v2965
      %v2967 = vand.u32 %v2737, 4294901760
      %v2968 = vsub.f32 %v2737, %v2967
      %2969 = vmatpush.msra.mxu0 %v2968
      %v2970 = vand.u32 %v2764, 4294901760
      %v2971 = vsub.f32 %v2764, %v2970
      %2972 = vmatmul.f32.gmra.mxu0 %v2971
      %v2973 = vpop.f32.mrf.mxu0
      %v2974 = vadd.f32 %v2916, %v2973
      %v2975 = vand.u32 %v2765, 4294901760
      %v2976 = vsub.f32 %v2765, %v2975
      %2977 = vmatmul.f32.gmra.mxu0 %v2976
      %v2978 = vpop.f32.mrf.mxu0
      %v2979 = vadd.f32 %v2920, %v2978
      %2980 = vdwg.mxu0
      %v2981 = vand.u32 %v2752, 4294901760
      %2982 = vmatpush.msra.mxu0 %v2981
      %v2983 = vand.u32 %v2751, 4294901760
      %2984 = vmatpush.msra.mxu0 %v2983
      %v2985 = vand.u32 %v2750, 4294901760
      %2986 = vmatpush.msra.mxu0 %v2985
      %v2987 = vand.u32 %v2749, 4294901760
      %2988 = vmatpush.msra.mxu0 %v2987
      %v2989 = vand.u32 %v2748, 4294901760
      %2990 = vmatpush.msra.mxu0 %v2989
      %v2991 = vand.u32 %v2747, 4294901760
      %2992 = vmatpush.msra.mxu0 %v2991
      %v2993 = vand.u32 %v2746, 4294901760
      %2994 = vmatpush.msra.mxu0 %v2993
      %v2995 = vand.u32 %v2745, 4294901760
      %2996 = vmatpush.msra.mxu0 %v2995
      %v2997 = vand.u32 %v2744, 4294901760
      %2998 = vmatpush.msra.mxu0 %v2997
      %v2999 = vand.u32 %v2743, 4294901760
      %3000 = vmatpush.msra.mxu0 %v2999
      %v3001 = vand.u32 %v2742, 4294901760
      %3002 = vmatpush.msra.mxu0 %v3001
      %v3003 = vand.u32 %v2741, 4294901760
      %3004 = vmatpush.msra.mxu0 %v3003
      %v3005 = vand.u32 %v2740, 4294901760
      %3006 = vmatpush.msra.mxu0 %v3005
      %v3007 = vand.u32 %v2739, 4294901760
      %3008 = vmatpush.msra.mxu0 %v3007
      %v3009 = vand.u32 %v2738, 4294901760
      %3010 = vmatpush.msra.mxu0 %v3009
      %v3011 = vand.u32 %v2737, 4294901760
      %3012 = vmatpush.msra.mxu0 %v3011
      %v3013 = vand.u32 %v2764, 4294901760
      %v3014 = vsub.f32 %v2764, %v3013
      %v3015 = vand.u32 %v3014, 4294901760
      %3016 = vmatmul.f32.gmra.mxu0 %v3015
      %v3017 = vpop.f32.mrf.mxu0
      %v3018 = vadd.f32 %v2974, %v3017
      %v3019 = vand.u32 %v2765, 4294901760
      %v3020 = vsub.f32 %v2765, %v3019
      %v3021 = vand.u32 %v3020, 4294901760
      %3022 = vmatmul.f32.gmra.mxu0 %v3021
      %v3023 = vpop.f32.mrf.mxu0
      %v3024 = vadd.f32 %v2979, %v3023
      %3025 = vdwg.mxu0
      %v3026 = vand.u32 %v2752, 4294901760
      %v3027 = vsub.f32 %v2752, %v3026
      %v3028 = vand.u32 %v3027, 4294901760
      %3029 = vmatpush.msra.mxu0 %v3028
      %v3030 = vand.u32 %v2751, 4294901760
      %v3031 = vsub.f32 %v2751, %v3030
      %v3032 = vand.u32 %v3031, 4294901760
      %3033 = vmatpush.msra.mxu0 %v3032
      %v3034 = vand.u32 %v2750, 4294901760
      %v3035 = vsub.f32 %v2750, %v3034
      %v3036 = vand.u32 %v3035, 4294901760
      %3037 = vmatpush.msra.mxu0 %v3036
      %v3038 = vand.u32 %v2749, 4294901760
      %v3039 = vsub.f32 %v2749, %v3038
      %v3040 = vand.u32 %v3039, 4294901760
      %3041 = vmatpush.msra.mxu0 %v3040
      %v3042 = vand.u32 %v2748, 4294901760
      %v3043 = vsub.f32 %v2748, %v3042
      %v3044 = vand.u32 %v3043, 4294901760
      %3045 = vmatpush.msra.mxu0 %v3044
      %v3046 = vand.u32 %v2747, 4294901760
      %v3047 = vsub.f32 %v2747, %v3046
      %v3048 = vand.u32 %v3047, 4294901760
      %3049 = vmatpush.msra.mxu0 %v3048
      %v3050 = vand.u32 %v2746, 4294901760
      %v3051 = vsub.f32 %v2746, %v3050
      %v3052 = vand.u32 %v3051, 4294901760
      %3053 = vmatpush.msra.mxu0 %v3052
      %v3054 = vand.u32 %v2745, 4294901760
      %v3055 = vsub.f32 %v2745, %v3054
      %v3056 = vand.u32 %v3055, 4294901760
      %3057 = vmatpush.msra.mxu0 %v3056
      %v3058 = vand.u32 %v2744, 4294901760
      %v3059 = vsub.f32 %v2744, %v3058
      %v3060 = vand.u32 %v3059, 4294901760
      %3061 = vmatpush.msra.mxu0 %v3060
      %v3062 = vand.u32 %v2743, 4294901760
      %v3063 = vsub.f32 %v2743, %v3062
      %v3064 = vand.u32 %v3063, 4294901760
      %3065 = vmatpush.msra.mxu0 %v3064
      %v3066 = vand.u32 %v2742, 4294901760
      %v3067 = vsub.f32 %v2742, %v3066
      %v3068 = vand.u32 %v3067, 4294901760
      %3069 = vmatpush.msra.mxu0 %v3068
      %v3070 = vand.u32 %v2741, 4294901760
      %v3071 = vsub.f32 %v2741, %v3070
      %v3072 = vand.u32 %v3071, 4294901760
      %3073 = vmatpush.msra.mxu0 %v3072
      %v3074 = vand.u32 %v2740, 4294901760
      %v3075 = vsub.f32 %v2740, %v3074
      %v3076 = vand.u32 %v3075, 4294901760
      %3077 = vmatpush.msra.mxu0 %v3076
      %v3078 = vand.u32 %v2739, 4294901760
      %v3079 = vsub.f32 %v2739, %v3078
      %v3080 = vand.u32 %v3079, 4294901760
      %3081 = vmatpush.msra.mxu0 %v3080
      %v3082 = vand.u32 %v2738, 4294901760
      %v3083 = vsub.f32 %v2738, %v3082
      %v3084 = vand.u32 %v3083, 4294901760
      %3085 = vmatpush.msra.mxu0 %v3084
      %v3086 = vand.u32 %v2737, 4294901760
      %v3087 = vsub.f32 %v2737, %v3086
      %v3088 = vand.u32 %v3087, 4294901760
      %3089 = vmatpush.msra.mxu0 %v3088
      %v3090 = vand.u32 %v2764, 4294901760
      %3091 = vmatmul.f32.gmra.mxu0 %v3090
      %v3092 = vpop.f32.mrf.mxu0
      %v3093 = vadd.f32 %v3018, %v3092
      %v3094 = vand.u32 %v2765, 4294901760
      %3095 = vmatmul.f32.gmra.mxu0 %v3094
      %v3096 = vpop.f32.mrf.mxu0
      %v3097 = vadd.f32 %v3024, %v3096
      %3098 = vdwg.mxu0
      %v3099 = vand.u32 %v2752, 4294901760
      %3100 = vmatpush.msra.mxu0 %v3099
      %v3101 = vand.u32 %v2751, 4294901760
      %3102 = vmatpush.msra.mxu0 %v3101
      %v3103 = vand.u32 %v2750, 4294901760
      %3104 = vmatpush.msra.mxu0 %v3103
      %v3105 = vand.u32 %v2749, 4294901760
      %3106 = vmatpush.msra.mxu0 %v3105
      %v3107 = vand.u32 %v2748, 4294901760
      %3108 = vmatpush.msra.mxu0 %v3107
      %v3109 = vand.u32 %v2747, 4294901760
      %3110 = vmatpush.msra.mxu0 %v3109
      %v3111 = vand.u32 %v2746, 4294901760
      %3112 = vmatpush.msra.mxu0 %v3111
      %v3113 = vand.u32 %v2745, 4294901760
      %3114 = vmatpush.msra.mxu0 %v3113
      %v3115 = vand.u32 %v2744, 4294901760
      %3116 = vmatpush.msra.mxu0 %v3115
      %v3117 = vand.u32 %v2743, 4294901760
      %3118 = vmatpush.msra.mxu0 %v3117
      %v3119 = vand.u32 %v2742, 4294901760
      %3120 = vmatpush.msra.mxu0 %v3119
      %v3121 = vand.u32 %v2741, 4294901760
      %3122 = vmatpush.msra.mxu0 %v3121
      %v3123 = vand.u32 %v2740, 4294901760
      %3124 = vmatpush.msra.mxu0 %v3123
      %v3125 = vand.u32 %v2739, 4294901760
      %3126 = vmatpush.msra.mxu0 %v3125
      %v3127 = vand.u32 %v2738, 4294901760
      %3128 = vmatpush.msra.mxu0 %v3127
      %v3129 = vand.u32 %v2737, 4294901760
      %3130 = vmatpush.msra.mxu0 %v3129
      %v3131 = vand.u32 %v2764, 4294901760
      %3132 = vmatmul.f32.gmra.mxu0 %v3131
      %v3133 = vpop.f32.mrf.mxu0
      %v3134 = vadd.f32 %v3093, %v3133
      %v3135 = vand.u32 %v2765, 4294901760
      %3136 = vmatmul.f32.gmra.mxu0 %v3135
      %v3137 = vpop.f32.mrf.mxu0
      %v3138 = vadd.f32 %v3097, %v3137
      %3139 = vdwg.mxu0
      %v3140 = vadd.f32 %v2730, %v3134
      %v3141 = vadd.f32 %v2731, %v3138
      %s3142 = scalar_lea.vmem %s258, 48
      %v3143 = vld [vmem:[%s3142] sm:$0xf]
      %v3144 = vld [vmem:[%s3142 + $0x8] sm:$0xf]
      %v3145 = vld [vmem:[%s3142 + $0x10] sm:$0xf]
      %v3146 = vld [vmem:[%s3142 + $0x18] sm:$0xf]
      %v3147 = vld [vmem:[%s263 + $0x380] sm:$0xff]
      %v3148 = vld [vmem:[%s263 + $0x388] sm:$0xff]
      %v3149 = vld [vmem:[%s263 + $0x390] sm:$0xff]
      %v3150 = vld [vmem:[%s263 + $0x398] sm:$0xff]
      %v3151 = vld [vmem:[%s263 + $0x3a0] sm:$0xff]
      %v3152 = vld [vmem:[%s263 + $0x3a8] sm:$0xff]
      %v3153 = vld [vmem:[%s263 + $0x3b0] sm:$0xff]
      %v3154 = vld [vmem:[%s263 + $0x3b8] sm:$0xff]
      %v3155 = vld [vmem:[%s263 + $0x3c0] sm:$0xff]
      %v3156 = vld [vmem:[%s263 + $0x3c8] sm:$0xff]
      %v3157 = vld [vmem:[%s263 + $0x3d0] sm:$0xff]
      %v3158 = vld [vmem:[%s263 + $0x3d8] sm:$0xff]
      %v3159 = vld [vmem:[%s263 + $0x3e0] sm:$0xff]
      %v3160 = vld [vmem:[%s263 + $0x3e8] sm:$0xff]
      %v3161 = vld [vmem:[%s263 + $0x3f0] sm:$0xff]
      %v3162 = vld [vmem:[%s263 + $0x3f8] sm:$0xff]
      %3167 = vst [vmem:[#allocation1] ss:$2 sm:$0xff] %v3143
      %s3168 = scalar_lea.vmem [#allocation1], 1
      %3169 = vst [vmem:[%s3168] ss:$2 sm:$0xff] %v3144
      %s3170 = scalar_lea.vmem [#allocation1], 16
      %3171 = vst [vmem:[%s3170] ss:$2 sm:$0xff] %v3145
      %s3172 = scalar_lea.vmem [#allocation1], 17
      %3173 = vst [vmem:[%s3172] ss:$2 sm:$0xff] %v3146
      %v3174 = vld.sshfl [vmem:[#allocation1] sm:$0xff pattern:$0x75316420]
      %v3175 = vld.sshfl [vmem:[#allocation1 + $0x10] sm:$0xff pattern:$0x75316420]
      %v3178 = vand.u32 %v3162, 4294901760
      %3179 = vmatpush.msra.mxu0 %v3178
      %v3180 = vand.u32 %v3161, 4294901760
      %3181 = vmatpush.msra.mxu0 %v3180
      %v3182 = vand.u32 %v3160, 4294901760
      %3183 = vmatpush.msra.mxu0 %v3182
      %v3184 = vand.u32 %v3159, 4294901760
      %3185 = vmatpush.msra.mxu0 %v3184
      %v3186 = vand.u32 %v3158, 4294901760
      %3187 = vmatpush.msra.mxu0 %v3186
      %v3188 = vand.u32 %v3157, 4294901760
      %3189 = vmatpush.msra.mxu0 %v3188
      %v3190 = vand.u32 %v3156, 4294901760
      %3191 = vmatpush.msra.mxu0 %v3190
      %v3192 = vand.u32 %v3155, 4294901760
      %3193 = vmatpush.msra.mxu0 %v3192
      %v3194 = vand.u32 %v3154, 4294901760
      %3195 = vmatpush.msra.mxu0 %v3194
      %v3196 = vand.u32 %v3153, 4294901760
      %3197 = vmatpush.msra.mxu0 %v3196
      %v3198 = vand.u32 %v3152, 4294901760
      %3199 = vmatpush.msra.mxu0 %v3198
      %v3200 = vand.u32 %v3151, 4294901760
      %3201 = vmatpush.msra.mxu0 %v3200
      %v3202 = vand.u32 %v3150, 4294901760
      %3203 = vmatpush.msra.mxu0 %v3202
      %v3204 = vand.u32 %v3149, 4294901760
      %3205 = vmatpush.msra.mxu0 %v3204
      %v3206 = vand.u32 %v3148, 4294901760
      %3207 = vmatpush.msra.mxu0 %v3206
      %v3208 = vand.u32 %v3147, 4294901760
      %3209 = vmatpush.msra.mxu0 %v3208
      %v3210 = vand.u32 %v3174, 4294901760
      %v3211 = vsub.f32 %v3174, %v3210
      %v3212 = vand.u32 %v3211, 4294901760
      %v3213 = vsub.f32 %v3211, %v3212
      %v3214 = vand.u32 %v3213, 4294901760
      %3215 = vmatmul.f32.gmra.mxu0 %v3214
      %v3216 = vpop.f32.mrf.mxu0
      %v3217 = vadd.f32 0.0, %v3216
      %v3218 = vand.u32 %v3175, 4294901760
      %v3219 = vsub.f32 %v3175, %v3218
      %v3220 = vand.u32 %v3219, 4294901760
      %v3221 = vsub.f32 %v3219, %v3220
      %v3222 = vand.u32 %v3221, 4294901760
      %3223 = vmatmul.f32.gmra.mxu0 %v3222
      %v3224 = vpop.f32.mrf.mxu0
      %v3225 = vadd.f32 0.0, %v3224
      %3226 = vdwg.mxu0
      %v3227 = vand.u32 %v3162, 4294901760
      %v3228 = vsub.f32 %v3162, %v3227
      %v3229 = vand.u32 %v3228, 4294901760
      %v3230 = vsub.f32 %v3228, %v3229
      %v3231 = vand.u32 %v3230, 4294901760
      %3232 = vmatpush.msra.mxu0 %v3231
      %v3233 = vand.u32 %v3161, 4294901760
      %v3234 = vsub.f32 %v3161, %v3233
      %v3235 = vand.u32 %v3234, 4294901760
      %v3236 = vsub.f32 %v3234, %v3235
      %v3237 = vand.u32 %v3236, 4294901760
      %3238 = vmatpush.msra.mxu0 %v3237
      %v3239 = vand.u32 %v3160, 4294901760
      %v3240 = vsub.f32 %v3160, %v3239
      %v3241 = vand.u32 %v3240, 4294901760
      %v3242 = vsub.f32 %v3240, %v3241
      %v3243 = vand.u32 %v3242, 4294901760
      %3244 = vmatpush.msra.mxu0 %v3243
      %v3245 = vand.u32 %v3159, 4294901760
      %v3246 = vsub.f32 %v3159, %v3245
      %v3247 = vand.u32 %v3246, 4294901760
      %v3248 = vsub.f32 %v3246, %v3247
      %v3249 = vand.u32 %v3248, 4294901760
      %3250 = vmatpush.msra.mxu0 %v3249
      %v3251 = vand.u32 %v3158, 4294901760
      %v3252 = vsub.f32 %v3158, %v3251
      %v3253 = vand.u32 %v3252, 4294901760
      %v3254 = vsub.f32 %v3252, %v3253
      %v3255 = vand.u32 %v3254, 4294901760
      %3256 = vmatpush.msra.mxu0 %v3255
      %v3257 = vand.u32 %v3157, 4294901760
      %v3258 = vsub.f32 %v3157, %v3257
      %v3259 = vand.u32 %v3258, 4294901760
      %v3260 = vsub.f32 %v3258, %v3259
      %v3261 = vand.u32 %v3260, 4294901760
      %3262 = vmatpush.msra.mxu0 %v3261
      %v3263 = vand.u32 %v3156, 4294901760
      %v3264 = vsub.f32 %v3156, %v3263
      %v3265 = vand.u32 %v3264, 4294901760
      %v3266 = vsub.f32 %v3264, %v3265
      %v3267 = vand.u32 %v3266, 4294901760
      %3268 = vmatpush.msra.mxu0 %v3267
      %v3269 = vand.u32 %v3155, 4294901760
      %v3270 = vsub.f32 %v3155, %v3269
      %v3271 = vand.u32 %v3270, 4294901760
      %v3272 = vsub.f32 %v3270, %v3271
      %v3273 = vand.u32 %v3272, 4294901760
      %3274 = vmatpush.msra.mxu0 %v3273
      %v3275 = vand.u32 %v3154, 4294901760
      %v3276 = vsub.f32 %v3154, %v3275
      %v3277 = vand.u32 %v3276, 4294901760
      %v3278 = vsub.f32 %v3276, %v3277
      %v3279 = vand.u32 %v3278, 4294901760
      %3280 = vmatpush.msra.mxu0 %v3279
      %v3281 = vand.u32 %v3153, 4294901760
      %v3282 = vsub.f32 %v3153, %v3281
      %v3283 = vand.u32 %v3282, 4294901760
      %v3284 = vsub.f32 %v3282, %v3283
      %v3285 = vand.u32 %v3284, 4294901760
      %3286 = vmatpush.msra.mxu0 %v3285
      %v3287 = vand.u32 %v3152, 4294901760
      %v3288 = vsub.f32 %v3152, %v3287
      %v3289 = vand.u32 %v3288, 4294901760
      %v3290 = vsub.f32 %v3288, %v3289
      %v3291 = vand.u32 %v3290, 4294901760
      %3292 = vmatpush.msra.mxu0 %v3291
      %v3293 = vand.u32 %v3151, 4294901760
      %v3294 = vsub.f32 %v3151, %v3293
      %v3295 = vand.u32 %v3294, 4294901760
      %v3296 = vsub.f32 %v3294, %v3295
      %v3297 = vand.u32 %v3296, 4294901760
      %3298 = vmatpush.msra.mxu0 %v3297
      %v3299 = vand.u32 %v3150, 4294901760
      %v3300 = vsub.f32 %v3150, %v3299
      %v3301 = vand.u32 %v3300, 4294901760
      %v3302 = vsub.f32 %v3300, %v3301
      %v3303 = vand.u32 %v3302, 4294901760
      %3304 = vmatpush.msra.mxu0 %v3303
      %v3305 = vand.u32 %v3149, 4294901760
      %v3306 = vsub.f32 %v3149, %v3305
      %v3307 = vand.u32 %v3306, 4294901760
      %v3308 = vsub.f32 %v3306, %v3307
      %v3309 = vand.u32 %v3308, 4294901760
      %3310 = vmatpush.msra.mxu0 %v3309
      %v3311 = vand.u32 %v3148, 4294901760
      %v3312 = vsub.f32 %v3148, %v3311
      %v3313 = vand.u32 %v3312, 4294901760
      %v3314 = vsub.f32 %v3312, %v3313
      %v3315 = vand.u32 %v3314, 4294901760
      %3316 = vmatpush.msra.mxu0 %v3315
      %v3317 = vand.u32 %v3147, 4294901760
      %v3318 = vsub.f32 %v3147, %v3317
      %v3319 = vand.u32 %v3318, 4294901760
      %v3320 = vsub.f32 %v3318, %v3319
      %v3321 = vand.u32 %v3320, 4294901760
      %3322 = vmatpush.msra.mxu0 %v3321
      %v3323 = vand.u32 %v3174, 4294901760
      %3324 = vmatmul.f32.gmra.mxu0 %v3323
      %v3325 = vpop.f32.mrf.mxu0
      %v3326 = vadd.f32 %v3217, %v3325
      %v3327 = vand.u32 %v3175, 4294901760
      %3328 = vmatmul.f32.gmra.mxu0 %v3327
      %v3329 = vpop.f32.mrf.mxu0
      %v3330 = vadd.f32 %v3225, %v3329
      %3331 = vdwg.mxu0
      %v3332 = vand.u32 %v3162, 4294901760
      %v3333 = vsub.f32 %v3162, %v3332
      %3334 = vmatpush.msra.mxu0 %v3333
      %v3335 = vand.u32 %v3161, 4294901760
      %v3336 = vsub.f32 %v3161, %v3335
      %3337 = vmatpush.msra.mxu0 %v3336
      %v3338 = vand.u32 %v3160, 4294901760
      %v3339 = vsub.f32 %v3160, %v3338
      %3340 = vmatpush.msra.mxu0 %v3339
      %v3341 = vand.u32 %v3159, 4294901760
      %v3342 = vsub.f32 %v3159, %v3341
      %3343 = vmatpush.msra.mxu0 %v3342
      %v3344 = vand.u32 %v3158, 4294901760
      %v3345 = vsub.f32 %v3158, %v3344
      %3346 = vmatpush.msra.mxu0 %v3345
      %v3347 = vand.u32 %v3157, 4294901760
      %v3348 = vsub.f32 %v3157, %v3347
      %3349 = vmatpush.msra.mxu0 %v3348
      %v3350 = vand.u32 %v3156, 4294901760
      %v3351 = vsub.f32 %v3156, %v3350
      %3352 = vmatpush.msra.mxu0 %v3351
      %v3353 = vand.u32 %v3155, 4294901760
      %v3354 = vsub.f32 %v3155, %v3353
      %3355 = vmatpush.msra.mxu0 %v3354
      %v3356 = vand.u32 %v3154, 4294901760
      %v3357 = vsub.f32 %v3154, %v3356
      %3358 = vmatpush.msra.mxu0 %v3357
      %v3359 = vand.u32 %v3153, 4294901760
      %v3360 = vsub.f32 %v3153, %v3359
      %3361 = vmatpush.msra.mxu0 %v3360
      %v3362 = vand.u32 %v3152, 4294901760
      %v3363 = vsub.f32 %v3152, %v3362
      %3364 = vmatpush.msra.mxu0 %v3363
      %v3365 = vand.u32 %v3151, 4294901760
      %v3366 = vsub.f32 %v3151, %v3365
      %3367 = vmatpush.msra.mxu0 %v3366
      %v3368 = vand.u32 %v3150, 4294901760
      %v3369 = vsub.f32 %v3150, %v3368
      %3370 = vmatpush.msra.mxu0 %v3369
      %v3371 = vand.u32 %v3149, 4294901760
      %v3372 = vsub.f32 %v3149, %v3371
      %3373 = vmatpush.msra.mxu0 %v3372
      %v3374 = vand.u32 %v3148, 4294901760
      %v3375 = vsub.f32 %v3148, %v3374
      %3376 = vmatpush.msra.mxu0 %v3375
      %v3377 = vand.u32 %v3147, 4294901760
      %v3378 = vsub.f32 %v3147, %v3377
      %3379 = vmatpush.msra.mxu0 %v3378
      %v3380 = vand.u32 %v3174, 4294901760
      %v3381 = vsub.f32 %v3174, %v3380
      %3382 = vmatmul.f32.gmra.mxu0 %v3381
      %v3383 = vpop.f32.mrf.mxu0
      %v3384 = vadd.f32 %v3326, %v3383
      %v3385 = vand.u32 %v3175, 4294901760
      %v3386 = vsub.f32 %v3175, %v3385
      %3387 = vmatmul.f32.gmra.mxu0 %v3386
      %v3388 = vpop.f32.mrf.mxu0
      %v3389 = vadd.f32 %v3330, %v3388
      %3390 = vdwg.mxu0
      %v3391 = vand.u32 %v3162, 4294901760
      %3392 = vmatpush.msra.mxu0 %v3391
      %v3393 = vand.u32 %v3161, 4294901760
      %3394 = vmatpush.msra.mxu0 %v3393
      %v3395 = vand.u32 %v3160, 4294901760
      %3396 = vmatpush.msra.mxu0 %v3395
      %v3397 = vand.u32 %v3159, 4294901760
      %3398 = vmatpush.msra.mxu0 %v3397
      %v3399 = vand.u32 %v3158, 4294901760
      %3400 = vmatpush.msra.mxu0 %v3399
      %v3401 = vand.u32 %v3157, 4294901760
      %3402 = vmatpush.msra.mxu0 %v3401
      %v3403 = vand.u32 %v3156, 4294901760
      %3404 = vmatpush.msra.mxu0 %v3403
      %v3405 = vand.u32 %v3155, 4294901760
      %3406 = vmatpush.msra.mxu0 %v3405
      %v3407 = vand.u32 %v3154, 4294901760
      %3408 = vmatpush.msra.mxu0 %v3407
      %v3409 = vand.u32 %v3153, 4294901760
      %3410 = vmatpush.msra.mxu0 %v3409
      %v3411 = vand.u32 %v3152, 4294901760
      %3412 = vmatpush.msra.mxu0 %v3411
      %v3413 = vand.u32 %v3151, 4294901760
      %3414 = vmatpush.msra.mxu0 %v3413
      %v3415 = vand.u32 %v3150, 4294901760
      %3416 = vmatpush.msra.mxu0 %v3415
      %v3417 = vand.u32 %v3149, 4294901760
      %3418 = vmatpush.msra.mxu0 %v3417
      %v3419 = vand.u32 %v3148, 4294901760
      %3420 = vmatpush.msra.mxu0 %v3419
      %v3421 = vand.u32 %v3147, 4294901760
      %3422 = vmatpush.msra.mxu0 %v3421
      %v3423 = vand.u32 %v3174, 4294901760
      %v3424 = vsub.f32 %v3174, %v3423
      %v3425 = vand.u32 %v3424, 4294901760
      %3426 = vmatmul.f32.gmra.mxu0 %v3425
      %v3427 = vpop.f32.mrf.mxu0
      %v3428 = vadd.f32 %v3384, %v3427
      %v3429 = vand.u32 %v3175, 4294901760
      %v3430 = vsub.f32 %v3175, %v3429
      %v3431 = vand.u32 %v3430, 4294901760
      %3432 = vmatmul.f32.gmra.mxu0 %v3431
      %v3433 = vpop.f32.mrf.mxu0
      %v3434 = vadd.f32 %v3389, %v3433
      %3435 = vdwg.mxu0
      %v3436 = vand.u32 %v3162, 4294901760
      %v3437 = vsub.f32 %v3162, %v3436
      %v3438 = vand.u32 %v3437, 4294901760
      %3439 = vmatpush.msra.mxu0 %v3438
      %v3440 = vand.u32 %v3161, 4294901760
      %v3441 = vsub.f32 %v3161, %v3440
      %v3442 = vand.u32 %v3441, 4294901760
      %3443 = vmatpush.msra.mxu0 %v3442
      %v3444 = vand.u32 %v3160, 4294901760
      %v3445 = vsub.f32 %v3160, %v3444
      %v3446 = vand.u32 %v3445, 4294901760
      %3447 = vmatpush.msra.mxu0 %v3446
      %v3448 = vand.u32 %v3159, 4294901760
      %v3449 = vsub.f32 %v3159, %v3448
      %v3450 = vand.u32 %v3449, 4294901760
      %3451 = vmatpush.msra.mxu0 %v3450
      %v3452 = vand.u32 %v3158, 4294901760
      %v3453 = vsub.f32 %v3158, %v3452
      %v3454 = vand.u32 %v3453, 4294901760
      %3455 = vmatpush.msra.mxu0 %v3454
      %v3456 = vand.u32 %v3157, 4294901760
      %v3457 = vsub.f32 %v3157, %v3456
      %v3458 = vand.u32 %v3457, 4294901760
      %3459 = vmatpush.msra.mxu0 %v3458
      %v3460 = vand.u32 %v3156, 4294901760
      %v3461 = vsub.f32 %v3156, %v3460
      %v3462 = vand.u32 %v3461, 4294901760
      %3463 = vmatpush.msra.mxu0 %v3462
      %v3464 = vand.u32 %v3155, 4294901760
      %v3465 = vsub.f32 %v3155, %v3464
      %v3466 = vand.u32 %v3465, 4294901760
      %3467 = vmatpush.msra.mxu0 %v3466
      %v3468 = vand.u32 %v3154, 4294901760
      %v3469 = vsub.f32 %v3154, %v3468
      %v3470 = vand.u32 %v3469, 4294901760
      %3471 = vmatpush.msra.mxu0 %v3470
      %v3472 = vand.u32 %v3153, 4294901760
      %v3473 = vsub.f32 %v3153, %v3472
      %v3474 = vand.u32 %v3473, 4294901760
      %3475 = vmatpush.msra.mxu0 %v3474
      %v3476 = vand.u32 %v3152, 4294901760
      %v3477 = vsub.f32 %v3152, %v3476
      %v3478 = vand.u32 %v3477, 4294901760
      %3479 = vmatpush.msra.mxu0 %v3478
      %v3480 = vand.u32 %v3151, 4294901760
      %v3481 = vsub.f32 %v3151, %v3480
      %v3482 = vand.u32 %v3481, 4294901760
      %3483 = vmatpush.msra.mxu0 %v3482
      %v3484 = vand.u32 %v3150, 4294901760
      %v3485 = vsub.f32 %v3150, %v3484
      %v3486 = vand.u32 %v3485, 4294901760
      %3487 = vmatpush.msra.mxu0 %v3486
      %v3488 = vand.u32 %v3149, 4294901760
      %v3489 = vsub.f32 %v3149, %v3488
      %v3490 = vand.u32 %v3489, 4294901760
      %3491 = vmatpush.msra.mxu0 %v3490
      %v3492 = vand.u32 %v3148, 4294901760
      %v3493 = vsub.f32 %v3148, %v3492
      %v3494 = vand.u32 %v3493, 4294901760
      %3495 = vmatpush.msra.mxu0 %v3494
      %v3496 = vand.u32 %v3147, 4294901760
      %v3497 = vsub.f32 %v3147, %v3496
      %v3498 = vand.u32 %v3497, 4294901760
      %3499 = vmatpush.msra.mxu0 %v3498
      %v3500 = vand.u32 %v3174, 4294901760
      %3501 = vmatmul.f32.gmra.mxu0 %v3500
      %v3502 = vpop.f32.mrf.mxu0
      %v3503 = vadd.f32 %v3428, %v3502
      %v3504 = vand.u32 %v3175, 4294901760
      %3505 = vmatmul.f32.gmra.mxu0 %v3504
      %v3506 = vpop.f32.mrf.mxu0
      %v3507 = vadd.f32 %v3434, %v3506
      %3508 = vdwg.mxu0
      %v3509 = vand.u32 %v3162, 4294901760
      %3510 = vmatpush.msra.mxu0 %v3509
      %v3511 = vand.u32 %v3161, 4294901760
      %3512 = vmatpush.msra.mxu0 %v3511
      %v3513 = vand.u32 %v3160, 4294901760
      %3514 = vmatpush.msra.mxu0 %v3513
      %v3515 = vand.u32 %v3159, 4294901760
      %3516 = vmatpush.msra.mxu0 %v3515
      %v3517 = vand.u32 %v3158, 4294901760
      %3518 = vmatpush.msra.mxu0 %v3517
      %v3519 = vand.u32 %v3157, 4294901760
      %3520 = vmatpush.msra.mxu0 %v3519
      %v3521 = vand.u32 %v3156, 4294901760
      %3522 = vmatpush.msra.mxu0 %v3521
      %v3523 = vand.u32 %v3155, 4294901760
      %3524 = vmatpush.msra.mxu0 %v3523
      %v3525 = vand.u32 %v3154, 4294901760
      %3526 = vmatpush.msra.mxu0 %v3525
      %v3527 = vand.u32 %v3153, 4294901760
      %3528 = vmatpush.msra.mxu0 %v3527
      %v3529 = vand.u32 %v3152, 4294901760
      %3530 = vmatpush.msra.mxu0 %v3529
      %v3531 = vand.u32 %v3151, 4294901760
      %3532 = vmatpush.msra.mxu0 %v3531
      %v3533 = vand.u32 %v3150, 4294901760
      %3534 = vmatpush.msra.mxu0 %v3533
      %v3535 = vand.u32 %v3149, 4294901760
      %3536 = vmatpush.msra.mxu0 %v3535
      %v3537 = vand.u32 %v3148, 4294901760
      %3538 = vmatpush.msra.mxu0 %v3537
      %v3539 = vand.u32 %v3147, 4294901760
      %3540 = vmatpush.msra.mxu0 %v3539
      %v3541 = vand.u32 %v3174, 4294901760
      %3542 = vmatmul.f32.gmra.mxu0 %v3541
      %v3543 = vpop.f32.mrf.mxu0
      %v3544 = vadd.f32 %v3503, %v3543
      %v3545 = vand.u32 %v3175, 4294901760
      %3546 = vmatmul.f32.gmra.mxu0 %v3545
      %v3547 = vpop.f32.mrf.mxu0
      %v3548 = vadd.f32 %v3507, %v3547
      %3549 = vdwg.mxu0
      %v3550 = vadd.f32 %v3140, %v3544
      %v3551 = vadd.f32 %v3141, %v3548
      %v3552 = vld [vmem:[%s2732 + $0x1] sm:$0xf]
      %v3553 = vld [vmem:[%s2732 + $0x9] sm:$0xf]
      %v3554 = vld [vmem:[%s2732 + $0x11] sm:$0xf]
      %v3555 = vld [vmem:[%s2732 + $0x19] sm:$0xf]
      %v3556 = vld [vmem:[%s263 + $0x400] sm:$0xff]
      %v3557 = vld [vmem:[%s263 + $0x408] sm:$0xff]
      %v3558 = vld [vmem:[%s263 + $0x410] sm:$0xff]
      %v3559 = vld [vmem:[%s263 + $0x418] sm:$0xff]
      %v3560 = vld [vmem:[%s263 + $0x420] sm:$0xff]
      %v3561 = vld [vmem:[%s263 + $0x428] sm:$0xff]
      %v3562 = vld [vmem:[%s263 + $0x430] sm:$0xff]
      %v3563 = vld [vmem:[%s263 + $0x438] sm:$0xff]
      %v3564 = vld [vmem:[%s263 + $0x440] sm:$0xff]
      %v3565 = vld [vmem:[%s263 + $0x448] sm:$0xff]
      %v3566 = vld [vmem:[%s263 + $0x450] sm:$0xff]
      %v3567 = vld [vmem:[%s263 + $0x458] sm:$0xff]
      %v3568 = vld [vmem:[%s263 + $0x460] sm:$0xff]
      %v3569 = vld [vmem:[%s263 + $0x468] sm:$0xff]
      %v3570 = vld [vmem:[%s263 + $0x470] sm:$0xff]
      %v3571 = vld [vmem:[%s263 + $0x478] sm:$0xff]
      %3576 = vst [vmem:[#allocation1] ss:$2 sm:$0xff] %v3552
      %s3577 = scalar_lea.vmem [#allocation1], 1
      %3578 = vst [vmem:[%s3577] ss:$2 sm:$0xff] %v3553
      %s3579 = scalar_lea.vmem [#allocation1], 16
      %3580 = vst [vmem:[%s3579] ss:$2 sm:$0xff] %v3554
      %s3581 = scalar_lea.vmem [#allocation1], 17
      %3582 = vst [vmem:[%s3581] ss:$2 sm:$0xff] %v3555
      %v3583 = vld.sshfl [vmem:[#allocation1] sm:$0xff pattern:$0x75316420]
      %v3584 = vld.sshfl [vmem:[#allocation1 + $0x10] sm:$0xff pattern:$0x75316420]
      %v3587 = vand.u32 %v3571, 4294901760
      %3588 = vmatpush.msra.mxu0 %v3587
      %v3589 = vand.u32 %v3570, 4294901760
      %3590 = vmatpush.msra.mxu0 %v3589
      %v3591 = vand.u32 %v3569, 4294901760
      %3592 = vmatpush.msra.mxu0 %v3591
      %v3593 = vand.u32 %v3568, 4294901760
      %3594 = vmatpush.msra.mxu0 %v3593
      %v3595 = vand.u32 %v3567, 4294901760
      %3596 = vmatpush.msra.mxu0 %v3595
      %v3597 = vand.u32 %v3566, 4294901760
      %3598 = vmatpush.msra.mxu0 %v3597
      %v3599 = vand.u32 %v3565, 4294901760
      %3600 = vmatpush.msra.mxu0 %v3599
      %v3601 = vand.u32 %v3564, 4294901760
      %3602 = vmatpush.msra.mxu0 %v3601
      %v3603 = vand.u32 %v3563, 4294901760
      %3604 = vmatpush.msra.mxu0 %v3603
      %v3605 = vand.u32 %v3562, 4294901760
      %3606 = vmatpush.msra.mxu0 %v3605
      %v3607 = vand.u32 %v3561, 4294901760
      %3608 = vmatpush.msra.mxu0 %v3607
      %v3609 = vand.u32 %v3560, 4294901760
      %3610 = vmatpush.msra.mxu0 %v3609
      %v3611 = vand.u32 %v3559, 4294901760
      %3612 = vmatpush.msra.mxu0 %v3611
      %v3613 = vand.u32 %v3558, 4294901760
      %3614 = vmatpush.msra.mxu0 %v3613
      %v3615 = vand.u32 %v3557, 4294901760
      %3616 = vmatpush.msra.mxu0 %v3615
      %v3617 = vand.u32 %v3556, 4294901760
      %3618 = vmatpush.msra.mxu0 %v3617
      %v3619 = vand.u32 %v3583, 4294901760
      %v3620 = vsub.f32 %v3583, %v3619
      %v3621 = vand.u32 %v3620, 4294901760
      %v3622 = vsub.f32 %v3620, %v3621
      %v3623 = vand.u32 %v3622, 4294901760
      %3624 = vmatmul.f32.gmra.mxu0 %v3623
      %v3625 = vpop.f32.mrf.mxu0
      %v3626 = vadd.f32 0.0, %v3625
      %v3627 = vand.u32 %v3584, 4294901760
      %v3628 = vsub.f32 %v3584, %v3627
      %v3629 = vand.u32 %v3628, 4294901760
      %v3630 = vsub.f32 %v3628, %v3629
      %v3631 = vand.u32 %v3630, 4294901760
      %3632 = vmatmul.f32.gmra.mxu0 %v3631
      %v3633 = vpop.f32.mrf.mxu0
      %v3634 = vadd.f32 0.0, %v3633
      %3635 = vdwg.mxu0
      %v3636 = vand.u32 %v3571, 4294901760
      %v3637 = vsub.f32 %v3571, %v3636
      %v3638 = vand.u32 %v3637, 4294901760
      %v3639 = vsub.f32 %v3637, %v3638
      %v3640 = vand.u32 %v3639, 4294901760
      %3641 = vmatpush.msra.mxu0 %v3640
      %v3642 = vand.u32 %v3570, 4294901760
      %v3643 = vsub.f32 %v3570, %v3642
      %v3644 = vand.u32 %v3643, 4294901760
      %v3645 = vsub.f32 %v3643, %v3644
      %v3646 = vand.u32 %v3645, 4294901760
      %3647 = vmatpush.msra.mxu0 %v3646
      %v3648 = vand.u32 %v3569, 4294901760
      %v3649 = vsub.f32 %v3569, %v3648
      %v3650 = vand.u32 %v3649, 4294901760
      %v3651 = vsub.f32 %v3649, %v3650
      %v3652 = vand.u32 %v3651, 4294901760
      %3653 = vmatpush.msra.mxu0 %v3652
      %v3654 = vand.u32 %v3568, 4294901760
      %v3655 = vsub.f32 %v3568, %v3654
      %v3656 = vand.u32 %v3655, 4294901760
      %v3657 = vsub.f32 %v3655, %v3656
      %v3658 = vand.u32 %v3657, 4294901760
      %3659 = vmatpush.msra.mxu0 %v3658
      %v3660 = vand.u32 %v3567, 4294901760
      %v3661 = vsub.f32 %v3567, %v3660
      %v3662 = vand.u32 %v3661, 4294901760
      %v3663 = vsub.f32 %v3661, %v3662
      %v3664 = vand.u32 %v3663, 4294901760
      %3665 = vmatpush.msra.mxu0 %v3664
      %v3666 = vand.u32 %v3566, 4294901760
      %v3667 = vsub.f32 %v3566, %v3666
      %v3668 = vand.u32 %v3667, 4294901760
      %v3669 = vsub.f32 %v3667, %v3668
      %v3670 = vand.u32 %v3669, 4294901760
      %3671 = vmatpush.msra.mxu0 %v3670
      %v3672 = vand.u32 %v3565, 4294901760
      %v3673 = vsub.f32 %v3565, %v3672
      %v3674 = vand.u32 %v3673, 4294901760
      %v3675 = vsub.f32 %v3673, %v3674
      %v3676 = vand.u32 %v3675, 4294901760
      %3677 = vmatpush.msra.mxu0 %v3676
      %v3678 = vand.u32 %v3564, 4294901760
      %v3679 = vsub.f32 %v3564, %v3678
      %v3680 = vand.u32 %v3679, 4294901760
      %v3681 = vsub.f32 %v3679, %v3680
      %v3682 = vand.u32 %v3681, 4294901760
      %3683 = vmatpush.msra.mxu0 %v3682
      %v3684 = vand.u32 %v3563, 4294901760
      %v3685 = vsub.f32 %v3563, %v3684
      %v3686 = vand.u32 %v3685, 4294901760
      %v3687 = vsub.f32 %v3685, %v3686
      %v3688 = vand.u32 %v3687, 4294901760
      %3689 = vmatpush.msra.mxu0 %v3688
      %v3690 = vand.u32 %v3562, 4294901760
      %v3691 = vsub.f32 %v3562, %v3690
      %v3692 = vand.u32 %v3691, 4294901760
      %v3693 = vsub.f32 %v3691, %v3692
      %v3694 = vand.u32 %v3693, 4294901760
      %3695 = vmatpush.msra.mxu0 %v3694
      %v3696 = vand.u32 %v3561, 4294901760
      %v3697 = vsub.f32 %v3561, %v3696
      %v3698 = vand.u32 %v3697, 4294901760
      %v3699 = vsub.f32 %v3697, %v3698
      %v3700 = vand.u32 %v3699, 4294901760
      %3701 = vmatpush.msra.mxu0 %v3700
      %v3702 = vand.u32 %v3560, 4294901760
      %v3703 = vsub.f32 %v3560, %v3702
      %v3704 = vand.u32 %v3703, 4294901760
      %v3705 = vsub.f32 %v3703, %v3704
      %v3706 = vand.u32 %v3705, 4294901760
      %3707 = vmatpush.msra.mxu0 %v3706
      %v3708 = vand.u32 %v3559, 4294901760
      %v3709 = vsub.f32 %v3559, %v3708
      %v3710 = vand.u32 %v3709, 4294901760
      %v3711 = vsub.f32 %v3709, %v3710
      %v3712 = vand.u32 %v3711, 4294901760
      %3713 = vmatpush.msra.mxu0 %v3712
      %v3714 = vand.u32 %v3558, 4294901760
      %v3715 = vsub.f32 %v3558, %v3714
      %v3716 = vand.u32 %v3715, 4294901760
      %v3717 = vsub.f32 %v3715, %v3716
      %v3718 = vand.u32 %v3717, 4294901760
      %3719 = vmatpush.msra.mxu0 %v3718
      %v3720 = vand.u32 %v3557, 4294901760
      %v3721 = vsub.f32 %v3557, %v3720
      %v3722 = vand.u32 %v3721, 4294901760
      %v3723 = vsub.f32 %v3721, %v3722
      %v3724 = vand.u32 %v3723, 4294901760
      %3725 = vmatpush.msra.mxu0 %v3724
      %v3726 = vand.u32 %v3556, 4294901760
      %v3727 = vsub.f32 %v3556, %v3726
      %v3728 = vand.u32 %v3727, 4294901760
      %v3729 = vsub.f32 %v3727, %v3728
      %v3730 = vand.u32 %v3729, 4294901760
      %3731 = vmatpush.msra.mxu0 %v3730
      %v3732 = vand.u32 %v3583, 4294901760
      %3733 = vmatmul.f32.gmra.mxu0 %v3732
      %v3734 = vpop.f32.mrf.mxu0
      %v3735 = vadd.f32 %v3626, %v3734
      %v3736 = vand.u32 %v3584, 4294901760
      %3737 = vmatmul.f32.gmra.mxu0 %v3736
      %v3738 = vpop.f32.mrf.mxu0
      %v3739 = vadd.f32 %v3634, %v3738
      %3740 = vdwg.mxu0
      %v3741 = vand.u32 %v3571, 4294901760
      %v3742 = vsub.f32 %v3571, %v3741
      %3743 = vmatpush.msra.mxu0 %v3742
      %v3744 = vand.u32 %v3570, 4294901760
      %v3745 = vsub.f32 %v3570, %v3744
      %3746 = vmatpush.msra.mxu0 %v3745
      %v3747 = vand.u32 %v3569, 4294901760
      %v3748 = vsub.f32 %v3569, %v3747
      %3749 = vmatpush.msra.mxu0 %v3748
      %v3750 = vand.u32 %v3568, 4294901760
      %v3751 = vsub.f32 %v3568, %v3750
      %3752 = vmatpush.msra.mxu0 %v3751
      %v3753 = vand.u32 %v3567, 4294901760
      %v3754 = vsub.f32 %v3567, %v3753
      %3755 = vmatpush.msra.mxu0 %v3754
      %v3756 = vand.u32 %v3566, 4294901760
      %v3757 = vsub.f32 %v3566, %v3756
      %3758 = vmatpush.msra.mxu0 %v3757
      %v3759 = vand.u32 %v3565, 4294901760
      %v3760 = vsub.f32 %v3565, %v3759
      %3761 = vmatpush.msra.mxu0 %v3760
      %v3762 = vand.u32 %v3564, 4294901760
      %v3763 = vsub.f32 %v3564, %v3762
      %3764 = vmatpush.msra.mxu0 %v3763
      %v3765 = vand.u32 %v3563, 4294901760
      %v3766 = vsub.f32 %v3563, %v3765
      %3767 = vmatpush.msra.mxu0 %v3766
      %v3768 = vand.u32 %v3562, 4294901760
      %v3769 = vsub.f32 %v3562, %v3768
      %3770 = vmatpush.msra.mxu0 %v3769
      %v3771 = vand.u32 %v3561, 4294901760
      %v3772 = vsub.f32 %v3561, %v3771
      %3773 = vmatpush.msra.mxu0 %v3772
      %v3774 = vand.u32 %v3560, 4294901760
      %v3775 = vsub.f32 %v3560, %v3774
      %3776 = vmatpush.msra.mxu0 %v3775
      %v3777 = vand.u32 %v3559, 4294901760
      %v3778 = vsub.f32 %v3559, %v3777
      %3779 = vmatpush.msra.mxu0 %v3778
      %v3780 = vand.u32 %v3558, 4294901760
      %v3781 = vsub.f32 %v3558, %v3780
      %3782 = vmatpush.msra.mxu0 %v3781
      %v3783 = vand.u32 %v3557, 4294901760
      %v3784 = vsub.f32 %v3557, %v3783
      %3785 = vmatpush.msra.mxu0 %v3784
      %v3786 = vand.u32 %v3556, 4294901760
      %v3787 = vsub.f32 %v3556, %v3786
      %3788 = vmatpush.msra.mxu0 %v3787
      %v3789 = vand.u32 %v3583, 4294901760
      %v3790 = vsub.f32 %v3583, %v3789
      %3791 = vmatmul.f32.gmra.mxu0 %v3790
      %v3792 = vpop.f32.mrf.mxu0
      %v3793 = vadd.f32 %v3735, %v3792
      %v3794 = vand.u32 %v3584, 4294901760
      %v3795 = vsub.f32 %v3584, %v3794
      %3796 = vmatmul.f32.gmra.mxu0 %v3795
      %v3797 = vpop.f32.mrf.mxu0
      %v3798 = vadd.f32 %v3739, %v3797
      %3799 = vdwg.mxu0
      %v3800 = vand.u32 %v3571, 4294901760
      %3801 = vmatpush.msra.mxu0 %v3800
      %v3802 = vand.u32 %v3570, 4294901760
      %3803 = vmatpush.msra.mxu0 %v3802
      %v3804 = vand.u32 %v3569, 4294901760
      %3805 = vmatpush.msra.mxu0 %v3804
      %v3806 = vand.u32 %v3568, 4294901760
      %3807 = vmatpush.msra.mxu0 %v3806
      %v3808 = vand.u32 %v3567, 4294901760
      %3809 = vmatpush.msra.mxu0 %v3808
      %v3810 = vand.u32 %v3566, 4294901760
      %3811 = vmatpush.msra.mxu0 %v3810
      %v3812 = vand.u32 %v3565, 4294901760
      %3813 = vmatpush.msra.mxu0 %v3812
      %v3814 = vand.u32 %v3564, 4294901760
      %3815 = vmatpush.msra.mxu0 %v3814
      %v3816 = vand.u32 %v3563, 4294901760
      %3817 = vmatpush.msra.mxu0 %v3816
      %v3818 = vand.u32 %v3562, 4294901760
      %3819 = vmatpush.msra.mxu0 %v3818
      %v3820 = vand.u32 %v3561, 4294901760
      %3821 = vmatpush.msra.mxu0 %v3820
      %v3822 = vand.u32 %v3560, 4294901760
      %3823 = vmatpush.msra.mxu0 %v3822
      %v3824 = vand.u32 %v3559, 4294901760
      %3825 = vmatpush.msra.mxu0 %v3824
      %v3826 = vand.u32 %v3558, 4294901760
      %3827 = vmatpush.msra.mxu0 %v3826
      %v3828 = vand.u32 %v3557, 4294901760
      %3829 = vmatpush.msra.mxu0 %v3828
      %v3830 = vand.u32 %v3556, 4294901760
      %3831 = vmatpush.msra.mxu0 %v3830
      %v3832 = vand.u32 %v3583, 4294901760
      %v3833 = vsub.f32 %v3583, %v3832
      %v3834 = vand.u32 %v3833, 4294901760
      %3835 = vmatmul.f32.gmra.mxu0 %v3834
      %v3836 = vpop.f32.mrf.mxu0
      %v3837 = vadd.f32 %v3793, %v3836
      %v3838 = vand.u32 %v3584, 4294901760
      %v3839 = vsub.f32 %v3584, %v3838
      %v3840 = vand.u32 %v3839, 4294901760
      %3841 = vmatmul.f32.gmra.mxu0 %v3840
      %v3842 = vpop.f32.mrf.mxu0
      %v3843 = vadd.f32 %v3798, %v3842
      %3844 = vdwg.mxu0
      %v3845 = vand.u32 %v3571, 4294901760
      %v3846 = vsub.f32 %v3571, %v3845
      %v3847 = vand.u32 %v3846, 4294901760
      %3848 = vmatpush.msra.mxu0 %v3847
      %v3849 = vand.u32 %v3570, 4294901760
      %v3850 = vsub.f32 %v3570, %v3849
      %v3851 = vand.u32 %v3850, 4294901760
      %3852 = vmatpush.msra.mxu0 %v3851
      %v3853 = vand.u32 %v3569, 4294901760
      %v3854 = vsub.f32 %v3569, %v3853
      %v3855 = vand.u32 %v3854, 4294901760
      %3856 = vmatpush.msra.mxu0 %v3855
      %v3857 = vand.u32 %v3568, 4294901760
      %v3858 = vsub.f32 %v3568, %v3857
      %v3859 = vand.u32 %v3858, 4294901760
      %3860 = vmatpush.msra.mxu0 %v3859
      %v3861 = vand.u32 %v3567, 4294901760
      %v3862 = vsub.f32 %v3567, %v3861
      %v3863 = vand.u32 %v3862, 4294901760
      %3864 = vmatpush.msra.mxu0 %v3863
      %v3865 = vand.u32 %v3566, 4294901760
      %v3866 = vsub.f32 %v3566, %v3865
      %v3867 = vand.u32 %v3866, 4294901760
      %3868 = vmatpush.msra.mxu0 %v3867
      %v3869 = vand.u32 %v3565, 4294901760
      %v3870 = vsub.f32 %v3565, %v3869
      %v3871 = vand.u32 %v3870, 4294901760
      %3872 = vmatpush.msra.mxu0 %v3871
      %v3873 = vand.u32 %v3564, 4294901760
      %v3874 = vsub.f32 %v3564, %v3873
      %v3875 = vand.u32 %v3874, 4294901760
      %3876 = vmatpush.msra.mxu0 %v3875
      %v3877 = vand.u32 %v3563, 4294901760
      %v3878 = vsub.f32 %v3563, %v3877
      %v3879 = vand.u32 %v3878, 4294901760
      %3880 = vmatpush.msra.mxu0 %v3879
      %v3881 = vand.u32 %v3562, 4294901760
      %v3882 = vsub.f32 %v3562, %v3881
      %v3883 = vand.u32 %v3882, 4294901760
      %3884 = vmatpush.msra.mxu0 %v3883
      %v3885 = vand.u32 %v3561, 4294901760
      %v3886 = vsub.f32 %v3561, %v3885
      %v3887 = vand.u32 %v3886, 4294901760
      %3888 = vmatpush.msra.mxu0 %v3887
      %v3889 = vand.u32 %v3560, 4294901760
      %v3890 = vsub.f32 %v3560, %v3889
      %v3891 = vand.u32 %v3890, 4294901760
      %3892 = vmatpush.msra.mxu0 %v3891
      %v3893 = vand.u32 %v3559, 4294901760
      %v3894 = vsub.f32 %v3559, %v3893
      %v3895 = vand.u32 %v3894, 4294901760
      %3896 = vmatpush.msra.mxu0 %v3895
      %v3897 = vand.u32 %v3558, 4294901760
      %v3898 = vsub.f32 %v3558, %v3897
      %v3899 = vand.u32 %v3898, 4294901760
      %3900 = vmatpush.msra.mxu0 %v3899
      %v3901 = vand.u32 %v3557, 4294901760
      %v3902 = vsub.f32 %v3557, %v3901
      %v3903 = vand.u32 %v3902, 4294901760
      %3904 = vmatpush.msra.mxu0 %v3903
      %v3905 = vand.u32 %v3556, 4294901760
      %v3906 = vsub.f32 %v3556, %v3905
      %v3907 = vand.u32 %v3906, 4294901760
      %3908 = vmatpush.msra.mxu0 %v3907
      %v3909 = vand.u32 %v3583, 4294901760
      %3910 = vmatmul.f32.gmra.mxu0 %v3909
      %v3911 = vpop.f32.mrf.mxu0
      %v3912 = vadd.f32 %v3837, %v3911
      %v3913 = vand.u32 %v3584, 4294901760
      %3914 = vmatmul.f32.gmra.mxu0 %v3913
      %v3915 = vpop.f32.mrf.mxu0
      %v3916 = vadd.f32 %v3843, %v3915
      %3917 = vdwg.mxu0
      %v3918 = vand.u32 %v3571, 4294901760
      %3919 = vmatpush.msra.mxu0 %v3918
      %v3920 = vand.u32 %v3570, 4294901760
      %3921 = vmatpush.msra.mxu0 %v3920
      %v3922 = vand.u32 %v3569, 4294901760
      %3923 = vmatpush.msra.mxu0 %v3922
      %v3924 = vand.u32 %v3568, 4294901760
      %3925 = vmatpush.msra.mxu0 %v3924
      %v3926 = vand.u32 %v3567, 4294901760
      %3927 = vmatpush.msra.mxu0 %v3926
      %v3928 = vand.u32 %v3566, 4294901760
      %3929 = vmatpush.msra.mxu0 %v3928
      %v3930 = vand.u32 %v3565, 4294901760
      %3931 = vmatpush.msra.mxu0 %v3930
      %v3932 = vand.u32 %v3564, 4294901760
      %3933 = vmatpush.msra.mxu0 %v3932
      %v3934 = vand.u32 %v3563, 4294901760
      %3935 = vmatpush.msra.mxu0 %v3934
      %v3936 = vand.u32 %v3562, 4294901760
      %3937 = vmatpush.msra.mxu0 %v3936
      %v3938 = vand.u32 %v3561, 4294901760
      %3939 = vmatpush.msra.mxu0 %v3938
      %v3940 = vand.u32 %v3560, 4294901760
      %3941 = vmatpush.msra.mxu0 %v3940
      %v3942 = vand.u32 %v3559, 4294901760
      %3943 = vmatpush.msra.mxu0 %v3942
      %v3944 = vand.u32 %v3558, 4294901760
      %3945 = vmatpush.msra.mxu0 %v3944
      %v3946 = vand.u32 %v3557, 4294901760
      %3947 = vmatpush.msra.mxu0 %v3946
      %v3948 = vand.u32 %v3556, 4294901760
      %3949 = vmatpush.msra.mxu0 %v3948
      %v3950 = vand.u32 %v3583, 4294901760
      %3951 = vmatmul.f32.gmra.mxu0 %v3950
      %v3952 = vpop.f32.mrf.mxu0
      %v3953 = vadd.f32 %v3912, %v3952
      %v3954 = vand.u32 %v3584, 4294901760
      %3955 = vmatmul.f32.gmra.mxu0 %v3954
      %v3956 = vpop.f32.mrf.mxu0
      %v3957 = vadd.f32 %v3916, %v3956
      %3958 = vdwg.mxu0
      %v3959 = vadd.f32 %v3550, %v3953
      %v3960 = vadd.f32 %v3551, %v3957
      %v3961 = vld [vmem:[%s267] sm:$0x1]
      %v3963 = vperm.slane %v3961, 0
      %v3965 = vmul.f32 %v3959, %v3963
      %v3966 = vmul.f32 %v3960, %v3963
      %v3967 = vld [vmem:[%s270] sm:$0x1]
      %v3969 = vperm.slane %v3967, 0
      %v3971 = vadd.f32 %v3965, %v3969
      %v3972 = vadd.f32 %v3966, %v3969
      %v3973 = vmax.f32 %v3971, 0.0
      %v3974 = vmax.f32 %v3972, 0.0
      %v3977 = vrot.slane %v3973, 4
      %v3978 = vrot.slane %v3974, 4
      %3981 = vst [vmem:[%s278] sm:$0xf] %v3973
      %3982 = vst [vmem:[%s278 + $0x4] sm:$0xf] %v3977
      %3983 = vst [vmem:[%s278 + $0x8] sm:$0xf] %v3974
      %3984 = vst [vmem:[%s278 + $0xc] sm:$0xf] %v3978
      %p3985 = scmp.lt.s32.totalorder %s19, 1
      %s3986 = scalar_select %p3985, %s19, 1
      %p3987 = scmp.lt.s32.totalorder %s20, 0
      %s3988 = scalar_select %p3987, %s20, 0
      %s3989 = smul.addr %s3986, 4
      %s3990 = sadd.s32 %s3988, %s3989
      %s3991 = smul.addr %s3990, 4
      %s3992 = scalar_lea.vmem %s4, %s3991
      // Predicated region
      $region37: #{bottleneck_pallas.4} parent=35 // pred_check
        %p3993 = pneg %p153
      $region38: #{bottleneck_pallas.4} parent=35 // pred_check_branch
        %3995 = sbr.rel (%p3993) target = $region40
      $region39: #{bottleneck_pallas.4} parent=35 // pred_region
        _
      $region40: #{bottleneck_pallas.4} parent=35 // pred_fallthru
        _
    $region36: #{bottleneck_pallas.4} parent=5 // pred_fallthru
      _
    %p3996 = scmp.le.s32.totalorder 2, %s10
    // Predicated region
    $region41: #{bottleneck_pallas.4} parent=5 // pred_check
      %p3997 = pneg %p3996
    $region42: #{bottleneck_pallas.4} parent=5 // pred_check_branch
      %3999 = sbr.rel (%p3997) target = $region44
    $region43: #{bottleneck_pallas.4} parent=5 // pred_region
      %s4000 = ssub.s32 %s10, 2
      // Predicated region
      $region45: #{bottleneck_pallas.4} parent=43 // pred_check
        %p4001 = pneg %p159
      $region46: #{bottleneck_pallas.4} parent=43 // pred_check_branch
        %4003 = sbr.rel (%p4001) target = $region48
      $region47: #{bottleneck_pallas.4} parent=43 // pred_region
        %p4004 = scmp.lt.s32.totalorder %s21, 1
        %s4005 = scalar_select %p4004, %s21, 1
        %p4006 = scmp.lt.s32.totalorder %s22, 0
        %s4007 = scalar_select %p4006, %s22, 0
        %s4008 = smul.addr %s4005, 4
        %s4009 = sadd.s32 %s4007, %s4008
        %s4010 = smul.addr %s4009, 4
        %s4011 = scalar_lea.vmem %s4, %s4010
      $region48: #{bottleneck_pallas.4} parent=43 // pred_fallthru
        _
    $region44: #{bottleneck_pallas.4} parent=5 // pred_fallthru
      _
  $region6: #{bottleneck_pallas.4} parent=0 // loop_footer
    %s14 = sadd.s32 1, %s10
  $region7: #{bottleneck_pallas.4} parent=0 // loop_footer_branch
    %9 = sbr.rel target = $region3
  $region8: #{bottleneck_pallas.4} parent=0 // loop_exit
    _

</llo_original>
